<compile_context>
chip_gen: v7x
topology: tpu7x:2x2x1
jax: 0.10.0
libtpu: 0.0.40
codegen_flags: <defaults>
</compile_context>

<pallas_src>
import functools
import math

import jax
import jax.numpy as jnp
from jax.experimental import pallas as pl
from jax.experimental.pallas import tpu as pltpu

EPS = 1e-5


def _round_up(x, m):
    return (x + m - 1) // m * m


def _vmem_limit_bytes(per_step_bytes):
    """Request roughly what the pipeline needs (double buffers + margin), capped at 48 MiB so we
    never ask for all of v7x's 64 MiB physical VMEM."""
    return int(min(max(2 * per_step_bytes + (4 << 20), 8 << 20), 48 << 20))


# ----------------------------- in-kernel helpers -----------------------------


def _col_masks(hw, cp, w):
    """Keep-masks over the flattened (hw, cp) activation: [col != 0, col != w-1]."""
    col = jax.lax.broadcasted_iota(jnp.int32, (hw, cp), 0) % w
    return col > 0, col < (w - 1)


def _fill_slab(slab_ref, a_f32, mask_w0, mask_wl, *, H, W, Cp):
    """Write the three kw-shifted, zero-padded copies of the flattened (H*W, Cp) activation into
    the ((H+2)*W, 3*Cp) bf16 VMEM scratch (channel blocks ordered [kw=0 | kw=1 | kw=2]).
    Zero halo rows give the vertical conv padding; the column masks give the horizontal one."""
    HW = H * W
    zeros_row = jnp.zeros((W, 3 * Cp), jnp.bfloat16)
    slab_ref[0:W, :] = zeros_row                                        # top halo
    slab_ref[(H + 1) * W:(H + 2) * W, :] = zeros_row                    # bottom halo
    slab_ref[W:(H + 1) * W, Cp:2 * Cp] = a_f32.astype(jnp.bfloat16)     # kw = 1 (centre)
    left = pltpu.roll(a_f32, 1, axis=0)                                 # left[i] = a[i-1]
    slab_ref[W:(H + 1) * W, 0:Cp] = jnp.where(mask_w0, left, 0.0).astype(jnp.bfloat16)
    right = pltpu.roll(a_f32, HW - 1, axis=0)                           # right[i] = a[i+1]
    slab_ref[W:(H + 1) * W, 2 * Cp:3 * Cp] = jnp.where(mask_wl, right, 0.0).astype(jnp.bfloat16)


def _conv3x3_from_slab(slab_ref, w_ref, *, H, W):
    """3x3 stride-1 conv as THREE dots with K = 3*Cp over the kw-concatenated slab."""
    HW = H * W
    acc = jnp.dot(slab_ref[0:HW, :], w_ref[0], preferred_element_type=jnp.float32)
    acc = acc + jnp.dot(slab_ref[W:W + HW, :], w_ref[1], preferred_element_type=jnp.float32)
    acc = acc + jnp.dot(slab_ref[2 * W:2 * W + HW, :], w_ref[2],
                        preferred_element_type=jnp.float32)
    return acc


# ----------------------------- Pallas kernels ------------------------------


def _resblock_id_kernel(x_ref, w1, s1, b1, w2, s2, b2, o_ref, slab, *, H, W, Cp):
    """Fused residual block, stride 1, identity shortcut.  One image per grid step.
    x_ref / o_ref: (1, H*W, Cp) bf16; slab: ((H+2)*W, 3*Cp) bf16 scratch (shared by both convs)."""
    x = x_ref[0].astype(jnp.float32)                      # reused for the rolls and the residual
    mask_w0, mask_wl = _col_masks(H * W, Cp, W)

    # conv1 (3x3 / stride 1 / pad 1) + BN1 + ReLU
    _fill_slab(slab, x, mask_w0, mask_wl, H=H, W=W, Cp=Cp)
    y1 = jnp.maximum(_conv3x3_from_slab(slab, w1, H=H, W=W) * s1[...] + b1[...], 0.0)

    # conv2 (3x3 / stride 1 / pad 1) + BN2
    _fill_slab(slab, y1, mask_w0, mask_wl, H=H, W=W, Cp=Cp)
    left = _conv3x3_from_slab(slab, w2, H=H, W=W) * s2[...] + b2[...]

    # identity shortcut + final ReLU (lane-dense bf16 store)
    o_ref[0] = jnp.maximum(left + x, 0.0).astype(o_ref.dtype)


def _resblock_down_kernel(se_ref, so_ref, w1, s1, b1, w2, s2, b2, wr, sr, br,
                          o_ref, slab, *, Ho, Wo, Cp):
    """Fused residual block, stride 2, 1x1-conv shortcut.  One image per grid step.
    se_ref / so_ref: (1, (Ho+1)*Wo, 3*cin) bf16 kw-concatenated slabs (even / odd row parity)."""
    HW = Ho * Wo
    so_c = so_ref[0, 0:HW, :]                             # odd-parity rows (kh = 1 and shortcut)

    # conv1 (3x3 / stride 2 / pad 1) + BN1 + ReLU — three dots with K = 3*cin
    acc = jnp.dot(se_ref[0, 0:HW, :], w1[0], preferred_element_type=jnp.float32)
    acc = acc + jnp.dot(so_c, w1[1], preferred_element_type=jnp.float32)
    acc = acc + jnp.dot(se_ref[0, Wo:Wo + HW, :], w1[2], preferred_element_type=jnp.float32)
    y1 = jnp.maximum(acc * s1[...] + b1[...], 0.0)

    # conv2 (3x3 / stride 1 / pad 1) + BN2 via the same kw-concat scratch slab
    mask_w0, mask_wl = _col_masks(HW, Cp, Wo)
    _fill_slab(slab, y1, mask_w0, mask_wl, H=Ho, W=Wo, Cp=Cp)
    left = _conv3x3_from_slab(slab, w2, H=Ho, W=Wo) * s2[...] + b2[...]

    # 1x1 stride-2 shortcut conv + BNr: x[2h, 2w] taps are the kw=1 channel block of the
    # odd-parity slab; wr is zero-embedded into (3*cin, Cp) so no unaligned lane slicing.
    right = jnp.dot(so_c, wr[...], preferred_element_type=jnp.float32) * sr[...] + br[...]

    o_ref[0] = jnp.maximum(left + right, 0.0).astype(o_ref.dtype)


# ------------------------------- JAX glue -----------------------------------


def _shift_slabs_s2_kcat(x, ho, wo):
    """x: (N, H, W, C) f32, stride 2 -> two bf16 slabs (N, (ho+1)*wo, 3*C), one per input-row
    parity, with the three kw shifts concatenated along the channel axis ([kw=0 | kw=1 | kw=2])."""
    N, H, W, C = x.shape
    xp = jnp.pad(x, ((0, 0), (1, 1), (1, 1), (0, 0)))
    slabs = []
    for par in range(2):
        parts = [xp[:, par::2, kw:kw + 2 * wo:2, :] for kw in range(3)]   # (N, ho+1, wo, C)
        slab = jnp.concatenate(parts, axis=-1).reshape(N, (ho + 1) * wo, 3 * C)
        slabs.append(slab.astype(jnp.bfloat16))
    return slabs


def _prep_conv3_kcat(w, cin_pad, cout_pad):
    """PyTorch conv weight (Cout, Cin, 3, 3) -> (3, 3*cin_pad, cout_pad) bf16; row kh holds the
    three kw taps stacked along K, matching the slab channel-block layout."""
    cout, cin, KH, KW = w.shape
    wt = jnp.transpose(w, (2, 3, 1, 0))                               # (KH, KW, cin, cout)
    wt = jnp.pad(wt, ((0, 0), (0, 0), (0, cin_pad - cin), (0, cout_pad - cout)))
    return wt.reshape(KH, KW * cin_pad, cout_pad).astype(jnp.bfloat16)


def _prep_shortcut_kcat(w, cin, cout_pad):
    """1x1 shortcut weight (Cout, Cin, 1, 1) zero-embedded into the kw=1 block of (3*cin, cout_pad)."""
    cout = w.shape[0]
    m = jnp.pad(jnp.transpose(w[:, :, 0, 0]), ((0, 0), (0, cout_pad - cout)))
    z = jnp.zeros((3 * cin, cout_pad), m.dtype)
    return z.at[cin:2 * cin].set(m).astype(jnp.bfloat16)


def _bn_fold_pad(bn, cp, eps=EPS):
    gamma, beta, mean, var = bn
    scale = gamma / jnp.sqrt(var + eps)
    bias = beta - mean * scale
    c = gamma.shape[0]
    scale = jnp.pad(scale, (0, cp - c)).reshape(1, cp).astype(jnp.float32)
    bias = jnp.pad(bias, (0, cp - c)).reshape(1, cp).astype(jnp.float32)
    return scale, bias


# ------------------------- parameter initialization --------------------------


def _conv_init(key, cout, cin, k):
    sf = 1.0 / math.sqrt(cin * k * k)
    return sf * (2.0 * jax.random.uniform(key, (cout, cin, k, k), jnp.float32) - 1.0)


def _bn_init(c):
    # (weight, bias, running_mean, running_var) exactly as in BatchNorm2d.__init__
    return (jnp.ones((c,), jnp.float32), jnp.zeros((c,), jnp.float32),
            jnp.zeros((c,), jnp.float32), jnp.ones((c,), jnp.float32))


def init_block_group(key, n_blocks, in_feats, out_feats, first_stride):
    cp = _round_up(out_feats, 128)                       # lane-dense channel padding
    blocks = []
    for i in range(n_blocks):
        cin = in_feats if i == 0 else out_feats
        stride = first_stride if i == 0 else 1
        key, k1, k2, k3 = jax.random.split(key, 4)
        w1 = _conv_init(k1, out_feats, cin, 3)
        w2 = _conv_init(k2, out_feats, out_feats, 3)
        bn1, bn2 = _bn_init(out_feats), _bn_init(out_feats)
        s1, b1 = _bn_fold_pad(bn1, cp)
        s2, b2 = _bn_fold_pad(bn2, cp)
        cin_pad = cin if stride > 1 else cp              # identity blocks consume cp-wide input
        blk = dict(stride=stride, w1=w1, w2=w2, bn1=bn1, bn2=bn2,
                   w1_t=_prep_conv3_kcat(w1, cin_pad, cp),
                   w2_t=_prep_conv3_kcat(w2, cp, cp),
                   s1=s1, b1=b1, s2=s2, b2=b2)
        if stride > 1:
            wr = _conv_init(k3, out_feats, cin, 1)
            bnr = _bn_init(out_feats)
            sr, br = _bn_fold_pad(bnr, cp)
            blk.update(wr=wr, bnr=bnr, wr_t=_prep_shortcut_kcat(wr, cin, cp), sr=sr, br=br)
        blocks.append(blk)
    return dict(blocks=blocks, cp=cp, out_feats=out_feats, in_feats=in_feats)


# ----------------------------- forward passes --------------------------------


def _vec_spec(cp):
    return pl.BlockSpec((1, cp), lambda n: (0, 0))


def _residual_block_id(xflat, blk, cp, H, W):
    """xflat: (N, H*W, cp) bf16 (channel-padded, lane-dense) -> (N, H*W, cp) bf16."""
    N, HW, C = xflat.shape
    assert C == cp and HW == H * W and W % 8 == 0
    kernel = functools.partial(_resblock_id_kernel, H=H, W=W, Cp=cp)
    act_spec = pl.BlockSpec((1, HW, cp), lambda n: (n, 0, 0))
    w_spec = pl.BlockSpec((3, 3 * cp, cp), lambda n: (0, 0, 0))
    vec = _vec_spec(cp)
    slab_bytes = (H + 2) * W * 3 * cp * 2
    flops = 2 * N * HW * 18 * cp * cp
    bytes_acc = int(2 * N * HW * cp * 2 + 18 * cp * cp * 2 + 4 * cp * 4)
    per_step = 2 * HW * cp * 2 + 18 * cp * cp * 2 + 4 * cp * 4 + slab_bytes

    return pl.pallas_call(
        kernel,
        out_shape=jax.ShapeDtypeStruct((N, HW, cp), jnp.bfloat16),
        grid=(N,),
        in_specs=[act_spec, w_spec, vec, vec, w_spec, vec, vec],
        out_specs=pl.BlockSpec((1, HW, cp), lambda n: (n, 0, 0)),
        scratch_shapes=[pltpu.VMEM(((H + 2) * W, 3 * cp), jnp.bfloat16)],
        compiler_params=pltpu.CompilerParams(
            dimension_semantics=("parallel",),
            vmem_limit_bytes=_vmem_limit_bytes(per_step)),
        cost_estimate=pl.CostEstimate(flops=flops, transcendentals=0,
                                      bytes_accessed=bytes_acc),
    )(xflat, blk["w1_t"], blk["s1"], blk["b1"], blk["w2_t"], blk["s2"], blk["b2"])


def _residual_block_down(x, blk, cp):
    """x: (N, H, W, cin) f32 -> (N, (H//2)*(W//2), cp) bf16."""
    N, H, W, cin = x.shape
    assert H % 2 == 0 and W % 2 == 0
    ho, wo = H // 2, W // 2
    assert wo % 8 == 0
    hw = ho * wo
    ls = (ho + 1) * wo
    se, so = _shift_slabs_s2_kcat(x, ho, wo)
    kernel = functools.partial(_resblock_down_kernel, Ho=ho, Wo=wo, Cp=cp)
    slab_spec = pl.BlockSpec((1, ls, 3 * cin), lambda n: (n, 0, 0))
    vec = _vec_spec(cp)
    wbytes = (9 * cin + 9 * cp + 3 * cin) * cp * 2
    flops = 2 * N * hw * (9 * cin * cp + 9 * cp * cp + cin * cp)
    bytes_acc = int(2 * N * ls * 3 * cin * 2 + N * hw * cp * 2 + wbytes + 6 * cp * 4)
    per_step = (2 * ls * 3 * cin * 2 + hw * cp * 2 + wbytes + 6 * cp * 4
                + (ho + 2) * wo * 3 * cp * 2)

    return pl.pallas_call(
        kernel,
        out_shape=jax.ShapeDtypeStruct((N, hw, cp), jnp.bfloat16),
        grid=(N,),
        in_specs=[slab_spec, slab_spec,
                  pl.BlockSpec((3, 3 * cin, cp), lambda n: (0, 0, 0)), vec, vec,   # conv1 + BN1
                  pl.BlockSpec((3, 3 * cp, cp), lambda n: (0, 0, 0)), vec, vec,    # conv2 + BN2
                  pl.BlockSpec((3 * cin, cp), lambda n: (0, 0)), vec, vec],        # shortcut + BNr
        out_specs=pl.BlockSpec((1, hw, cp), lambda n: (n, 0, 0)),
        scratch_shapes=[pltpu.VMEM(((ho + 2) * wo, 3 * cp), jnp.bfloat16)],
        compiler_params=pltpu.CompilerParams(
            dimension_semantics=("parallel",),
            vmem_limit_bytes=_vmem_limit_bytes(per_step)),
        cost_estimate=pl.CostEstimate(flops=flops, transcendentals=0,
                                      bytes_accessed=bytes_acc),
    )(se, so, blk["w1_t"], blk["s1"], blk["b1"],
      blk["w2_t"], blk["s2"], blk["b2"],
      blk["wr_t"], blk["sr"], blk["br"])


def block_group_forward(x_nchw, params):
    cp, out_feats = params["cp"], params["out_feats"]
    blocks = params["blocks"]
    x = jnp.transpose(x_nchw, (0, 2, 3, 1))              # NCHW -> NHWC
    N, H, W, C = x.shape
    cur_h, cur_w = H, W
    cur = None
    if blocks[0]["stride"] == 1:
        # channel-pad + flatten + bf16 ONCE; afterwards activations stay in this layout.
        assert W % 8 == 0
        cur = jnp.pad(x, ((0, 0), (0, 0), (0, 0), (0, cp - C)))
        cur = cur.reshape(N, H * W, cp).astype(jnp.bfloat16)
    for blk in blocks:
        if blk["stride"] > 1:
            cur = _residual_block_down(x, blk, cp)
            cur_h, cur_w = H // 2, W // 2
        else:
            cur = _residual_block_id(cur, blk, cp, cur_h, cur_w)
    out = cur.reshape(N, cur_h, cur_w, cp)[..., :out_feats].astype(jnp.float32)
    return jnp.transpose(out, (0, 3, 1, 2))              # NHWC -> NCHW


# ------------------------- pure-JAX reference (check) ------------------------


def _ref_conv(x, w, stride, padding):
    return jax.lax.conv_general_dilated(
        x, w, (stride, stride), [(padding, padding)] * 2,
        dimension_numbers=("NCHW", "OIHW", "NCHW"))


def _ref_bn(x, gamma, beta, mean, var, eps=EPS):
    return ((x - mean[None, :, None, None]) / jnp.sqrt(var[None, :, None, None] + eps)
            * gamma[None, :, None, None] + beta[None, :, None, None])


def ref_block_group(x, params):
    for blk in params["blocks"]:
        s = blk["stride"]
        left = _ref_conv(x, blk["w1"], s, 1)
        left = jnp.maximum(_ref_bn(left, *blk["bn1"]), 0.0)
        left = _ref_conv(left, blk["w2"], 1, 1)
        left = _ref_bn(left, *blk["bn2"])
        if s > 1:
            right = _ref_bn(_ref_conv(x, blk["wr"], s, 0), *blk["bnr"])
        else:
            right = x
        x = jnp.maximum(left + right, 0.0)
    return x


# ---------------------------------- main -------------------------------------


if __name__ == "__main__":
    key = jax.random.PRNGKey(0)
    x_key, p_key = jax.random.split(key)

    # BlockGroup(n_blocks=2, in_feats=4, out_feats=8, first_stride=2)
    x = jax.random.normal(x_key, (2, 4, 16, 16), jnp.float32)      # NCHW, like PyTorch
    params = init_block_group(p_key, n_blocks=2, in_feats=4, out_feats=8, first_stride=2)

    fwd = jax.jit(lambda xx: block_group_forward(xx, params))
    out = jax.block_until_ready(fwd(x))

    ref = ref_block_group(x, params)
    assert out.shape == (2, 8, 8, 8), out.shape
    max_err = float(jnp.max(jnp.abs(out - ref)))
    # bf16 weights/activations with f32 accumulation -> relaxed tolerance vs the f32 reference.
    assert jnp.allclose(out, ref, atol=5e-2, rtol=5e-2), max_err

    print("KERNEL_OK")
</pallas_src>

<mosaic_0001>
module attributes {stable_mosaic.version = 11 : i64} {
  func.func @_resblock_id_kernel(%arg0: i32, %arg1: memref<1x64x128xbf16, #tpu.memory_space<vmem>>, %arg2: memref<3x384x128xbf16, #tpu.memory_space<vmem>>, %arg3: memref<1x128xf32, #tpu.memory_space<vmem>>, %arg4: memref<1x128xf32, #tpu.memory_space<vmem>>, %arg5: memref<3x384x128xbf16, #tpu.memory_space<vmem>>, %arg6: memref<1x128xf32, #tpu.memory_space<vmem>>, %arg7: memref<1x128xf32, #tpu.memory_space<vmem>>, %arg8: memref<1x64x128xbf16, #tpu.memory_space<vmem>>, %arg9: memref<80x384xbf16, #tpu.memory_space<vmem>>) attributes {dimension_semantics = [#tpu.dimension_semantics<parallel>], iteration_bounds = array<i64: 2>, scalar_prefetch = 0 : i64, scratch_operands = 1 : i64, tpu.core_type = #tpu.core_type<tc>, window_params = [{transform_indices = @transform_0, window_bounds = array<i64: 1, 64, 128>}, {pipeline_mode = #tpu.pipeline_mode<synchronous>, transform_indices = @transform_1, window_bounds = array<i64: 3, 384, 128>}, {pipeline_mode = #tpu.pipeline_mode<synchronous>, transform_indices = @transform_2, window_bounds = array<i64: 1, 128>}, {pipeline_mode = #tpu.pipeline_mode<synchronous>, transform_indices = @transform_3, window_bounds = array<i64: 1, 128>}, {pipeline_mode = #tpu.pipeline_mode<synchronous>, transform_indices = @transform_4, window_bounds = array<i64: 3, 384, 128>}, {pipeline_mode = #tpu.pipeline_mode<synchronous>, transform_indices = @transform_5, window_bounds = array<i64: 1, 128>}, {pipeline_mode = #tpu.pipeline_mode<synchronous>, transform_indices = @transform_6, window_bounds = array<i64: 1, 128>}, {transform_indices = @transform_7, window_bounds = array<i64: 1, 64, 128>}]} {
    %c0 = arith.constant 0 : index
    %c0_0 = arith.constant 0 : index
    %c0_1 = arith.constant 0 : index
    %0 = vector.load %arg1[%c0, %c0_0, %c0_1] : memref<1x64x128xbf16, #tpu.memory_space<vmem>>, vector<1x64x128xbf16>
    %1 = vector.shape_cast %0 : vector<1x64x128xbf16> to vector<64x128xbf16>
    %2 = arith.extf %1 : vector<64x128xbf16> to vector<64x128xf32>
    %3 = tpu.iota {dimensions = array<i32: 0>} : vector<64x128xi32>
    %c8_i32 = arith.constant 8 : i32
    %c0_i32 = arith.constant 0 : i32
    %4 = arith.cmpi eq, %c8_i32, %c0_i32 : i32
    %c1_i32 = arith.constant 1 : i32
    %5 = arith.select %4, %c1_i32, %c8_i32 : i32
    %6 = vector.broadcast %5 : i32 to vector<64x128xi32>
    %7 = arith.remsi %3, %6 : vector<64x128xi32>
    %c0_i32_2 = arith.constant 0 : i32
    %8 = vector.broadcast %c0_i32_2 : i32 to vector<64x128xi32>
    %9 = arith.cmpi ne, %7, %8 : vector<64x128xi32>
    %c0_i32_3 = arith.constant 0 : i32
    %10 = vector.broadcast %c0_i32_3 : i32 to vector<64x128xi32>
    %11 = arith.cmpi slt, %7, %10 : vector<64x128xi32>
    %c0_i32_4 = arith.constant 0 : i32
    %12 = arith.cmpi slt, %5, %c0_i32_4 : i32
    %13 = vector.broadcast %12 : i1 to vector<64x128xi1>
    %14 = vector.broadcast %13 : vector<64x128xi1> to vector<64x128xi1>
    %15 = arith.xori %11, %14 : vector<64x128xi1>
    %16 = arith.andi %15, %9 : vector<64x128xi1>
    %17 = vector.broadcast %5 : i32 to vector<64x128xi32>
    %18 = arith.addi %7, %17 : vector<64x128xi32>
    %19 = arith.select %16, %18, %7 : vector<64x128xi1>, vector<64x128xi32>
    %c0_i32_5 = arith.constant 0 : i32
    %20 = vector.broadcast %c0_i32_5 : i32 to vector<64x128xi32>
    %21 = arith.cmpi sgt, %19, %20 : vector<64x128xi32>
    %c7_i32 = arith.constant 7 : i32
    %22 = vector.broadcast %c7_i32 : i32 to vector<64x128xi32>
    %23 = arith.cmpi slt, %19, %22 : vector<64x128xi32>
    %cst = arith.constant 0.000000e+00 : bf16
    %24 = vector.broadcast %cst : bf16 to vector<8x384xbf16>
    %c0_6 = arith.constant 0 : index
    %c0_7 = arith.constant 0 : index
    %25 = vector.load %arg9[%c0_6, %c0_7] : memref<80x384xbf16, #tpu.memory_space<vmem>>, vector<8x384xbf16>
    tpu.vector_store %arg9[%c0_6, %c0_7], %24 {strides = array<i32>} : memref<80x384xbf16, #tpu.memory_space<vmem>>, vector<8x384xbf16>,
    %c72 = arith.constant 72 : index
    %c0_8 = arith.constant 0 : index
    %26 = vector.load %arg9[%c72, %c0_8] : memref<80x384xbf16, #tpu.memory_space<vmem>>, vector<8x384xbf16>
    tpu.vector_store %arg9[%c72, %c0_8], %24 {strides = array<i32>} : memref<80x384xbf16, #tpu.memory_space<vmem>>, vector<8x384xbf16>,
    %27 = arith.truncf %2 : vector<64x128xf32> to vector<64x128xbf16>
    %c8 = arith.constant 8 : index
    %c128 = arith.constant 128 : index
    %28 = vector.load %arg9[%c8, %c128] : memref<80x384xbf16, #tpu.memory_space<vmem>>, vector<64x128xbf16>
    tpu.vector_store %arg9[%c8, %c128], %27 {strides = array<i32>} : memref<80x384xbf16, #tpu.memory_space<vmem>>, vector<64x128xbf16>,
    %c1_i32_9 = arith.constant 1 : i32
    %29 = tpu.dynamic_rotate %2 by %c1_i32_9 dim 0 : vector<64x128xf32>, i32 -> vector<64x128xf32>
    %cst_10 = arith.constant 0.000000e+00 : f32
    %30 = vector.broadcast %cst_10 : f32 to vector<64x128xf32>
    %31 = arith.select %21, %29, %30 : vector<64x128xi1>, vector<64x128xf32>
    %32 = arith.truncf %31 : vector<64x128xf32> to vector<64x128xbf16>
    %c8_11 = arith.constant 8 : index
    %c0_12 = arith.constant 0 : index
    %33 = vector.load %arg9[%c8_11, %c0_12] : memref<80x384xbf16, #tpu.memory_space<vmem>>, vector<64x128xbf16>
    tpu.vector_store %arg9[%c8_11, %c0_12], %32 {strides = array<i32>} : memref<80x384xbf16, #tpu.memory_space<vmem>>, vector<64x128xbf16>,
    %c63_i32 = arith.constant 63 : i32
    %34 = tpu.dynamic_rotate %2 by %c63_i32 dim 0 : vector<64x128xf32>, i32 -> vector<64x128xf32>
    %cst_13 = arith.constant 0.000000e+00 : f32
    %35 = vector.broadcast %cst_13 : f32 to vector<64x128xf32>
    %36 = arith.select %23, %34, %35 : vector<64x128xi1>, vector<64x128xf32>
    %37 = arith.truncf %36 : vector<64x128xf32> to vector<64x128xbf16>
    %c8_14 = arith.constant 8 : index
    %c256 = arith.constant 256 : index
    %38 = vector.load %arg9[%c8_14, %c256] : memref<80x384xbf16, #tpu.memory_space<vmem>>, vector<64x128xbf16>
    tpu.vector_store %arg9[%c8_14, %c256], %37 {strides = array<i32>} : memref<80x384xbf16, #tpu.memory_space<vmem>>, vector<64x128xbf16>,
    %c0_15 = arith.constant 0 : index
    %c0_16 = arith.constant 0 : index
    %39 = vector.load %arg9[%c0_15, %c0_16] : memref<80x384xbf16, #tpu.memory_space<vmem>>, vector<64x384xbf16>
    %c0_17 = arith.constant 0 : index
    %c0_18 = arith.constant 0 : index
    %c0_19 = arith.constant 0 : index
    %40 = vector.load %arg2[%c0_17, %c0_18, %c0_19] : memref<3x384x128xbf16, #tpu.memory_space<vmem>>, vector<1x384x128xbf16>
    %41 = vector.shape_cast %40 : vector<1x384x128xbf16> to vector<384x128xbf16>
    %cst_20 = arith.constant dense<0.000000e+00> : vector<64x128xf32>
    %42 = tpu.matmul %39, %41, %cst_20 {dimension_numbers = #tpu.dot_dimension_numbers<[1], [0], [0], [1], [0, 0, 1, 1], [], []>} : vector<64x384xbf16>, vector<384x128xbf16>, vector<64x128xf32> -> vector<64x128xf32>
    %c8_21 = arith.constant 8 : index
    %c0_22 = arith.constant 0 : index
    %43 = vector.load %arg9[%c8_21, %c0_22] : memref<80x384xbf16, #tpu.memory_space<vmem>>, vector<64x384xbf16>
    %c1 = arith.constant 1 : index
    %c0_23 = arith.constant 0 : index
    %c0_24 = arith.constant 0 : index
    %44 = vector.load %arg2[%c1, %c0_23, %c0_24] : memref<3x384x128xbf16, #tpu.memory_space<vmem>>, vector<1x384x128xbf16>
    %45 = vector.shape_cast %44 : vector<1x384x128xbf16> to vector<384x128xbf16>
    %cst_25 = arith.constant dense<0.000000e+00> : vector<64x128xf32>
    %46 = tpu.matmul %43, %45, %cst_25 {dimension_numbers = #tpu.dot_dimension_numbers<[1], [0], [0], [1], [0, 0, 1, 1], [], []>} : vector<64x384xbf16>, vector<384x128xbf16>, vector<64x128xf32> -> vector<64x128xf32>
    %47 = arith.addf %42, %46 : vector<64x128xf32>
    %c16 = arith.constant 16 : index
    %c0_26 = arith.constant 0 : index
    %48 = vector.load %arg9[%c16, %c0_26] : memref<80x384xbf16, #tpu.memory_space<vmem>>, vector<64x384xbf16>
    %c2 = arith.constant 2 : index
    %c0_27 = arith.constant 0 : index
    %c0_28 = arith.constant 0 : index
    %49 = vector.load %arg2[%c2, %c0_27, %c0_28] : memref<3x384x128xbf16, #tpu.memory_space<vmem>>, vector<1x384x128xbf16>
    %50 = vector.shape_cast %49 : vector<1x384x128xbf16> to vector<384x128xbf16>
    %cst_29 = arith.constant dense<0.000000e+00> : vector<64x128xf32>
    %51 = tpu.matmul %48, %50, %cst_29 {dimension_numbers = #tpu.dot_dimension_numbers<[1], [0], [0], [1], [0, 0, 1, 1], [], []>} : vector<64x384xbf16>, vector<384x128xbf16>, vector<64x128xf32> -> vector<64x128xf32>
    %52 = arith.addf %47, %51 : vector<64x128xf32>
    %c0_30 = arith.constant 0 : index
    %c0_31 = arith.constant 0 : index
    %53 = vector.load %arg3[%c0_30, %c0_31] : memref<1x128xf32, #tpu.memory_space<vmem>>, vector<1x128xf32>
    %54 = vector.broadcast %53 : vector<1x128xf32> to vector<64x128xf32>
    %55 = arith.mulf %52, %54 : vector<64x128xf32>
    %c0_32 = arith.constant 0 : index
    %c0_33 = arith.constant 0 : index
    %56 = vector.load %arg4[%c0_32, %c0_33] : memref<1x128xf32, #tpu.memory_space<vmem>>, vector<1x128xf32>
    %57 = vector.broadcast %56 : vector<1x128xf32> to vector<64x128xf32>
    %58 = arith.addf %55, %57 : vector<64x128xf32>
    %cst_34 = arith.constant 0.000000e+00 : f32
    %59 = vector.broadcast %cst_34 : f32 to vector<64x128xf32>
    %60 = arith.maximumf %58, %59 : vector<64x128xf32>
    %cst_35 = arith.constant 0.000000e+00 : bf16
    %61 = vector.broadcast %cst_35 : bf16 to vector<8x384xbf16>
    %c0_36 = arith.constant 0 : index
    %c0_37 = arith.constant 0 : index
    %62 = vector.load %arg9[%c0_36, %c0_37] : memref<80x384xbf16, #tpu.memory_space<vmem>>, vector<8x384xbf16>
    tpu.vector_store %arg9[%c0_36, %c0_37], %61 {strides = array<i32>} : memref<80x384xbf16, #tpu.memory_space<vmem>>, vector<8x384xbf16>,
    %c72_38 = arith.constant 72 : index
    %c0_39 = arith.constant 0 : index
    %63 = vector.load %arg9[%c72_38, %c0_39] : memref<80x384xbf16, #tpu.memory_space<vmem>>, vector<8x384xbf16>
    tpu.vector_store %arg9[%c72_38, %c0_39], %61 {strides = array<i32>} : memref<80x384xbf16, #tpu.memory_space<vmem>>, vector<8x384xbf16>,
    %64 = arith.truncf %60 : vector<64x128xf32> to vector<64x128xbf16>
    %c8_40 = arith.constant 8 : index
    %c128_41 = arith.constant 128 : index
    %65 = vector.load %arg9[%c8_40, %c128_41] : memref<80x384xbf16, #tpu.memory_space<vmem>>, vector<64x128xbf16>
    tpu.vector_store %arg9[%c8_40, %c128_41], %64 {strides = array<i32>} : memref<80x384xbf16, #tpu.memory_space<vmem>>, vector<64x128xbf16>,
    %c1_i32_42 = arith.constant 1 : i32
    %66 = tpu.dynamic_rotate %60 by %c1_i32_42 dim 0 : vector<64x128xf32>, i32 -> vector<64x128xf32>
    %cst_43 = arith.constant 0.000000e+00 : f32
    %67 = vector.broadcast %cst_43 : f32 to vector<64x128xf32>
    %68 = arith.select %21, %66, %67 : vector<64x128xi1>, vector<64x128xf32>
    %69 = arith.truncf %68 : vector<64x128xf32> to vector<64x128xbf16>
    %c8_44 = arith.constant 8 : index
    %c0_45 = arith.constant 0 : index
    %70 = vector.load %arg9[%c8_44, %c0_45] : memref<80x384xbf16, #tpu.memory_space<vmem>>, vector<64x128xbf16>
    tpu.vector_store %arg9[%c8_44, %c0_45], %69 {strides = array<i32>} : memref<80x384xbf16, #tpu.memory_space<vmem>>, vector<64x128xbf16>,
    %c63_i32_46 = arith.constant 63 : i32
    %71 = tpu.dynamic_rotate %60 by %c63_i32_46 dim 0 : vector<64x128xf32>, i32 -> vector<64x128xf32>
    %cst_47 = arith.constant 0.000000e+00 : f32
    %72 = vector.broadcast %cst_47 : f32 to vector<64x128xf32>
    %73 = arith.select %23, %71, %72 : vector<64x128xi1>, vector<64x128xf32>
    %74 = arith.truncf %73 : vector<64x128xf32> to vector<64x128xbf16>
    %c8_48 = arith.constant 8 : index
    %c256_49 = arith.constant 256 : index
    %75 = vector.load %arg9[%c8_48, %c256_49] : memref<80x384xbf16, #tpu.memory_space<vmem>>, vector<64x128xbf16>
    tpu.vector_store %arg9[%c8_48, %c256_49], %74 {strides = array<i32>} : memref<80x384xbf16, #tpu.memory_space<vmem>>, vector<64x128xbf16>,
    %c0_50 = arith.constant 0 : index
    %c0_51 = arith.constant 0 : index
    %76 = vector.load %arg9[%c0_50, %c0_51] : memref<80x384xbf16, #tpu.memory_space<vmem>>, vector<64x384xbf16>
    %c0_52 = arith.constant 0 : index
    %c0_53 = arith.constant 0 : index
    %c0_54 = arith.constant 0 : index
    %77 = vector.load %arg5[%c0_52, %c0_53, %c0_54] : memref<3x384x128xbf16, #tpu.memory_space<vmem>>, vector<1x384x128xbf16>
    %78 = vector.shape_cast %77 : vector<1x384x128xbf16> to vector<384x128xbf16>
    %cst_55 = arith.constant dense<0.000000e+00> : vector<64x128xf32>
    %79 = tpu.matmul %76, %78, %cst_55 {dimension_numbers = #tpu.dot_dimension_numbers<[1], [0], [0], [1], [0, 0, 1, 1], [], []>} : vector<64x384xbf16>, vector<384x128xbf16>, vector<64x128xf32> -> vector<64x128xf32>
    %c8_56 = arith.constant 8 : index
    %c0_57 = arith.constant 0 : index
    %80 = vector.load %arg9[%c8_56, %c0_57] : memref<80x384xbf16, #tpu.memory_space<vmem>>, vector<64x384xbf16>
    %c1_58 = arith.constant 1 : index
    %c0_59 = arith.constant 0 : index
    %c0_60 = arith.constant 0 : index
    %81 = vector.load %arg5[%c1_58, %c0_59, %c0_60] : memref<3x384x128xbf16, #tpu.memory_space<vmem>>, vector<1x384x128xbf16>
    %82 = vector.shape_cast %81 : vector<1x384x128xbf16> to vector<384x128xbf16>
    %cst_61 = arith.constant dense<0.000000e+00> : vector<64x128xf32>
    %83 = tpu.matmul %80, %82, %cst_61 {dimension_numbers = #tpu.dot_dimension_numbers<[1], [0], [0], [1], [0, 0, 1, 1], [], []>} : vector<64x384xbf16>, vector<384x128xbf16>, vector<64x128xf32> -> vector<64x128xf32>
    %84 = arith.addf %79, %83 : vector<64x128xf32>
    %c16_62 = arith.constant 16 : index
    %c0_63 = arith.constant 0 : index
    %85 = vector.load %arg9[%c16_62, %c0_63] : memref<80x384xbf16, #tpu.memory_space<vmem>>, vector<64x384xbf16>
    %c2_64 = arith.constant 2 : index
    %c0_65 = arith.constant 0 : index
    %c0_66 = arith.constant 0 : index
    %86 = vector.load %arg5[%c2_64, %c0_65, %c0_66] : memref<3x384x128xbf16, #tpu.memory_space<vmem>>, vector<1x384x128xbf16>
    %87 = vector.shape_cast %86 : vector<1x384x128xbf16> to vector<384x128xbf16>
    %cst_67 = arith.constant dense<0.000000e+00> : vector<64x128xf32>
    %88 = tpu.matmul %85, %87, %cst_67 {dimension_numbers = #tpu.dot_dimension_numbers<[1], [0], [0], [1], [0, 0, 1, 1], [], []>} : vector<64x384xbf16>, vector<384x128xbf16>, vector<64x128xf32> -> vector<64x128xf32>
    %89 = arith.addf %84, %88 : vector<64x128xf32>
    %c0_68 = arith.constant 0 : index
    %c0_69 = arith.constant 0 : index
    %90 = vector.load %arg6[%c0_68, %c0_69] : memref<1x128xf32, #tpu.memory_space<vmem>>, vector<1x128xf32>
    %91 = vector.broadcast %90 : vector<1x128xf32> to vector<64x128xf32>
    %92 = arith.mulf %89, %91 : vector<64x128xf32>
    %c0_70 = arith.constant 0 : index
    %c0_71 = arith.constant 0 : index
    %93 = vector.load %arg7[%c0_70, %c0_71] : memref<1x128xf32, #tpu.memory_space<vmem>>, vector<1x128xf32>
    %94 = vector.broadcast %93 : vector<1x128xf32> to vector<64x128xf32>
    %95 = arith.addf %92, %94 : vector<64x128xf32>
    %96 = arith.addf %95, %2 : vector<64x128xf32>
    %cst_72 = arith.constant 0.000000e+00 : f32
    %97 = vector.broadcast %cst_72 : f32 to vector<64x128xf32>
    %98 = arith.maximumf %96, %97 : vector<64x128xf32>
    %99 = arith.truncf %98 : vector<64x128xf32> to vector<64x128xbf16>
    %c0_73 = arith.constant 0 : index
    %c0_74 = arith.constant 0 : index
    %c0_75 = arith.constant 0 : index
    %100 = vector.load %arg8[%c0_73, %c0_74, %c0_75] : memref<1x64x128xbf16, #tpu.memory_space<vmem>>, vector<1x64x128xbf16>
    %101 = vector.shape_cast %100 : vector<1x64x128xbf16> to vector<64x128xbf16>
    %102 = vector.shape_cast %99 : vector<64x128xbf16> to vector<1x64x128xbf16>
    tpu.vector_store %arg8[%c0_73, %c0_74, %c0_75], %102 {strides = array<i32>} : memref<1x64x128xbf16, #tpu.memory_space<vmem>>, vector<1x64x128xbf16>,
    return
  }
  func.func @transform_0(%arg0: i32) -> (i32, i32, i32) {
    %c0_i32 = arith.constant 0 : i32
    %c0_i32_0 = arith.constant 0 : i32
    %c0_i32_1 = arith.constant 0 : i32
    return %arg0, %c0_i32, %c0_i32_0 : i32, i32, i32
  }
  func.func @transform_1(%arg0: i32) -> (i32, i32, i32) {
    %c0_i32 = arith.constant 0 : i32
    %c0_i32_0 = arith.constant 0 : i32
    %c0_i32_1 = arith.constant 0 : i32
    %c0_i32_2 = arith.constant 0 : i32
    return %c0_i32, %c0_i32_0, %c0_i32_1 : i32, i32, i32
  }
  func.func @transform_2(%arg0: i32) -> (i32, i32) {
    %c0_i32 = arith.constant 0 : i32
    %c0_i32_0 = arith.constant 0 : i32
    %c0_i32_1 = arith.constant 0 : i32
    return %c0_i32, %c0_i32_0 : i32, i32
  }
  func.func @transform_3(%arg0: i32) -> (i32, i32) {
    %c0_i32 = arith.constant 0 : i32
    %c0_i32_0 = arith.constant 0 : i32
    %c0_i32_1 = arith.constant 0 : i32
    return %c0_i32, %c0_i32_0 : i32, i32
  }
  func.func @transform_4(%arg0: i32) -> (i32, i32, i32) {
    %c0_i32 = arith.constant 0 : i32
    %c0_i32_0 = arith.constant 0 : i32
    %c0_i32_1 = arith.constant 0 : i32
    %c0_i32_2 = arith.constant 0 : i32
    return %c0_i32, %c0_i32_0, %c0_i32_1 : i32, i32, i32
  }
  func.func @transform_5(%arg0: i32) -> (i32, i32) {
    %c0_i32 = arith.constant 0 : i32
    %c0_i32_0 = arith.constant 0 : i32
    %c0_i32_1 = arith.constant 0 : i32
    return %c0_i32, %c0_i32_0 : i32, i32
  }
  func.func @transform_6(%arg0: i32) -> (i32, i32) {
    %c0_i32 = arith.constant 0 : i32
    %c0_i32_0 = arith.constant 0 : i32
    %c0_i32_1 = arith.constant 0 : i32
    return %c0_i32, %c0_i32_0 : i32, i32
  }
  func.func @transform_7(%arg0: i32) -> (i32, i32, i32) {
    %c0_i32 = arith.constant 0 : i32
    %c0_i32_0 = arith.constant 0 : i32
    %c0_i32_1 = arith.constant 0 : i32
    return %arg0, %c0_i32, %c0_i32_0 : i32, i32, i32
  }
}

module attributes {stable_mosaic.version = 11 : i64} {
  func.func @_resblock_down_kernel(%arg0: i32, %arg1: memref<1x72x12xbf16, #tpu.memory_space<vmem>>, %arg2: memref<1x72x12xbf16, #tpu.memory_space<vmem>>, %arg3: memref<3x12x128xbf16, #tpu.memory_space<vmem>>, %arg4: memref<1x128xf32, #tpu.memory_space<vmem>>, %arg5: memref<1x128xf32, #tpu.memory_space<vmem>>, %arg6: memref<3x384x128xbf16, #tpu.memory_space<vmem>>, %arg7: memref<1x128xf32, #tpu.memory_space<vmem>>, %arg8: memref<1x128xf32, #tpu.memory_space<vmem>>, %arg9: memref<12x128xbf16, #tpu.memory_space<vmem>>, %arg10: memref<1x128xf32, #tpu.memory_space<vmem>>, %arg11: memref<1x128xf32, #tpu.memory_space<vmem>>, %arg12: memref<1x64x128xbf16, #tpu.memory_space<vmem>>, %arg13: memref<80x384xbf16, #tpu.memory_space<vmem>>) attributes {dimension_semantics = [#tpu.dimension_semantics<parallel>], iteration_bounds = array<i64: 2>, scalar_prefetch = 0 : i64, scratch_operands = 1 : i64, tpu.core_type = #tpu.core_type<tc>, window_params = [{transform_indices = @transform_0, window_bounds = array<i64: 1, 72, 12>}, {transform_indices = @transform_1, window_bounds = array<i64: 1, 72, 12>}, {pipeline_mode = #tpu.pipeline_mode<synchronous>, transform_indices = @transform_2, window_bounds = array<i64: 3, 12, 128>}, {pipeline_mode = #tpu.pipeline_mode<synchronous>, transform_indices = @transform_3, window_bounds = array<i64: 1, 128>}, {pipeline_mode = #tpu.pipeline_mode<synchronous>, transform_indices = @transform_4, window_bounds = array<i64: 1, 128>}, {pipeline_mode = #tpu.pipeline_mode<synchronous>, transform_indices = @transform_5, window_bounds = array<i64: 3, 384, 128>}, {pipeline_mode = #tpu.pipeline_mode<synchronous>, transform_indices = @transform_6, window_bounds = array<i64: 1, 128>}, {pipeline_mode = #tpu.pipeline_mode<synchronous>, transform_indices = @transform_7, window_bounds = array<i64: 1, 128>}, {pipeline_mode = #tpu.pipeline_mode<synchronous>, transform_indices = @transform_8, window_bounds = array<i64: 12, 128>}, {pipeline_mode = #tpu.pipeline_mode<synchronous>, transform_indices = @transform_9, window_bounds = array<i64: 1, 128>}, {pipeline_mode = #tpu.pipeline_mode<synchronous>, transform_indices = @transform_10, window_bounds = array<i64: 1, 128>}, {transform_indices = @transform_11, window_bounds = array<i64: 1, 64, 128>}]} {
    %c0 = arith.constant 0 : index
    %c0_0 = arith.constant 0 : index
    %c0_1 = arith.constant 0 : index
    %0 = vector.load %arg2[%c0, %c0_0, %c0_1] : memref<1x72x12xbf16, #tpu.memory_space<vmem>>, vector<1x64x12xbf16>
    %1 = vector.shape_cast %0 : vector<1x64x12xbf16> to vector<64x12xbf16>
    %c0_2 = arith.constant 0 : index
    %c0_3 = arith.constant 0 : index
    %c0_4 = arith.constant 0 : index
    %2 = vector.load %arg1[%c0_2, %c0_3, %c0_4] : memref<1x72x12xbf16, #tpu.memory_space<vmem>>, vector<1x64x12xbf16>
    %3 = vector.shape_cast %2 : vector<1x64x12xbf16> to vector<64x12xbf16>
    %c0_5 = arith.constant 0 : index
    %c0_6 = arith.constant 0 : index
    %c0_7 = arith.constant 0 : index
    %4 = vector.load %arg3[%c0_5, %c0_6, %c0_7] : memref<3x12x128xbf16, #tpu.memory_space<vmem>>, vector<1x12x128xbf16>
    %5 = vector.shape_cast %4 : vector<1x12x128xbf16> to vector<12x128xbf16>
    %cst = arith.constant dense<0.000000e+00> : vector<64x128xf32>
    %6 = tpu.matmul %3, %5, %cst {dimension_numbers = #tpu.dot_dimension_numbers<[1], [0], [0], [1], [0, 0, 1, 1], [], []>} : vector<64x12xbf16>, vector<12x128xbf16>, vector<64x128xf32> -> vector<64x128xf32>
    %c1 = arith.constant 1 : index
    %c0_8 = arith.constant 0 : index
    %c0_9 = arith.constant 0 : index
    %7 = vector.load %arg3[%c1, %c0_8, %c0_9] : memref<3x12x128xbf16, #tpu.memory_space<vmem>>, vector<1x12x128xbf16>
    %8 = vector.shape_cast %7 : vector<1x12x128xbf16> to vector<12x128xbf16>
    %cst_10 = arith.constant dense<0.000000e+00> : vector<64x128xf32>
    %9 = tpu.matmul %1, %8, %cst_10 {dimension_numbers = #tpu.dot_dimension_numbers<[1], [0], [0], [1], [0, 0, 1, 1], [], []>} : vector<64x12xbf16>, vector<12x128xbf16>, vector<64x128xf32> -> vector<64x128xf32>
    %10 = arith.addf %6, %9 : vector<64x128xf32>
    %c0_11 = arith.constant 0 : index
    %c8 = arith.constant 8 : index
    %c0_12 = arith.constant 0 : index
    %11 = vector.load %arg1[%c0_11, %c8, %c0_12] : memref<1x72x12xbf16, #tpu.memory_space<vmem>>, vector<1x64x12xbf16>
    %12 = vector.shape_cast %11 : vector<1x64x12xbf16> to vector<64x12xbf16>
    %c2 = arith.constant 2 : index
    %c0_13 = arith.constant 0 : index
    %c0_14 = arith.constant 0 : index
    %13 = vector.load %arg3[%c2, %c0_13, %c0_14] : memref<3x12x128xbf16, #tpu.memory_space<vmem>>, vector<1x12x128xbf16>
    %14 = vector.shape_cast %13 : vector<1x12x128xbf16> to vector<12x128xbf16>
    %cst_15 = arith.constant dense<0.000000e+00> : vector<64x128xf32>
    %15 = tpu.matmul %12, %14, %cst_15 {dimension_numbers = #tpu.dot_dimension_numbers<[1], [0], [0], [1], [0, 0, 1, 1], [], []>} : vector<64x12xbf16>, vector<12x128xbf16>, vector<64x128xf32> -> vector<64x128xf32>
    %16 = arith.addf %10, %15 : vector<64x128xf32>
    %c0_16 = arith.constant 0 : index
    %c0_17 = arith.constant 0 : index
    %17 = vector.load %arg4[%c0_16, %c0_17] : memref<1x128xf32, #tpu.memory_space<vmem>>, vector<1x128xf32>
    %18 = vector.broadcast %17 : vector<1x128xf32> to vector<64x128xf32>
    %19 = arith.mulf %16, %18 : vector<64x128xf32>
    %c0_18 = arith.constant 0 : index
    %c0_19 = arith.constant 0 : index
    %20 = vector.load %arg5[%c0_18, %c0_19] : memref<1x128xf32, #tpu.memory_space<vmem>>, vector<1x128xf32>
    %21 = vector.broadcast %20 : vector<1x128xf32> to vector<64x128xf32>
    %22 = arith.addf %19, %21 : vector<64x128xf32>
    %cst_20 = arith.constant 0.000000e+00 : f32
    %23 = vector.broadcast %cst_20 : f32 to vector<64x128xf32>
    %24 = arith.maximumf %22, %23 : vector<64x128xf32>
    %25 = tpu.iota {dimensions = array<i32: 0>} : vector<64x128xi32>
    %c8_i32 = arith.constant 8 : i32
    %c0_i32 = arith.constant 0 : i32
    %26 = arith.cmpi eq, %c8_i32, %c0_i32 : i32
    %c1_i32 = arith.constant 1 : i32
    %27 = arith.select %26, %c1_i32, %c8_i32 : i32
    %28 = vector.broadcast %27 : i32 to vector<64x128xi32>
    %29 = arith.remsi %25, %28 : vector<64x128xi32>
    %c0_i32_21 = arith.constant 0 : i32
    %30 = vector.broadcast %c0_i32_21 : i32 to vector<64x128xi32>
    %31 = arith.cmpi ne, %29, %30 : vector<64x128xi32>
    %c0_i32_22 = arith.constant 0 : i32
    %32 = vector.broadcast %c0_i32_22 : i32 to vector<64x128xi32>
    %33 = arith.cmpi slt, %29, %32 : vector<64x128xi32>
    %c0_i32_23 = arith.constant 0 : i32
    %34 = arith.cmpi slt, %27, %c0_i32_23 : i32
    %35 = vector.broadcast %34 : i1 to vector<64x128xi1>
    %36 = vector.broadcast %35 : vector<64x128xi1> to vector<64x128xi1>
    %37 = arith.xori %33, %36 : vector<64x128xi1>
    %38 = arith.andi %37, %31 : vector<64x128xi1>
    %39 = vector.broadcast %27 : i32 to vector<64x128xi32>
    %40 = arith.addi %29, %39 : vector<64x128xi32>
    %41 = arith.select %38, %40, %29 : vector<64x128xi1>, vector<64x128xi32>
    %c0_i32_24 = arith.constant 0 : i32
    %42 = vector.broadcast %c0_i32_24 : i32 to vector<64x128xi32>
    %43 = arith.cmpi sgt, %41, %42 : vector<64x128xi32>
    %c7_i32 = arith.constant 7 : i32
    %44 = vector.broadcast %c7_i32 : i32 to vector<64x128xi32>
    %45 = arith.cmpi slt, %41, %44 : vector<64x128xi32>
    %cst_25 = arith.constant 0.000000e+00 : bf16
    %46 = vector.broadcast %cst_25 : bf16 to vector<8x384xbf16>
    %c0_26 = arith.constant 0 : index
    %c0_27 = arith.constant 0 : index
    %47 = vector.load %arg13[%c0_26, %c0_27] : memref<80x384xbf16, #tpu.memory_space<vmem>>, vector<8x384xbf16>
    tpu.vector_store %arg13[%c0_26, %c0_27], %46 {strides = array<i32>} : memref<80x384xbf16, #tpu.memory_space<vmem>>, vector<8x384xbf16>,
    %c72 = arith.constant 72 : index
    %c0_28 = arith.constant 0 : index
    %48 = vector.load %arg13[%c72, %c0_28] : memref<80x384xbf16, #tpu.memory_space<vmem>>, vector<8x384xbf16>
    tpu.vector_store %arg13[%c72, %c0_28], %46 {strides = array<i32>} : memref<80x384xbf16, #tpu.memory_space<vmem>>, vector<8x384xbf16>,
    %49 = arith.truncf %24 : vector<64x128xf32> to vector<64x128xbf16>
    %c8_29 = arith.constant 8 : index
    %c128 = arith.constant 128 : index
    %50 = vector.load %arg13[%c8_29, %c128] : memref<80x384xbf16, #tpu.memory_space<vmem>>, vector<64x128xbf16>
    tpu.vector_store %arg13[%c8_29, %c128], %49 {strides = array<i32>} : memref<80x384xbf16, #tpu.memory_space<vmem>>, vector<64x128xbf16>,
    %c1_i32_30 = arith.constant 1 : i32
    %51 = tpu.dynamic_rotate %24 by %c1_i32_30 dim 0 : vector<64x128xf32>, i32 -> vector<64x128xf32>
    %cst_31 = arith.constant 0.000000e+00 : f32
    %52 = vector.broadcast %cst_31 : f32 to vector<64x128xf32>
    %53 = arith.select %43, %51, %52 : vector<64x128xi1>, vector<64x128xf32>
    %54 = arith.truncf %53 : vector<64x128xf32> to vector<64x128xbf16>
    %c8_32 = arith.constant 8 : index
    %c0_33 = arith.constant 0 : index
    %55 = vector.load %arg13[%c8_32, %c0_33] : memref<80x384xbf16, #tpu.memory_space<vmem>>, vector<64x128xbf16>
    tpu.vector_store %arg13[%c8_32, %c0_33], %54 {strides = array<i32>} : memref<80x384xbf16, #tpu.memory_space<vmem>>, vector<64x128xbf16>,
    %c63_i32 = arith.constant 63 : i32
    %56 = tpu.dynamic_rotate %24 by %c63_i32 dim 0 : vector<64x128xf32>, i32 -> vector<64x128xf32>
    %cst_34 = arith.constant 0.000000e+00 : f32
    %57 = vector.broadcast %cst_34 : f32 to vector<64x128xf32>
    %58 = arith.select %45, %56, %57 : vector<64x128xi1>, vector<64x128xf32>
    %59 = arith.truncf %58 : vector<64x128xf32> to vector<64x128xbf16>
    %c8_35 = arith.constant 8 : index
    %c256 = arith.constant 256 : index
    %60 = vector.load %arg13[%c8_35, %c256] : memref<80x384xbf16, #tpu.memory_space<vmem>>, vector<64x128xbf16>
    tpu.vector_store %arg13[%c8_35, %c256], %59 {strides = array<i32>} : memref<80x384xbf16, #tpu.memory_space<vmem>>, vector<64x128xbf16>,
    %c0_36 = arith.constant 0 : index
    %c0_37 = arith.constant 0 : index
    %61 = vector.load %arg13[%c0_36, %c0_37] : memref<80x384xbf16, #tpu.memory_space<vmem>>, vector<64x384xbf16>
    %c0_38 = arith.constant 0 : index
    %c0_39 = arith.constant 0 : index
    %c0_40 = arith.constant 0 : index
    %62 = vector.load %arg6[%c0_38, %c0_39, %c0_40] : memref<3x384x128xbf16, #tpu.memory_space<vmem>>, vector<1x384x128xbf16>
    %63 = vector.shape_cast %62 : vector<1x384x128xbf16> to vector<384x128xbf16>
    %cst_41 = arith.constant dense<0.000000e+00> : vector<64x128xf32>
    %64 = tpu.matmul %61, %63, %cst_41 {dimension_numbers = #tpu.dot_dimension_numbers<[1], [0], [0], [1], [0, 0, 1, 1], [], []>} : vector<64x384xbf16>, vector<384x128xbf16>, vector<64x128xf32> -> vector<64x128xf32>
    %c8_42 = arith.constant 8 : index
    %c0_43 = arith.constant 0 : index
    %65 = vector.load %arg13[%c8_42, %c0_43] : memref<80x384xbf16, #tpu.memory_space<vmem>>, vector<64x384xbf16>
    %c1_44 = arith.constant 1 : index
    %c0_45 = arith.constant 0 : index
    %c0_46 = arith.constant 0 : index
    %66 = vector.load %arg6[%c1_44, %c0_45, %c0_46] : memref<3x384x128xbf16, #tpu.memory_space<vmem>>, vector<1x384x128xbf16>
    %67 = vector.shape_cast %66 : vector<1x384x128xbf16> to vector<384x128xbf16>
    %cst_47 = arith.constant dense<0.000000e+00> : vector<64x128xf32>
    %68 = tpu.matmul %65, %67, %cst_47 {dimension_numbers = #tpu.dot_dimension_numbers<[1], [0], [0], [1], [0, 0, 1, 1], [], []>} : vector<64x384xbf16>, vector<384x128xbf16>, vector<64x128xf32> -> vector<64x128xf32>
    %69 = arith.addf %64, %68 : vector<64x128xf32>
    %c16 = arith.constant 16 : index
    %c0_48 = arith.constant 0 : index
    %70 = vector.load %arg13[%c16, %c0_48] : memref<80x384xbf16, #tpu.memory_space<vmem>>, vector<64x384xbf16>
    %c2_49 = arith.constant 2 : index
    %c0_50 = arith.constant 0 : index
    %c0_51 = arith.constant 0 : index
    %71 = vector.load %arg6[%c2_49, %c0_50, %c0_51] : memref<3x384x128xbf16, #tpu.memory_space<vmem>>, vector<1x384x128xbf16>
    %72 = vector.shape_cast %71 : vector<1x384x128xbf16> to vector<384x128xbf16>
    %cst_52 = arith.constant dense<0.000000e+00> : vector<64x128xf32>
    %73 = tpu.matmul %70, %72, %cst_52 {dimension_numbers = #tpu.dot_dimension_numbers<[1], [0], [0], [1], [0, 0, 1, 1], [], []>} : vector<64x384xbf16>, vector<384x128xbf16>, vector<64x128xf32> -> vector<64x128xf32>
    %74 = arith.addf %69, %73 : vector<64x128xf32>
    %c0_53 = arith.constant 0 : index
    %c0_54 = arith.constant 0 : index
    %75 = vector.load %arg7[%c0_53, %c0_54] : memref<1x128xf32, #tpu.memory_space<vmem>>, vector<1x128xf32>
    %76 = vector.broadcast %75 : vector<1x128xf32> to vector<64x128xf32>
    %77 = arith.mulf %74, %76 : vector<64x128xf32>
    %c0_55 = arith.constant 0 : index
    %c0_56 = arith.constant 0 : index
    %78 = vector.load %arg8[%c0_55, %c0_56] : memref<1x128xf32, #tpu.memory_space<vmem>>, vector<1x128xf32>
    %79 = vector.broadcast %78 : vector<1x128xf32> to vector<64x128xf32>
    %80 = arith.addf %77, %79 : vector<64x128xf32>
    %c0_57 = arith.constant 0 : index
    %c0_58 = arith.constant 0 : index
    %81 = vector.load %arg9[%c0_57, %c0_58] : memref<12x128xbf16, #tpu.memory_space<vmem>>, vector<12x128xbf16>
    %cst_59 = arith.constant dense<0.000000e+00> : vector<64x128xf32>
    %82 = tpu.matmul %1, %81, %cst_59 {dimension_numbers = #tpu.dot_dimension_numbers<[1], [0], [0], [1], [0, 0, 1, 1], [], []>} : vector<64x12xbf16>, vector<12x128xbf16>, vector<64x128xf32> -> vector<64x128xf32>
    %c0_60 = arith.constant 0 : index
    %c0_61 = arith.constant 0 : index
    %83 = vector.load %arg10[%c0_60, %c0_61] : memref<1x128xf32, #tpu.memory_space<vmem>>, vector<1x128xf32>
    %84 = vector.broadcast %83 : vector<1x128xf32> to vector<64x128xf32>
    %85 = arith.mulf %82, %84 : vector<64x128xf32>
    %c0_62 = arith.constant 0 : index
    %c0_63 = arith.constant 0 : index
    %86 = vector.load %arg11[%c0_62, %c0_63] : memref<1x128xf32, #tpu.memory_space<vmem>>, vector<1x128xf32>
    %87 = vector.broadcast %86 : vector<1x128xf32> to vector<64x128xf32>
    %88 = arith.addf %85, %87 : vector<64x128xf32>
    %89 = arith.addf %80, %88 : vector<64x128xf32>
    %cst_64 = arith.constant 0.000000e+00 : f32
    %90 = vector.broadcast %cst_64 : f32 to vector<64x128xf32>
    %91 = arith.maximumf %89, %90 : vector<64x128xf32>
    %92 = arith.truncf %91 : vector<64x128xf32> to vector<64x128xbf16>
    %c0_65 = arith.constant 0 : index
    %c0_66 = arith.constant 0 : index
    %c0_67 = arith.constant 0 : index
    %93 = vector.load %arg12[%c0_65, %c0_66, %c0_67] : memref<1x64x128xbf16, #tpu.memory_space<vmem>>, vector<1x64x128xbf16>
    %94 = vector.shape_cast %93 : vector<1x64x128xbf16> to vector<64x128xbf16>
    %95 = vector.shape_cast %92 : vector<64x128xbf16> to vector<1x64x128xbf16>
    tpu.vector_store %arg12[%c0_65, %c0_66, %c0_67], %95 {strides = array<i32>} : memref<1x64x128xbf16, #tpu.memory_space<vmem>>, vector<1x64x128xbf16>,
    return
  }
  func.func @transform_0(%arg0: i32) -> (i32, i32, i32) {
    %c0_i32 = arith.constant 0 : i32
    %c0_i32_0 = arith.constant 0 : i32
    %c0_i32_1 = arith.constant 0 : i32
    return %arg0, %c0_i32, %c0_i32_0 : i32, i32, i32
  }
  func.func @transform_1(%arg0: i32) -> (i32, i32, i32) {
    %c0_i32 = arith.constant 0 : i32
    %c0_i32_0 = arith.constant 0 : i32
    %c0_i32_1 = arith.constant 0 : i32
    return %arg0, %c0_i32, %c0_i32_0 : i32, i32, i32
  }
  func.func @transform_2(%arg0: i32) -> (i32, i32, i32) {
    %c0_i32 = arith.constant 0 : i32
    %c0_i32_0 = arith.constant 0 : i32
    %c0_i32_1 = arith.constant 0 : i32
    %c0_i32_2 = arith.constant 0 : i32
    return %c0_i32, %c0_i32_0, %c0_i32_1 : i32, i32, i32
  }
  func.func @transform_3(%arg0: i32) -> (i32, i32) {
    %c0_i32 = arith.constant 0 : i32
    %c0_i32_0 = arith.constant 0 : i32
    %c0_i32_1 = arith.constant 0 : i32
    return %c0_i32, %c0_i32_0 : i32, i32
  }
  func.func @transform_4(%arg0: i32) -> (i32, i32) {
    %c0_i32 = arith.constant 0 : i32
    %c0_i32_0 = arith.constant 0 : i32
    %c0_i32_1 = arith.constant 0 : i32
    return %c0_i32, %c0_i32_0 : i32, i32
  }
  func.func @transform_5(%arg0: i32) -> (i32, i32, i32) {
    %c0_i32 = arith.constant 0 : i32
    %c0_i32_0 = arith.constant 0 : i32
    %c0_i32_1 = arith.constant 0 : i32
    %c0_i32_2 = arith.constant 0 : i32
    return %c0_i32, %c0_i32_0, %c0_i32_1 : i32, i32, i32
  }
  func.func @transform_6(%arg0: i32) -> (i32, i32) {
    %c0_i32 = arith.constant 0 : i32
    %c0_i32_0 = arith.constant 0 : i32
    %c0_i32_1 = arith.constant 0 : i32
    return %c0_i32, %c0_i32_0 : i32, i32
  }
  func.func @transform_7(%arg0: i32) -> (i32, i32) {
    %c0_i32 = arith.constant 0 : i32
    %c0_i32_0 = arith.constant 0 : i32
    %c0_i32_1 = arith.constant 0 : i32
    return %c0_i32, %c0_i32_0 : i32, i32
  }
  func.func @transform_8(%arg0: i32) -> (i32, i32) {
    %c0_i32 = arith.constant 0 : i32
    %c0_i32_0 = arith.constant 0 : i32
    %c0_i32_1 = arith.constant 0 : i32
    return %c0_i32, %c0_i32_0 : i32, i32
  }
  func.func @transform_9(%arg0: i32) -> (i32, i32) {
    %c0_i32 = arith.constant 0 : i32
    %c0_i32_0 = arith.constant 0 : i32
    %c0_i32_1 = arith.constant 0 : i32
    return %c0_i32, %c0_i32_0 : i32, i32
  }
  func.func @transform_10(%arg0: i32) -> (i32, i32) {
    %c0_i32 = arith.constant 0 : i32
    %c0_i32_0 = arith.constant 0 : i32
    %c0_i32_1 = arith.constant 0 : i32
    return %c0_i32, %c0_i32_0 : i32, i32
  }
  func.func @transform_11(%arg0: i32) -> (i32, i32, i32) {
    %c0_i32 = arith.constant 0 : i32
    %c0_i32_0 = arith.constant 0 : i32
    %c0_i32_1 = arith.constant 0 : i32
    return %arg0, %c0_i32, %c0_i32_0 : i32, i32, i32
  }
}

</mosaic_0001>

<llo_original>
// kernel: _lambda_.2
$region0: #{_lambda_.2}
  #allocation0 [shape = 'u32[]', space=smem, size = 0x4, offset = 0x4, fixed_abs, tag = 'smem constant byte address 0x4 - core index']
  #allocation1 [shape = 'u32[144,128]{1,0:T(1,128)}', space=vmem, size = 0x12000, scoped, tag = 'internal scratch']
  #allocation2 [shape = 'bf16[80,384]{1,0:T(16,128)(2,1)}', space=vmem, size = 0xf000, scoped, tag = 'scratch operand']
  %s0 = inlined_call_operand.vmem [shape: bf16[2,72,12], index: 0, kind: input, shape index: {}]
  %s1 = inlined_call_operand.vmem [shape: bf16[2,72,12], index: 1, kind: input, shape index: {}]
  %s2 = inlined_call_operand.vmem [shape: bf16[3,12,128], index: 2, kind: input, shape index: {}]
  %s3 = inlined_call_operand.vmem [shape: f32[1,128], index: 3, kind: input, shape index: {}, may-alias: {3,6,9}]
  %s4 = inlined_call_operand.vmem [shape: f32[1,128], index: 4, kind: input, shape index: {}, may-alias: {4,7,10}]
  %s5 = inlined_call_operand.vmem [shape: bf16[3,384,128], index: 5, kind: input, shape index: {}]
  %s6 = inlined_call_operand.vmem [shape: f32[1,128], index: 6, kind: input, shape index: {}, may-alias: {3,6,9}]
  %s7 = inlined_call_operand.vmem [shape: f32[1,128], index: 7, kind: input, shape index: {}, may-alias: {4,7,10}]
  %s8 = inlined_call_operand.vmem [shape: bf16[12,128], index: 8, kind: input, shape index: {}]
  %s9 = inlined_call_operand.vmem [shape: f32[1,128], index: 9, kind: input, shape index: {}, may-alias: {3,6,9}]
  %s10 = inlined_call_operand.vmem [shape: f32[1,128], index: 10, kind: input, shape index: {}, may-alias: {4,7,10}]
  %s11 = inlined_call_operand.vmem [shape: bf16[2,64,128], index: 11, kind: output, shape index: {}]
  %s12 = sld [smem:[#allocation0]]
  $region77: #{_lambda_.2} parent=0
    _
  %s14 = ssub.s32 1, %s12
  %s15 = scalar_select 0, %s14, %s12
  loop: start=0, step=1, limit=4
  $region2: #{_lambda_.2} parent=0 // loop_pre_header
    _
  $region3: #{_lambda_.2} parent=0 // loop_header
    %s17 = sphi 0, %s21
    %p18 = scmp.ge.s32.totalorder %s17, 4
    %s27 = sphi 0, %s29
    %s30 = sphi 0, %s27
    %s31 = sphi 0, %s30
    %s47 = sphi 0, %s31
    %s53 = sphi 0, %s55
    %s56 = sphi 0, %s53
    %s57 = sphi 0, %s56
    %s73 = sphi 0, %s57
    %s77 = sphi 0, %s77
    %s79 = sphi 0, %s77
    %s80 = sphi 0, %s79
    %s94 = sphi 0, %s80
    %s98 = sphi 0, %s98
    %s100 = sphi 0, %s98
    %s101 = sphi 0, %s100
    %s115 = sphi 0, %s101
    %s119 = sphi 0, %s119
    %s121 = sphi 0, %s119
    %s122 = sphi 0, %s121
    %s136 = sphi 0, %s122
    %s140 = sphi 0, %s140
    %s142 = sphi 0, %s140
    %s143 = sphi 0, %s142
    %s157 = sphi 0, %s143
    %s161 = sphi 0, %s161
    %s163 = sphi 0, %s161
    %s164 = sphi 0, %s163
    %s178 = sphi 0, %s164
    %s182 = sphi 0, %s182
    %s184 = sphi 0, %s182
    %s185 = sphi 0, %s184
    %s199 = sphi 0, %s185
    %s203 = sphi 0, %s203
    %s205 = sphi 0, %s203
    %s206 = sphi 0, %s205
    %s220 = sphi 0, %s206
    %s224 = sphi 0, %s224
    %s226 = sphi 0, %s224
    %s227 = sphi 0, %s226
    %s241 = sphi 0, %s227
    %s245 = sphi 0, %s245
    %s247 = sphi 0, %s245
    %s248 = sphi 0, %s247
    %s262 = sphi 0, %s248
    %s268 = sphi 0, %s270
    %s271 = sphi 0, %s268
    %s272 = sphi 0, %s271
    %s288 = sphi 0, %s272
  $region4: #{_lambda_.2} parent=0 // loop_header_branch
    %20 = sbr.rel (%p18) target = $region8
  $region5: #{_lambda_.2} parent=0 // loop_body
    %s22 = ssub.s32 %s17, 1
    %s23 = ssub.s32 %s17, 2
    %s24 = sadd.s32 %s17, 1
    %s25 = ssub.s32 %s17, %s24
    %p26 = scmp.eq.s32.totalorder %s25, 0
    %s28 = sadd.s32 %s27, 1
    %s29 = scalar_select %p26, %s27, %s28
    %p32 = pneg %p26
    %p33 = scmp.eq.s32.totalorder %s17, 1
    %p34 = por %p32, %p33
    %p35 = scmp.ne.s32.totalorder %s27, %s30
    %p36 = scmp.eq.s32.totalorder %s17, 0
    %p37 = por %p35, %p36
    %p38 = scmp.ne.s32.totalorder %s27, %s30
    %p39 = scmp.eq.s32.totalorder %s22, 1
    %p40 = por %p38, %p39
    %p41 = scmp.ne.s32.totalorder %s30, %s31
    %p42 = scmp.eq.s32.totalorder %s22, 0
    %p43 = por %p41, %p42
    %p44 = scmp.ne.s32.totalorder %s30, %s31
    %p45 = scmp.eq.s32.totalorder %s23, 1
    %p46 = por %p44, %p45
    %p48 = scmp.ne.s32.totalorder %s31, %s47
    %p49 = scmp.eq.s32.totalorder %s23, 0
    %p50 = por %p48, %p49
    %s51 = ssub.s32 %s17, %s24
    %p52 = scmp.eq.s32.totalorder %s51, 0
    %s54 = sadd.s32 %s53, 1
    %s55 = scalar_select %p52, %s53, %s54
    %p58 = pneg %p52
    %p59 = scmp.eq.s32.totalorder %s17, 1
    %p60 = por %p58, %p59
    %p61 = scmp.ne.s32.totalorder %s53, %s56
    %p62 = scmp.eq.s32.totalorder %s17, 0
    %p63 = por %p61, %p62
    %p64 = scmp.ne.s32.totalorder %s53, %s56
    %p65 = scmp.eq.s32.totalorder %s22, 1
    %p66 = por %p64, %p65
    %p67 = scmp.ne.s32.totalorder %s56, %s57
    %p68 = scmp.eq.s32.totalorder %s22, 0
    %p69 = por %p67, %p68
    %p70 = scmp.ne.s32.totalorder %s56, %s57
    %p71 = scmp.eq.s32.totalorder %s23, 1
    %p72 = por %p70, %p71
    %p74 = scmp.ne.s32.totalorder %s57, %s73
    %p75 = scmp.eq.s32.totalorder %s23, 0
    %p76 = por %p74, %p75
    %s78 = sadd.s32 %s77, 1
    %p81 = scmp.eq.s32.totalorder %s17, 1
    %p82 = scmp.ne.s32.totalorder %s77, %s79
    %p83 = scmp.eq.s32.totalorder %s17, 0
    %p84 = por %p82, %p83
    %p85 = scmp.ne.s32.totalorder %s77, %s79
    %p86 = scmp.eq.s32.totalorder %s22, 1
    %p87 = por %p85, %p86
    %p88 = scmp.ne.s32.totalorder %s79, %s80
    %p89 = scmp.eq.s32.totalorder %s22, 0
    %p90 = por %p88, %p89
    %p91 = scmp.ne.s32.totalorder %s79, %s80
    %p92 = scmp.eq.s32.totalorder %s23, 1
    %p93 = por %p91, %p92
    %p95 = scmp.ne.s32.totalorder %s80, %s94
    %p96 = scmp.eq.s32.totalorder %s23, 0
    %p97 = por %p95, %p96
    %s99 = sadd.s32 %s98, 1
    %p102 = scmp.eq.s32.totalorder %s17, 1
    %p103 = scmp.ne.s32.totalorder %s98, %s100
    %p104 = scmp.eq.s32.totalorder %s17, 0
    %p105 = por %p103, %p104
    %p106 = scmp.ne.s32.totalorder %s98, %s100
    %p107 = scmp.eq.s32.totalorder %s22, 1
    %p108 = por %p106, %p107
    %p109 = scmp.ne.s32.totalorder %s100, %s101
    %p110 = scmp.eq.s32.totalorder %s22, 0
    %p111 = por %p109, %p110
    %p112 = scmp.ne.s32.totalorder %s100, %s101
    %p113 = scmp.eq.s32.totalorder %s23, 1
    %p114 = por %p112, %p113
    %p116 = scmp.ne.s32.totalorder %s101, %s115
    %p117 = scmp.eq.s32.totalorder %s23, 0
    %p118 = por %p116, %p117
    %s120 = sadd.s32 %s119, 1
    %p123 = scmp.eq.s32.totalorder %s17, 1
    %p124 = scmp.ne.s32.totalorder %s119, %s121
    %p125 = scmp.eq.s32.totalorder %s17, 0
    %p126 = por %p124, %p125
    %p127 = scmp.ne.s32.totalorder %s119, %s121
    %p128 = scmp.eq.s32.totalorder %s22, 1
    %p129 = por %p127, %p128
    %p130 = scmp.ne.s32.totalorder %s121, %s122
    %p131 = scmp.eq.s32.totalorder %s22, 0
    %p132 = por %p130, %p131
    %p133 = scmp.ne.s32.totalorder %s121, %s122
    %p134 = scmp.eq.s32.totalorder %s23, 1
    %p135 = por %p133, %p134
    %p137 = scmp.ne.s32.totalorder %s122, %s136
    %p138 = scmp.eq.s32.totalorder %s23, 0
    %p139 = por %p137, %p138
    %s141 = sadd.s32 %s140, 1
    %p144 = scmp.eq.s32.totalorder %s17, 1
    %p145 = scmp.ne.s32.totalorder %s140, %s142
    %p146 = scmp.eq.s32.totalorder %s17, 0
    %p147 = por %p145, %p146
    %p148 = scmp.ne.s32.totalorder %s140, %s142
    %p149 = scmp.eq.s32.totalorder %s22, 1
    %p150 = por %p148, %p149
    %p151 = scmp.ne.s32.totalorder %s142, %s143
    %p152 = scmp.eq.s32.totalorder %s22, 0
    %p153 = por %p151, %p152
    %p154 = scmp.ne.s32.totalorder %s142, %s143
    %p155 = scmp.eq.s32.totalorder %s23, 1
    %p156 = por %p154, %p155
    %p158 = scmp.ne.s32.totalorder %s143, %s157
    %p159 = scmp.eq.s32.totalorder %s23, 0
    %p160 = por %p158, %p159
    %s162 = sadd.s32 %s161, 1
    %p165 = scmp.eq.s32.totalorder %s17, 1
    %p166 = scmp.ne.s32.totalorder %s161, %s163
    %p167 = scmp.eq.s32.totalorder %s17, 0
    %p168 = por %p166, %p167
    %p169 = scmp.ne.s32.totalorder %s161, %s163
    %p170 = scmp.eq.s32.totalorder %s22, 1
    %p171 = por %p169, %p170
    %p172 = scmp.ne.s32.totalorder %s163, %s164
    %p173 = scmp.eq.s32.totalorder %s22, 0
    %p174 = por %p172, %p173
    %p175 = scmp.ne.s32.totalorder %s163, %s164
    %p176 = scmp.eq.s32.totalorder %s23, 1
    %p177 = por %p175, %p176
    %p179 = scmp.ne.s32.totalorder %s164, %s178
    %p180 = scmp.eq.s32.totalorder %s23, 0
    %p181 = por %p179, %p180
    %s183 = sadd.s32 %s182, 1
    %p186 = scmp.eq.s32.totalorder %s17, 1
    %p187 = scmp.ne.s32.totalorder %s182, %s184
    %p188 = scmp.eq.s32.totalorder %s17, 0
    %p189 = por %p187, %p188
    %p190 = scmp.ne.s32.totalorder %s182, %s184
    %p191 = scmp.eq.s32.totalorder %s22, 1
    %p192 = por %p190, %p191
    %p193 = scmp.ne.s32.totalorder %s184, %s185
    %p194 = scmp.eq.s32.totalorder %s22, 0
    %p195 = por %p193, %p194
    %p196 = scmp.ne.s32.totalorder %s184, %s185
    %p197 = scmp.eq.s32.totalorder %s23, 1
    %p198 = por %p196, %p197
    %p200 = scmp.ne.s32.totalorder %s185, %s199
    %p201 = scmp.eq.s32.totalorder %s23, 0
    %p202 = por %p200, %p201
    %s204 = sadd.s32 %s203, 1
    %p207 = scmp.eq.s32.totalorder %s17, 1
    %p208 = scmp.ne.s32.totalorder %s203, %s205
    %p209 = scmp.eq.s32.totalorder %s17, 0
    %p210 = por %p208, %p209
    %p211 = scmp.ne.s32.totalorder %s203, %s205
    %p212 = scmp.eq.s32.totalorder %s22, 1
    %p213 = por %p211, %p212
    %p214 = scmp.ne.s32.totalorder %s205, %s206
    %p215 = scmp.eq.s32.totalorder %s22, 0
    %p216 = por %p214, %p215
    %p217 = scmp.ne.s32.totalorder %s205, %s206
    %p218 = scmp.eq.s32.totalorder %s23, 1
    %p219 = por %p217, %p218
    %p221 = scmp.ne.s32.totalorder %s206, %s220
    %p222 = scmp.eq.s32.totalorder %s23, 0
    %p223 = por %p221, %p222
    %s225 = sadd.s32 %s224, 1
    %p228 = scmp.eq.s32.totalorder %s17, 1
    %p229 = scmp.ne.s32.totalorder %s224, %s226
    %p230 = scmp.eq.s32.totalorder %s17, 0
    %p231 = por %p229, %p230
    %p232 = scmp.ne.s32.totalorder %s224, %s226
    %p233 = scmp.eq.s32.totalorder %s22, 1
    %p234 = por %p232, %p233
    %p235 = scmp.ne.s32.totalorder %s226, %s227
    %p236 = scmp.eq.s32.totalorder %s22, 0
    %p237 = por %p235, %p236
    %p238 = scmp.ne.s32.totalorder %s226, %s227
    %p239 = scmp.eq.s32.totalorder %s23, 1
    %p240 = por %p238, %p239
    %p242 = scmp.ne.s32.totalorder %s227, %s241
    %p243 = scmp.eq.s32.totalorder %s23, 0
    %p244 = por %p242, %p243
    %s246 = sadd.s32 %s245, 1
    %p249 = scmp.eq.s32.totalorder %s17, 1
    %p250 = scmp.ne.s32.totalorder %s245, %s247
    %p251 = scmp.eq.s32.totalorder %s17, 0
    %p252 = por %p250, %p251
    %p253 = scmp.ne.s32.totalorder %s245, %s247
    %p254 = scmp.eq.s32.totalorder %s22, 1
    %p255 = por %p253, %p254
    %p256 = scmp.ne.s32.totalorder %s247, %s248
    %p257 = scmp.eq.s32.totalorder %s22, 0
    %p258 = por %p256, %p257
    %p259 = scmp.ne.s32.totalorder %s247, %s248
    %p260 = scmp.eq.s32.totalorder %s23, 1
    %p261 = por %p259, %p260
    %p263 = scmp.ne.s32.totalorder %s248, %s262
    %p264 = scmp.eq.s32.totalorder %s23, 0
    %p265 = por %p263, %p264
    %s266 = ssub.s32 %s17, %s24
    %p267 = scmp.eq.s32.totalorder %s266, 0
    %s269 = sadd.s32 %s268, 1
    %s270 = scalar_select %p267, %s268, %s269
    %p273 = pneg %p267
    %p274 = scmp.eq.s32.totalorder %s17, 1
    %p275 = por %p273, %p274
    %p276 = scmp.ne.s32.totalorder %s268, %s271
    %p277 = scmp.eq.s32.totalorder %s17, 0
    %p278 = por %p276, %p277
    %p279 = scmp.ne.s32.totalorder %s268, %s271
    %p280 = scmp.eq.s32.totalorder %s22, 1
    %p281 = por %p279, %p280
    %p282 = scmp.ne.s32.totalorder %s271, %s272
    %p283 = scmp.eq.s32.totalorder %s22, 0
    %p284 = por %p282, %p283
    %p285 = scmp.ne.s32.totalorder %s271, %s272
    %p286 = scmp.eq.s32.totalorder %s23, 1
    %p287 = por %p285, %p286
    %p289 = scmp.ne.s32.totalorder %s272, %s288
    %p290 = scmp.eq.s32.totalorder %s23, 0
    %p291 = por %p289, %p290
    %p292 = scmp.le.s32.totalorder 1, %s17
    %p293 = scmp.lt.s32.totalorder %s17, 3
    %p294 = pnand %p292, %p293
    %p295 = pneg %p294
    // Predicated region
    $region9: #{_lambda_.2} parent=5 // pred_check
      _
    $region10: #{_lambda_.2} parent=5 // pred_check_branch
      %297 = sbr.rel (%p294) target = $region12
    $region11: #{_lambda_.2} parent=5 // pred_region
      %s298 = ssub.s32 %s17, 1
      // Predicated region
      $region13: #{_lambda_.2} parent=11 // pred_check
        %p299 = pneg %p90
      $region14: #{_lambda_.2} parent=11 // pred_check_branch
        %301 = sbr.rel (%p299) target = $region16
      $region15: #{_lambda_.2} parent=11 // pred_region
        _
      $region16: #{_lambda_.2} parent=11 // pred_fallthru
        _
      // Predicated region
      $region17: #{_lambda_.2} parent=11 // pred_check
        %p302 = pneg %p111
      $region18: #{_lambda_.2} parent=11 // pred_check_branch
        %304 = sbr.rel (%p302) target = $region20
      $region19: #{_lambda_.2} parent=11 // pred_region
        _
      $region20: #{_lambda_.2} parent=11 // pred_fallthru
        _
      // Predicated region
      $region21: #{_lambda_.2} parent=11 // pred_check
        %p305 = pneg %p132
      $region22: #{_lambda_.2} parent=11 // pred_check_branch
        %307 = sbr.rel (%p305) target = $region24
      $region23: #{_lambda_.2} parent=11 // pred_region
        _
      $region24: #{_lambda_.2} parent=11 // pred_fallthru
        _
      // Predicated region
      $region25: #{_lambda_.2} parent=11 // pred_check
        %p308 = pneg %p153
      $region26: #{_lambda_.2} parent=11 // pred_check_branch
        %310 = sbr.rel (%p308) target = $region28
      $region27: #{_lambda_.2} parent=11 // pred_region
        _
      $region28: #{_lambda_.2} parent=11 // pred_fallthru
        _
      // Predicated region
      $region29: #{_lambda_.2} parent=11 // pred_check
        %p311 = pneg %p174
      $region30: #{_lambda_.2} parent=11 // pred_check_branch
        %313 = sbr.rel (%p311) target = $region32
      $region31: #{_lambda_.2} parent=11 // pred_region
        _
      $region32: #{_lambda_.2} parent=11 // pred_fallthru
        _
      // Predicated region
      $region33: #{_lambda_.2} parent=11 // pred_check
        %p314 = pneg %p195
      $region34: #{_lambda_.2} parent=11 // pred_check_branch
        %316 = sbr.rel (%p314) target = $region36
      $region35: #{_lambda_.2} parent=11 // pred_region
        _
      $region36: #{_lambda_.2} parent=11 // pred_fallthru
        _
      // Predicated region
      $region37: #{_lambda_.2} parent=11 // pred_check
        %p317 = pneg %p216
      $region38: #{_lambda_.2} parent=11 // pred_check_branch
        %319 = sbr.rel (%p317) target = $region40
      $region39: #{_lambda_.2} parent=11 // pred_region
        _
      $region40: #{_lambda_.2} parent=11 // pred_fallthru
        _
      // Predicated region
      $region41: #{_lambda_.2} parent=11 // pred_check
        %p320 = pneg %p237
      $region42: #{_lambda_.2} parent=11 // pred_check_branch
        %322 = sbr.rel (%p320) target = $region44
      $region43: #{_lambda_.2} parent=11 // pred_region
        _
      $region44: #{_lambda_.2} parent=11 // pred_fallthru
        _
      // Predicated region
      $region45: #{_lambda_.2} parent=11 // pred_check
        %p323 = pneg %p258
      $region46: #{_lambda_.2} parent=11 // pred_check_branch
        %325 = sbr.rel (%p323) target = $region48
      $region47: #{_lambda_.2} parent=11 // pred_region
        _
      $region48: #{_lambda_.2} parent=11 // pred_fallthru
        _
    $region12: #{_lambda_.2} parent=5 // pred_fallthru
      _
    %p326 = scmp.lt.s32.totalorder %s17, 2
    // Predicated region
    $region49: #{_lambda_.2} parent=5 // pred_check
      %p327 = pneg %p326
    $region50: #{_lambda_.2} parent=5 // pred_check_branch
      %329 = sbr.rel (%p327) target = $region52
    $region51: #{_lambda_.2} parent=5 // pred_region
      // Predicated region
      $region53: #{_lambda_.2} parent=51 // pred_check
        %p330 = pneg %p37
      $region54: #{_lambda_.2} parent=51 // pred_check_branch
        %332 = sbr.rel (%p330) target = $region56
      $region55: #{_lambda_.2} parent=51 // pred_region
        %p333 = scmp.lt.s32.totalorder %s17, 1
        %s334 = scalar_select %p333, %s17, 1
        %s335 = smul.addr %s334, 9
        %s336 = smul.addr %s335, 4
        %s337 = scalar_lea.vmem %s0, %s336
      $region56: #{_lambda_.2} parent=51 // pred_fallthru
        _
      // Predicated region
      $region57: #{_lambda_.2} parent=51 // pred_check
        %p338 = pneg %p63
      $region58: #{_lambda_.2} parent=51 // pred_check_branch
        %340 = sbr.rel (%p338) target = $region60
      $region59: #{_lambda_.2} parent=51 // pred_region
        %p341 = scmp.lt.s32.totalorder %s17, 1
        %s342 = scalar_select %p341, %s17, 1
        %s343 = smul.addr %s342, 9
        %s344 = smul.addr %s343, 4
        %s345 = scalar_lea.vmem %s1, %s344
      $region60: #{_lambda_.2} parent=51 // pred_fallthru
        _
    $region52: #{_lambda_.2} parent=5 // pred_fallthru
      _
    %p346 = scmp.le.s32.totalorder 1, %s17
    %p347 = scmp.lt.s32.totalorder %s17, 3
    %p348 = pnand %p346, %p347
    %p349 = pneg %p348
    // Predicated region
    $region61: #{_lambda_.2} parent=5 // pred_check
      _
    $region62: #{_lambda_.2} parent=5 // pred_check_branch
      %351 = sbr.rel (%p348) target = $region64
    $region63: #{_lambda_.2} parent=5 // pred_region
      %s352 = ssub.s32 %s17, 1
      %p353 = scmp.lt.s32.totalorder %s22, 1
      %s354 = scalar_select %p353, %s22, 1
      %s355 = smul.addr %s354, 9
      %s356 = smul.addr %s355, 4
      %s357 = scalar_lea.vmem %s0, %s356
      %p358 = pneg %p43
      %p359 = pneg %p40
      %p360 = scmp.lt.s32.totalorder %s22, 1
      %s361 = scalar_select %p360, %s22, 1
      %s362 = smul.addr %s361, 9
      %s363 = smul.addr %s362, 4
      %s364 = scalar_lea.vmem %s1, %s363
      %p365 = pneg %p69
      %p366 = pneg %p66
      %p367 = pneg %p90
      %p368 = pneg %p87
      %p369 = pneg %p111
      %p370 = pneg %p108
      %p371 = pneg %p132
      %p372 = pneg %p129
      %p373 = pneg %p153
      %p374 = pneg %p150
      %p375 = pneg %p174
      %p376 = pneg %p171
      %p377 = pneg %p195
      %p378 = pneg %p192
      %p379 = pneg %p216
      %p380 = pneg %p213
      %p381 = pneg %p237
      %p382 = pneg %p234
      %p383 = pneg %p258
      %p384 = pneg %p255
      %p385 = pneg %p284
      %p386 = pneg %p281
      %p387 = scmp.lt.s32.totalorder %s22, 1
      %s388 = scalar_select %p387, %s22, 1
      %s389 = smul.addr %s388, 8
      %s390 = smul.addr %s389, 4
      %s391 = scalar_lea.vmem %s11, %s390
      %p392 = scmp.lt.s32.totalorder %s22, 1
      %s393 = scalar_select %p392, %s22, 1
      %s394 = smul.addr %s393, 9
      %s395 = smul.addr %s394, 4
      %s396 = scalar_lea.vmem %s0, %s395
      %p397 = scmp.lt.s32.totalorder %s22, 1
      %s398 = scalar_select %p397, %s22, 1
      %s399 = smul.addr %s398, 9
      %s400 = smul.addr %s399, 4
      %s401 = scalar_lea.vmem %s1, %s400
      %p402 = scmp.lt.s32.totalorder %s22, 1
      %s403 = scalar_select %p402, %s22, 1
      %s404 = smul.addr %s403, 8
      %s405 = smul.addr %s404, 4
      %s406 = scalar_lea.vmem %s11, %s405
      %v408 = vld [vmem:[%s401] sm:$0xf]
      %v409 = vld [vmem:[%s401 + $0x4] sm:$0xf]
      %v410 = vld [vmem:[%s401 + $0x8] sm:$0xf]
      %v411 = vld [vmem:[%s401 + $0xc] sm:$0xf]
      %v412 = vld [vmem:[%s401 + $0x10] sm:$0xf]
      %v413 = vld [vmem:[%s401 + $0x14] sm:$0xf]
      %v414 = vld [vmem:[%s401 + $0x18] sm:$0xf]
      %v415 = vld [vmem:[%s401 + $0x1c] sm:$0xf]
      %v416 = vld [vmem:[%s396] sm:$0xf]
      %v417 = vld [vmem:[%s396 + $0x4] sm:$0xf]
      %v418 = vld [vmem:[%s396 + $0x8] sm:$0xf]
      %v419 = vld [vmem:[%s396 + $0xc] sm:$0xf]
      %v420 = vld [vmem:[%s396 + $0x10] sm:$0xf]
      %v421 = vld [vmem:[%s396 + $0x14] sm:$0xf]
      %v422 = vld [vmem:[%s396 + $0x18] sm:$0xf]
      %v423 = vld [vmem:[%s396 + $0x1c] sm:$0xf]
      %v424 = vld [vmem:[%s2] sm:$0xf]
      %v425 = vld [vmem:[%s2 + $0x4] sm:$0x3]
      %s426 = scalar_lea.vmem %s2, 8
      %v427 = vld [vmem:[%s426] sm:$0xf]
      %v428 = vld [vmem:[%s426 + $0x4] sm:$0x3]
      %v437 = vunpack.c.l.b16 %v408
      %v438 = vunpack.c.l.b16 %v409
      %v439 = vunpack.c.l.b16 %v410
      %v440 = vunpack.c.l.b16 %v411
      %v441 = vunpack.c.l.b16 %v412
      %v442 = vunpack.c.l.b16 %v413
      %v443 = vunpack.c.l.b16 %v414
      %v444 = vunpack.c.l.b16 %v415
      %v445 = vpack.c.b16 %v438, %v437
      %v446 = vpack.c.b16 %v440, %v439
      %v447 = vpack.c.b16 %v442, %v441
      %v448 = vpack.c.b16 %v444, %v443
      %v451 = vunpack.c.l.b16 %v427
      %v452 = vunpack.c.l.b16 %v428
      %v453 = vpack.c.b16 %v452, %v451
      %vm454 = vcmask 97280
      %v456 = vsel %vm454, %v445, 0
      %v459 = vsel %vm454, %v446, 0
      %v462 = vsel %vm454, %v447, 0
      %v465 = vsel %vm454, %v448, 0
      %vm467 = vcmask 1045504
      %v469 = vsel %vm467, %v453, 0
      %471 = vmatprep.subr.bf16.mxu0 0
      %472 = vmatpush1.bf16.msra.mxu0 %v469
      %473 = vmatprep.subr.bf16.mxu0 0
      %474 = vmatpush1.bf16.msra.mxu0 0
      %475 = vmatprep.subr.bf16.mxu0 0
      %476 = vmatpush1.bf16.msra.mxu0 0
      %477 = vmatprep.subr.bf16.mxu0 0
      %478 = vmatpush1.bf16.msra.mxu0 0
      %479 = vmatprep.subr.bf16.mxu0 0
      %480 = vmatpush1.bf16.msra.mxu0 0
      %481 = vmatprep.subr.bf16.mxu0 0
      %482 = vmatpush1.bf16.msra.mxu0 0
      %483 = vmatprep.subr.bf16.mxu0 0
      %484 = vmatpush1.bf16.msra.mxu0 0
      %485 = vmatprep.subr.bf16.mxu0 0
      %486 = vmatpush1.bf16.msra.mxu0 0
      %487 = vmatprep.subr.bf16.mxu0 0
      %488 = vmatpush1.bf16.msra.mxu0 0
      %489 = vmatprep.subr.bf16.mxu0 0
      %490 = vmatpush1.bf16.msra.mxu0 0
      %491 = vmatprep.subr.bf16.mxu0 0
      %492 = vmatpush1.bf16.msra.mxu0 0
      %493 = vmatprep.subr.bf16.mxu0 0
      %494 = vmatpush1.bf16.msra.mxu0 0
      %495 = vmatprep.subr.bf16.mxu0 0
      %496 = vmatpush1.bf16.msra.mxu0 0
      %497 = vmatprep.subr.bf16.mxu0 0
      %498 = vmatpush1.bf16.msra.mxu0 0
      %499 = vmatprep.subr.bf16.mxu0 0
      %500 = vmatpush1.bf16.msra.mxu0 0
      %501 = vmatprep.subr.bf16.mxu0 0
      %502 = vmatpush1.bf16.msra.mxu0 0
      %503 = vmatprep.mubr.bf16.mxu0 0
      %504 = vmatmul.mubr.bf16.gmra.mrb[0].mxu0 %v456
      %v505 = vpop.f32.mrb[0].mxu0
      %v506 = vadd.f32 0.0, %v505
      %v507 = vpop.f32.mrb[0].mxu0
      %v508 = vpop.f32.mrb[0].mxu0
      %v509 = vadd.f32 0.0, %v508
      %v510 = vpop.f32.mrb[0].mxu0
      %511 = vmatprep.mubr.bf16.mxu0 0
      %512 = vmatmul.mubr.bf16.gmra.mrb[0].mxu0 %v459
      %v513 = vpop.f32.mrb[0].mxu0
      %v514 = vadd.f32 0.0, %v513
      %v515 = vpop.f32.mrb[0].mxu0
      %v516 = vpop.f32.mrb[0].mxu0
      %v517 = vadd.f32 0.0, %v516
      %v518 = vpop.f32.mrb[0].mxu0
      %519 = vmatprep.mubr.bf16.mxu0 0
      %520 = vmatmul.mubr.bf16.gmra.mrb[0].mxu0 %v462
      %v521 = vpop.f32.mrb[0].mxu0
      %v522 = vadd.f32 0.0, %v521
      %v523 = vpop.f32.mrb[0].mxu0
      %v524 = vpop.f32.mrb[0].mxu0
      %v525 = vadd.f32 0.0, %v524
      %v526 = vpop.f32.mrb[0].mxu0
      %527 = vmatprep.mubr.bf16.mxu0 0
      %528 = vmatmul.mubr.bf16.gmra.mrb[0].mxu0 %v465
      %v529 = vpop.f32.mrb[0].mxu0
      %v530 = vadd.f32 0.0, %v529
      %v531 = vpop.f32.mrb[0].mxu0
      %v532 = vpop.f32.mrb[0].mxu0
      %v533 = vadd.f32 0.0, %v532
      %v534 = vpop.f32.mrb[0].mxu0
      %535 = vdwg.mxu0
      %v544 = vunpack.c.l.b16 %v416
      %v545 = vunpack.c.l.b16 %v417
      %v546 = vunpack.c.l.b16 %v418
      %v547 = vunpack.c.l.b16 %v419
      %v548 = vunpack.c.l.b16 %v420
      %v549 = vunpack.c.l.b16 %v421
      %v550 = vunpack.c.l.b16 %v422
      %v551 = vunpack.c.l.b16 %v423
      %v552 = vpack.c.b16 %v545, %v544
      %v553 = vpack.c.b16 %v547, %v546
      %v554 = vpack.c.b16 %v549, %v548
      %v555 = vpack.c.b16 %v551, %v550
      %v558 = vunpack.c.l.b16 %v424
      %v559 = vunpack.c.l.b16 %v425
      %v560 = vpack.c.b16 %v559, %v558
      %v562 = vsel %vm454, %v552, 0
      %v565 = vsel %vm454, %v553, 0
      %v568 = vsel %vm454, %v554, 0
      %v571 = vsel %vm454, %v555, 0
      %v574 = vsel %vm467, %v560, 0
      %576 = vmatprep.subr.bf16.mxu0 0
      %577 = vmatpush1.bf16.msra.mxu0 %v574
      %578 = vmatprep.subr.bf16.mxu0 0
      %579 = vmatpush1.bf16.msra.mxu0 0
      %580 = vmatprep.subr.bf16.mxu0 0
      %581 = vmatpush1.bf16.msra.mxu0 0
      %582 = vmatprep.subr.bf16.mxu0 0
      %583 = vmatpush1.bf16.msra.mxu0 0
      %584 = vmatprep.subr.bf16.mxu0 0
      %585 = vmatpush1.bf16.msra.mxu0 0
      %586 = vmatprep.subr.bf16.mxu0 0
      %587 = vmatpush1.bf16.msra.mxu0 0
      %588 = vmatprep.subr.bf16.mxu0 0
      %589 = vmatpush1.bf16.msra.mxu0 0
      %590 = vmatprep.subr.bf16.mxu0 0
      %591 = vmatpush1.bf16.msra.mxu0 0
      %592 = vmatprep.subr.bf16.mxu0 0
      %593 = vmatpush1.bf16.msra.mxu0 0
      %594 = vmatprep.subr.bf16.mxu0 0
      %595 = vmatpush1.bf16.msra.mxu0 0
      %596 = vmatprep.subr.bf16.mxu0 0
      %597 = vmatpush1.bf16.msra.mxu0 0
      %598 = vmatprep.subr.bf16.mxu0 0
      %599 = vmatpush1.bf16.msra.mxu0 0
      %600 = vmatprep.subr.bf16.mxu0 0
      %601 = vmatpush1.bf16.msra.mxu0 0
      %602 = vmatprep.subr.bf16.mxu0 0
      %603 = vmatpush1.bf16.msra.mxu0 0
      %604 = vmatprep.subr.bf16.mxu0 0
      %605 = vmatpush1.bf16.msra.mxu0 0
      %606 = vmatprep.subr.bf16.mxu0 0
      %607 = vmatpush1.bf16.msra.mxu0 0
      %608 = vmatprep.mubr.bf16.mxu0 0
      %609 = vmatmul.mubr.bf16.gmra.mrb[0].mxu0 %v562
      %v610 = vpop.f32.mrb[0].mxu0
      %v611 = vadd.f32 %v506, %v610
      %v612 = vpop.f32.mrb[0].mxu0
      %v613 = vpop.f32.mrb[0].mxu0
      %v614 = vadd.f32 %v509, %v613
      %v615 = vpop.f32.mrb[0].mxu0
      %616 = vmatprep.mubr.bf16.mxu0 0
      %617 = vmatmul.mubr.bf16.gmra.mrb[0].mxu0 %v565
      %v618 = vpop.f32.mrb[0].mxu0
      %v619 = vadd.f32 %v514, %v618
      %v620 = vpop.f32.mrb[0].mxu0
      %v621 = vpop.f32.mrb[0].mxu0
      %v622 = vadd.f32 %v517, %v621
      %v623 = vpop.f32.mrb[0].mxu0
      %624 = vmatprep.mubr.bf16.mxu0 0
      %625 = vmatmul.mubr.bf16.gmra.mrb[0].mxu0 %v568
      %v626 = vpop.f32.mrb[0].mxu0
      %v627 = vadd.f32 %v522, %v626
      %v628 = vpop.f32.mrb[0].mxu0
      %v629 = vpop.f32.mrb[0].mxu0
      %v630 = vadd.f32 %v525, %v629
      %v631 = vpop.f32.mrb[0].mxu0
      %632 = vmatprep.mubr.bf16.mxu0 0
      %633 = vmatmul.mubr.bf16.gmra.mrb[0].mxu0 %v571
      %v634 = vpop.f32.mrb[0].mxu0
      %v635 = vadd.f32 %v530, %v634
      %v636 = vpop.f32.mrb[0].mxu0
      %v637 = vpop.f32.mrb[0].mxu0
      %v638 = vadd.f32 %v533, %v637
      %v639 = vpop.f32.mrb[0].mxu0
      %640 = vdwg.mxu0
      %v641 = vld [vmem:[%s396 + $0x4] sm:$0xf]
      %v642 = vld [vmem:[%s396 + $0x8] sm:$0xf]
      %v643 = vld [vmem:[%s396 + $0xc] sm:$0xf]
      %v644 = vld [vmem:[%s396 + $0x10] sm:$0xf]
      %v645 = vld [vmem:[%s396 + $0x14] sm:$0xf]
      %v646 = vld [vmem:[%s396 + $0x18] sm:$0xf]
      %v647 = vld [vmem:[%s396 + $0x1c] sm:$0xf]
      %v648 = vld [vmem:[%s396 + $0x20] sm:$0xf]
      %s649 = scalar_lea.vmem %s2, 16
      %v650 = vld [vmem:[%s649] sm:$0xf]
      %v651 = vld [vmem:[%s649 + $0x4] sm:$0x3]
      %v660 = vunpack.c.l.b16 %v641
      %v661 = vunpack.c.l.b16 %v642
      %v662 = vunpack.c.l.b16 %v643
      %v663 = vunpack.c.l.b16 %v644
      %v664 = vunpack.c.l.b16 %v645
      %v665 = vunpack.c.l.b16 %v646
      %v666 = vunpack.c.l.b16 %v647
      %v667 = vunpack.c.l.b16 %v648
      %v668 = vpack.c.b16 %v661, %v660
      %v669 = vpack.c.b16 %v663, %v662
      %v670 = vpack.c.b16 %v665, %v664
      %v671 = vpack.c.b16 %v667, %v666
      %v674 = vunpack.c.l.b16 %v650
      %v675 = vunpack.c.l.b16 %v651
      %v676 = vpack.c.b16 %v675, %v674
      %v678 = vsel %vm454, %v668, 0
      %v681 = vsel %vm454, %v669, 0
      %v684 = vsel %vm454, %v670, 0
      %v687 = vsel %vm454, %v671, 0
      %v690 = vsel %vm467, %v676, 0
      %692 = vmatprep.subr.bf16.mxu0 0
      %693 = vmatpush1.bf16.msra.mxu0 %v690
      %694 = vmatprep.subr.bf16.mxu0 0
      %695 = vmatpush1.bf16.msra.mxu0 0
      %696 = vmatprep.subr.bf16.mxu0 0
      %697 = vmatpush1.bf16.msra.mxu0 0
      %698 = vmatprep.subr.bf16.mxu0 0
      %699 = vmatpush1.bf16.msra.mxu0 0
      %700 = vmatprep.subr.bf16.mxu0 0
      %701 = vmatpush1.bf16.msra.mxu0 0
      %702 = vmatprep.subr.bf16.mxu0 0
      %703 = vmatpush1.bf16.msra.mxu0 0
      %704 = vmatprep.subr.bf16.mxu0 0
      %705 = vmatpush1.bf16.msra.mxu0 0
      %706 = vmatprep.subr.bf16.mxu0 0
      %707 = vmatpush1.bf16.msra.mxu0 0
      %708 = vmatprep.subr.bf16.mxu0 0
      %709 = vmatpush1.bf16.msra.mxu0 0
      %710 = vmatprep.subr.bf16.mxu0 0
      %711 = vmatpush1.bf16.msra.mxu0 0
      %712 = vmatprep.subr.bf16.mxu0 0
      %713 = vmatpush1.bf16.msra.mxu0 0
      %714 = vmatprep.subr.bf16.mxu0 0
      %715 = vmatpush1.bf16.msra.mxu0 0
      %716 = vmatprep.subr.bf16.mxu0 0
      %717 = vmatpush1.bf16.msra.mxu0 0
      %718 = vmatprep.subr.bf16.mxu0 0
      %719 = vmatpush1.bf16.msra.mxu0 0
      %720 = vmatprep.subr.bf16.mxu0 0
      %721 = vmatpush1.bf16.msra.mxu0 0
      %722 = vmatprep.subr.bf16.mxu0 0
      %723 = vmatpush1.bf16.msra.mxu0 0
      %724 = vmatprep.mubr.bf16.mxu0 0
      %725 = vmatmul.mubr.bf16.gmra.mrb[0].mxu0 %v678
      %v726 = vpop.f32.mrb[0].mxu0
      %v727 = vadd.f32 0.0, %v726
      %v728 = vpop.f32.mrb[0].mxu0
      %v729 = vpop.f32.mrb[0].mxu0
      %v730 = vadd.f32 0.0, %v729
      %v731 = vpop.f32.mrb[0].mxu0
      %732 = vmatprep.mubr.bf16.mxu0 0
      %733 = vmatmul.mubr.bf16.gmra.mrb[0].mxu0 %v681
      %v734 = vpop.f32.mrb[0].mxu0
      %v735 = vadd.f32 0.0, %v734
      %v736 = vpop.f32.mrb[0].mxu0
      %v737 = vpop.f32.mrb[0].mxu0
      %v738 = vadd.f32 0.0, %v737
      %v739 = vpop.f32.mrb[0].mxu0
      %740 = vmatprep.mubr.bf16.mxu0 0
      %741 = vmatmul.mubr.bf16.gmra.mrb[0].mxu0 %v684
      %v742 = vpop.f32.mrb[0].mxu0
      %v743 = vadd.f32 0.0, %v742
      %v744 = vpop.f32.mrb[0].mxu0
      %v745 = vpop.f32.mrb[0].mxu0
      %v746 = vadd.f32 0.0, %v745
      %v747 = vpop.f32.mrb[0].mxu0
      %748 = vmatprep.mubr.bf16.mxu0 0
      %749 = vmatmul.mubr.bf16.gmra.mrb[0].mxu0 %v687
      %v750 = vpop.f32.mrb[0].mxu0
      %v751 = vadd.f32 0.0, %v750
      %v752 = vpop.f32.mrb[0].mxu0
      %v753 = vpop.f32.mrb[0].mxu0
      %v754 = vadd.f32 0.0, %v753
      %v755 = vpop.f32.mrb[0].mxu0
      %756 = vdwg.mxu0
      %v757 = vadd.f32 %v611, %v727
      %v758 = vadd.f32 %v614, %v730
      %v759 = vadd.f32 %v619, %v735
      %v760 = vadd.f32 %v622, %v738
      %v761 = vadd.f32 %v627, %v743
      %v762 = vadd.f32 %v630, %v746
      %v763 = vadd.f32 %v635, %v751
      %v764 = vadd.f32 %v638, %v754
      %v765 = vld [vmem:[%s3] sm:$0x1]
      %v767 = vlaneseq
      %v768 = vshrl.u32 %v767, 7
      %v769 = vsub.s32 0, %v768
      %v770 = vrot.slane %v765, %v769
      %v772 = vmul.f32 %v757, %v770
      %v773 = vmul.f32 %v758, %v770
      %v774 = vmul.f32 %v759, %v770
      %v775 = vmul.f32 %v760, %v770
      %v776 = vmul.f32 %v761, %v770
      %v777 = vmul.f32 %v762, %v770
      %v778 = vmul.f32 %v763, %v770
      %v779 = vmul.f32 %v764, %v770
      %v780 = vld [vmem:[%s4] sm:$0x1]
      %v782 = vlaneseq
      %v783 = vshrl.u32 %v782, 7
      %v784 = vsub.s32 0, %v783
      %v785 = vrot.slane %v780, %v784
      %v787 = vadd.f32 %v772, %v785
      %v788 = vadd.f32 %v773, %v785
      %v789 = vadd.f32 %v774, %v785
      %v790 = vadd.f32 %v775, %v785
      %v791 = vadd.f32 %v776, %v785
      %v792 = vadd.f32 %v777, %v785
      %v793 = vadd.f32 %v778, %v785
      %v794 = vadd.f32 %v779, %v785
      %v795 = vmax.f32 %v787, 0.0
      %v796 = vmax.f32 %v788, 0.0
      %v797 = vmax.f32 %v789, 0.0
      %v798 = vmax.f32 %v790, 0.0
      %v799 = vmax.f32 %v791, 0.0
      %v800 = vmax.f32 %v792, 0.0
      %v801 = vmax.f32 %v793, 0.0
      %v802 = vmax.f32 %v794, 0.0
      %v803 = vlaneseq
      %v804 = vshrl.u32 %v803, 7
      %v805 = vadd.s32 %v804, 8
      %v806 = vadd.s32 %v804, 16
      %v807 = vadd.s32 %v804, 24
      %v808 = vadd.s32 %v804, 32
      %v809 = vadd.s32 %v804, 40
      %v810 = vadd.s32 %v804, 48
      %v811 = vadd.s32 %v804, 56
      %vm812 = vcmp.lt.s32.totalorder %v804, 0
      %v813 = vsub.s32 0, %v804
      %v814 = vsel %vm812, %v813, %v804
      %v815 = vshrl.u32 %v814, 3
      %v816 = vand.u32 %v814, 7
      %v817 = vsub.s32 0, %v816
      %v818 = vsel %vm812, %v817, %v816
      %vm819 = vcmp.lt.s32.totalorder %v805, 0
      %v820 = vsub.s32 0, %v805
      %v821 = vsel %vm819, %v820, %v805
      %v822 = vshrl.u32 %v821, 3
      %v823 = vand.u32 %v821, 7
      %v824 = vsub.s32 0, %v823
      %v825 = vsel %vm819, %v824, %v823
      %vm826 = vcmp.lt.s32.totalorder %v806, 0
      %v827 = vsub.s32 0, %v806
      %v828 = vsel %vm826, %v827, %v806
      %v829 = vshrl.u32 %v828, 3
      %v830 = vand.u32 %v828, 7
      %v831 = vsub.s32 0, %v830
      %v832 = vsel %vm826, %v831, %v830
      %vm833 = vcmp.lt.s32.totalorder %v807, 0
      %v834 = vsub.s32 0, %v807
      %v835 = vsel %vm833, %v834, %v807
      %v836 = vshrl.u32 %v835, 3
      %v837 = vand.u32 %v835, 7
      %v838 = vsub.s32 0, %v837
      %v839 = vsel %vm833, %v838, %v837
      %vm840 = vcmp.lt.s32.totalorder %v808, 0
      %v841 = vsub.s32 0, %v808
      %v842 = vsel %vm840, %v841, %v808
      %v843 = vshrl.u32 %v842, 3
      %v844 = vand.u32 %v842, 7
      %v845 = vsub.s32 0, %v844
      %v846 = vsel %vm840, %v845, %v844
      %vm847 = vcmp.lt.s32.totalorder %v809, 0
      %v848 = vsub.s32 0, %v809
      %v849 = vsel %vm847, %v848, %v809
      %v850 = vshrl.u32 %v849, 3
      %v851 = vand.u32 %v849, 7
      %v852 = vsub.s32 0, %v851
      %v853 = vsel %vm847, %v852, %v851
      %vm854 = vcmp.lt.s32.totalorder %v810, 0
      %v855 = vsub.s32 0, %v810
      %v856 = vsel %vm854, %v855, %v810
      %v857 = vshrl.u32 %v856, 3
      %v858 = vand.u32 %v856, 7
      %v859 = vsub.s32 0, %v858
      %v860 = vsel %vm854, %v859, %v858
      %vm861 = vcmp.lt.s32.totalorder %v811, 0
      %v862 = vsub.s32 0, %v811
      %v863 = vsel %vm861, %v862, %v811
      %v864 = vshrl.u32 %v863, 3
      %v865 = vand.u32 %v863, 7
      %v866 = vsub.s32 0, %v865
      %v867 = vsel %vm861, %v866, %v865
      %vm868 = vcmp.ne.s32.totalorder %v818, 0
      %vm869 = vcmp.ne.s32.totalorder %v825, 0
      %vm870 = vcmp.ne.s32.totalorder %v832, 0
      %vm871 = vcmp.ne.s32.totalorder %v839, 0
      %vm872 = vcmp.ne.s32.totalorder %v846, 0
      %vm873 = vcmp.ne.s32.totalorder %v853, 0
      %vm874 = vcmp.ne.s32.totalorder %v860, 0
      %vm875 = vcmp.ne.s32.totalorder %v867, 0
      %vm876 = vcmp.lt.s32.totalorder %v818, 0
      %vm877 = vcmp.lt.s32.totalorder %v825, 0
      %vm878 = vcmp.lt.s32.totalorder %v832, 0
      %vm879 = vcmp.lt.s32.totalorder %v839, 0
      %vm880 = vcmp.lt.s32.totalorder %v846, 0
      %vm881 = vcmp.lt.s32.totalorder %v853, 0
      %vm882 = vcmp.lt.s32.totalorder %v860, 0
      %vm883 = vcmp.lt.s32.totalorder %v867, 0
      %vm884 = vmand %vm876, %vm868
      %vm885 = vmand %vm877, %vm869
      %vm886 = vmand %vm878, %vm870
      %vm887 = vmand %vm879, %vm871
      %vm888 = vmand %vm880, %vm872
      %vm889 = vmand %vm881, %vm873
      %vm890 = vmand %vm882, %vm874
      %vm891 = vmand %vm883, %vm875
      %v892 = vadd.s32 %v818, 8
      %v893 = vadd.s32 %v825, 8
      %v894 = vadd.s32 %v832, 8
      %v895 = vadd.s32 %v839, 8
      %v896 = vadd.s32 %v846, 8
      %v897 = vadd.s32 %v853, 8
      %v898 = vadd.s32 %v860, 8
      %v899 = vadd.s32 %v867, 8
      %v900 = vsel %vm884, %v892, %v818
      %v901 = vsel %vm885, %v893, %v825
      %v902 = vsel %vm886, %v894, %v832
      %v903 = vsel %vm887, %v895, %v839
      %v904 = vsel %vm888, %v896, %v846
      %v905 = vsel %vm889, %v897, %v853
      %v906 = vsel %vm890, %v898, %v860
      %v907 = vsel %vm891, %v899, %v867
      %vm908 = vcmp.gt.s32.totalorder %v900, 0
      %vm909 = vcmp.gt.s32.totalorder %v901, 0
      %vm910 = vcmp.gt.s32.totalorder %v902, 0
      %vm911 = vcmp.gt.s32.totalorder %v903, 0
      %vm912 = vcmp.gt.s32.totalorder %v904, 0
      %vm913 = vcmp.gt.s32.totalorder %v905, 0
      %vm914 = vcmp.gt.s32.totalorder %v906, 0
      %vm915 = vcmp.gt.s32.totalorder %v907, 0
      %vm916 = vcmp.lt.s32.totalorder %v900, 7
      %vm917 = vcmp.lt.s32.totalorder %v901, 7
      %vm918 = vcmp.lt.s32.totalorder %v902, 7
      %vm919 = vcmp.lt.s32.totalorder %v903, 7
      %vm920 = vcmp.lt.s32.totalorder %v904, 7
      %vm921 = vcmp.lt.s32.totalorder %v905, 7
      %vm922 = vcmp.lt.s32.totalorder %v906, 7
      %vm923 = vcmp.lt.s32.totalorder %v907, 7
      %924 = vst [vmem:[#allocation2] sm:$0xf] 0
      %925 = vst [vmem:[#allocation2 + $0x8] sm:$0xf] 0
      %926 = vst [vmem:[#allocation2 + $0x10] sm:$0xf] 0
      %927 = vst [vmem:[#allocation2 + $0x60] sm:$0xf0] 0
      %928 = vst [vmem:[#allocation2 + $0x68] sm:$0xf0] 0
      %929 = vst [vmem:[#allocation2 + $0x70] sm:$0xf0] 0
      %v930 = vpack.c.bf16 %v796, %v795
      %v931 = vpack.c.bf16 %v798, %v797
      %v932 = vpack.c.bf16 %v800, %v799
      %v933 = vpack.c.bf16 %v802, %v801
      %vm938 = vcmask 1043456
      %v939 = vrot.slane %v930, 4
      %v940 = vrot.slane %v931, 4
      %v941 = vsel %vm938, %v939, %v940
      %v942 = vrot.slane %v932, 4
      %v943 = vsel %vm938, %v940, %v942
      %v944 = vrot.slane %v933, 4
      %v945 = vsel %vm938, %v942, %v944
      %951 = vst [vmem:[#allocation2 + $0x8] sm:$0xf0] %v939
      %952 = vst [vmem:[#allocation2 + $0x20] sm:$0xff] %v941
      %953 = vst [vmem:[#allocation2 + $0x38] sm:$0xff] %v943
      %954 = vst [vmem:[#allocation2 + $0x50] sm:$0xff] %v945
      %955 = vst [vmem:[#allocation2 + $0x68] sm:$0xf] %v944
      %v956 = vrot.slane %v795, 7
      %v957 = vrot.slane %v796, 7
      %v958 = vrot.slane %v797, 7
      %v959 = vrot.slane %v798, 7
      %v960 = vrot.slane %v799, 7
      %v961 = vrot.slane %v800, 7
      %v962 = vrot.slane %v801, 7
      %v963 = vrot.slane %v802, 7
      %vm964 = vcmp.lt.s32.totalorder %v804, 1
      %v965 = vsel %vm964, %v962, %v963
      %v966 = vsel %vm964, %v961, %v962
      %v967 = vsel %vm964, %v960, %v961
      %v968 = vsel %vm964, %v959, %v960
      %v969 = vsel %vm964, %v958, %v959
      %v970 = vsel %vm964, %v957, %v958
      %v971 = vsel %vm964, %v956, %v957
      %v972 = vsel %vm964, %v963, %v956
      %v973 = vsel %vm908, %v972, 0.0
      %v974 = vsel %vm909, %v971, 0.0
      %v975 = vsel %vm910, %v970, 0.0
      %v976 = vsel %vm911, %v969, 0.0
      %v977 = vsel %vm912, %v968, 0.0
      %v978 = vsel %vm913, %v967, 0.0
      %v979 = vsel %vm914, %v966, 0.0
      %v980 = vsel %vm915, %v965, 0.0
      %v981 = vpack.c.bf16 %v974, %v973
      %v982 = vpack.c.bf16 %v976, %v975
      %v983 = vpack.c.bf16 %v978, %v977
      %v984 = vpack.c.bf16 %v980, %v979
      %v989 = vrot.slane %v981, 4
      %v990 = vrot.slane %v982, 4
      %v991 = vsel %vm938, %v989, %v990
      %v992 = vrot.slane %v983, 4
      %v993 = vsel %vm938, %v990, %v992
      %v994 = vrot.slane %v984, 4
      %v995 = vsel %vm938, %v992, %v994
      %1001 = vst [vmem:[#allocation2] sm:$0xf0] %v989
      %1002 = vst [vmem:[#allocation2 + $0x18] sm:$0xff] %v991
      %1003 = vst [vmem:[#allocation2 + $0x30] sm:$0xff] %v993
      %1004 = vst [vmem:[#allocation2 + $0x48] sm:$0xff] %v995
      %1005 = vst [vmem:[#allocation2 + $0x60] sm:$0xf] %v994
      %v1006 = vrot.slane %v795, 1
      %v1007 = vrot.slane %v796, 1
      %v1008 = vrot.slane %v797, 1
      %v1009 = vrot.slane %v798, 1
      %v1010 = vrot.slane %v799, 1
      %v1011 = vrot.slane %v800, 1
      %v1012 = vrot.slane %v801, 1
      %v1013 = vrot.slane %v802, 1
      %vm1014 = vcmp.lt.s32.totalorder %v804, 7
      %v1015 = vsel %vm1014, %v1012, %v1013
      %v1016 = vsel %vm1014, %v1011, %v1012
      %v1017 = vsel %vm1014, %v1010, %v1011
      %v1018 = vsel %vm1014, %v1009, %v1010
      %v1019 = vsel %vm1014, %v1008, %v1009
      %v1020 = vsel %vm1014, %v1007, %v1008
      %v1021 = vsel %vm1014, %v1006, %v1007
      %v1022 = vsel %vm1014, %v1013, %v1006
      %v1023 = vsel %vm916, %v1021, 0.0
      %v1024 = vsel %vm917, %v1020, 0.0
      %v1025 = vsel %vm918, %v1019, 0.0
      %v1026 = vsel %vm919, %v1018, 0.0
      %v1027 = vsel %vm920, %v1017, 0.0
      %v1028 = vsel %vm921, %v1016, 0.0
      %v1029 = vsel %vm922, %v1015, 0.0
      %v1030 = vsel %vm923, %v1022, 0.0
      %v1031 = vpack.c.bf16 %v1024, %v1023
      %v1032 = vpack.c.bf16 %v1026, %v1025
      %v1033 = vpack.c.bf16 %v1028, %v1027
      %v1034 = vpack.c.bf16 %v1030, %v1029
      %v1039 = vrot.slane %v1031, 4
      %v1040 = vrot.slane %v1032, 4
      %v1041 = vsel %vm938, %v1039, %v1040
      %v1042 = vrot.slane %v1033, 4
      %v1043 = vsel %vm938, %v1040, %v1042
      %v1044 = vrot.slane %v1034, 4
      %v1045 = vsel %vm938, %v1042, %v1044
      %1051 = vst [vmem:[#allocation2 + $0x10] sm:$0xf0] %v1039
      %1052 = vst [vmem:[#allocation2 + $0x28] sm:$0xff] %v1041
      %1053 = vst [vmem:[#allocation2 + $0x40] sm:$0xff] %v1043
      %1054 = vst [vmem:[#allocation2 + $0x58] sm:$0xff] %v1045
      %1055 = vst [vmem:[#allocation2 + $0x70] sm:$0xf] %v1044
      %v1056 = vld [vmem:[#allocation2] sm:$0xff]
      %v1057 = vld [vmem:[#allocation2 + $0x8] sm:$0xff]
      %v1058 = vld [vmem:[#allocation2 + $0x10] sm:$0xff]
      %v1059 = vld [vmem:[#allocation2 + $0x18] sm:$0xff]
      %v1060 = vld [vmem:[#allocation2 + $0x20] sm:$0xff]
      %v1061 = vld [vmem:[#allocation2 + $0x28] sm:$0xff]
      %v1062 = vld [vmem:[#allocation2 + $0x30] sm:$0xff]
      %v1063 = vld [vmem:[#allocation2 + $0x38] sm:$0xff]
      %v1064 = vld [vmem:[#allocation2 + $0x40] sm:$0xff]
      %v1065 = vld [vmem:[#allocation2 + $0x48] sm:$0xff]
      %v1066 = vld [vmem:[#allocation2 + $0x50] sm:$0xff]
      %v1067 = vld [vmem:[#allocation2 + $0x58] sm:$0xff]
      %v1068 = vld [vmem:[%s5] sm:$0xf]
      %v1069 = vld [vmem:[%s5 + $0x4] sm:$0xf]
      %v1070 = vld [vmem:[%s5 + $0x8] sm:$0xf]
      %v1071 = vld [vmem:[%s5 + $0xc] sm:$0xf]
      %v1072 = vld [vmem:[%s5 + $0x10] sm:$0xf]
      %v1073 = vld [vmem:[%s5 + $0x14] sm:$0xf]
      %v1074 = vld [vmem:[%s5 + $0x18] sm:$0xf]
      %v1075 = vld [vmem:[%s5 + $0x1c] sm:$0xf]
      %v1076 = vld [vmem:[%s5 + $0x20] sm:$0xf]
      %v1077 = vld [vmem:[%s5 + $0x24] sm:$0xf]
      %v1078 = vld [vmem:[%s5 + $0x28] sm:$0xf]
      %v1079 = vld [vmem:[%s5 + $0x2c] sm:$0xf]
      %v1080 = vld [vmem:[%s5 + $0x30] sm:$0xf]
      %v1081 = vld [vmem:[%s5 + $0x34] sm:$0xf]
      %v1082 = vld [vmem:[%s5 + $0x38] sm:$0xf]
      %v1083 = vld [vmem:[%s5 + $0x3c] sm:$0xf]
      %v1084 = vld [vmem:[%s5 + $0x40] sm:$0xf]
      %v1085 = vld [vmem:[%s5 + $0x44] sm:$0xf]
      %v1086 = vld [vmem:[%s5 + $0x48] sm:$0xf]
      %v1087 = vld [vmem:[%s5 + $0x4c] sm:$0xf]
      %v1088 = vld [vmem:[%s5 + $0x50] sm:$0xf]
      %v1089 = vld [vmem:[%s5 + $0x54] sm:$0xf]
      %v1090 = vld [vmem:[%s5 + $0x58] sm:$0xf]
      %v1091 = vld [vmem:[%s5 + $0x5c] sm:$0xf]
      %v1092 = vld [vmem:[%s5 + $0x60] sm:$0xf]
      %v1093 = vld [vmem:[%s5 + $0x64] sm:$0xf]
      %v1094 = vld [vmem:[%s5 + $0x68] sm:$0xf]
      %v1095 = vld [vmem:[%s5 + $0x6c] sm:$0xf]
      %v1096 = vld [vmem:[%s5 + $0x70] sm:$0xf]
      %v1097 = vld [vmem:[%s5 + $0x74] sm:$0xf]
      %v1098 = vld [vmem:[%s5 + $0x78] sm:$0xf]
      %v1099 = vld [vmem:[%s5 + $0x7c] sm:$0xf]
      %v1100 = vld [vmem:[%s5 + $0x80] sm:$0xf]
      %v1101 = vld [vmem:[%s5 + $0x84] sm:$0xf]
      %v1102 = vld [vmem:[%s5 + $0x88] sm:$0xf]
      %v1103 = vld [vmem:[%s5 + $0x8c] sm:$0xf]
      %v1104 = vld [vmem:[%s5 + $0x90] sm:$0xf]
      %v1105 = vld [vmem:[%s5 + $0x94] sm:$0xf]
      %v1106 = vld [vmem:[%s5 + $0x98] sm:$0xf]
      %v1107 = vld [vmem:[%s5 + $0x9c] sm:$0xf]
      %v1108 = vld [vmem:[%s5 + $0xa0] sm:$0xf]
      %v1109 = vld [vmem:[%s5 + $0xa4] sm:$0xf]
      %v1110 = vld [vmem:[%s5 + $0xa8] sm:$0xf]
      %v1111 = vld [vmem:[%s5 + $0xac] sm:$0xf]
      %v1112 = vld [vmem:[%s5 + $0xb0] sm:$0xf]
      %v1113 = vld [vmem:[%s5 + $0xb4] sm:$0xf]
      %v1114 = vld [vmem:[%s5 + $0xb8] sm:$0xf]
      %v1115 = vld [vmem:[%s5 + $0xbc] sm:$0xf]
      %v1116 = vld [vmem:[#allocation2] sm:$0xf0]
      %v1117 = vld [vmem:[#allocation2 + $0x8] sm:$0xf0]
      %v1118 = vld [vmem:[#allocation2 + $0x10] sm:$0xf0]
      %v1119 = vld [vmem:[#allocation2 + $0x18] sm:$0xff]
      %v1120 = vld [vmem:[#allocation2 + $0x20] sm:$0xff]
      %v1121 = vld [vmem:[#allocation2 + $0x28] sm:$0xff]
      %v1122 = vld [vmem:[#allocation2 + $0x30] sm:$0xff]
      %v1123 = vld [vmem:[#allocation2 + $0x38] sm:$0xff]
      %v1124 = vld [vmem:[#allocation2 + $0x40] sm:$0xff]
      %v1125 = vld [vmem:[#allocation2 + $0x48] sm:$0xff]
      %v1126 = vld [vmem:[#allocation2 + $0x50] sm:$0xff]
      %v1127 = vld [vmem:[#allocation2 + $0x58] sm:$0xff]
      %v1128 = vld [vmem:[#allocation2 + $0x60] sm:$0xf]
      %v1129 = vld [vmem:[#allocation2 + $0x68] sm:$0xf]
      %v1130 = vld [vmem:[#allocation2 + $0x70] sm:$0xf]
      %s1131 = scalar_lea.vmem %s5, 192
      %v1132 = vld [vmem:[%s1131] sm:$0xf]
      %v1133 = vld [vmem:[%s1131 + $0x4] sm:$0xf]
      %v1134 = vld [vmem:[%s1131 + $0x8] sm:$0xf]
      %v1135 = vld [vmem:[%s1131 + $0xc] sm:$0xf]
      %v1136 = vld [vmem:[%s1131 + $0x10] sm:$0xf]
      %v1137 = vld [vmem:[%s1131 + $0x14] sm:$0xf]
      %v1138 = vld [vmem:[%s1131 + $0x18] sm:$0xf]
      %v1139 = vld [vmem:[%s1131 + $0x1c] sm:$0xf]
      %v1140 = vld [vmem:[%s1131 + $0x20] sm:$0xf]
      %v1141 = vld [vmem:[%s1131 + $0x24] sm:$0xf]
      %v1142 = vld [vmem:[%s1131 + $0x28] sm:$0xf]
      %v1143 = vld [vmem:[%s1131 + $0x2c] sm:$0xf]
      %v1144 = vld [vmem:[%s1131 + $0x30] sm:$0xf]
      %v1145 = vld [vmem:[%s1131 + $0x34] sm:$0xf]
      %v1146 = vld [vmem:[%s1131 + $0x38] sm:$0xf]
      %v1147 = vld [vmem:[%s1131 + $0x3c] sm:$0xf]
      %v1148 = vld [vmem:[%s1131 + $0x40] sm:$0xf]
      %v1149 = vld [vmem:[%s1131 + $0x44] sm:$0xf]
      %v1150 = vld [vmem:[%s1131 + $0x48] sm:$0xf]
      %v1151 = vld [vmem:[%s1131 + $0x4c] sm:$0xf]
      %v1152 = vld [vmem:[%s1131 + $0x50] sm:$0xf]
      %v1153 = vld [vmem:[%s1131 + $0x54] sm:$0xf]
      %v1154 = vld [vmem:[%s1131 + $0x58] sm:$0xf]
      %v1155 = vld [vmem:[%s1131 + $0x5c] sm:$0xf]
      %v1156 = vld [vmem:[%s1131 + $0x60] sm:$0xf]
      %v1157 = vld [vmem:[%s1131 + $0x64] sm:$0xf]
      %v1158 = vld [vmem:[%s1131 + $0x68] sm:$0xf]
      %v1159 = vld [vmem:[%s1131 + $0x6c] sm:$0xf]
      %v1160 = vld [vmem:[%s1131 + $0x70] sm:$0xf]
      %v1161 = vld [vmem:[%s1131 + $0x74] sm:$0xf]
      %v1162 = vld [vmem:[%s1131 + $0x78] sm:$0xf]
      %v1163 = vld [vmem:[%s1131 + $0x7c] sm:$0xf]
      %v1164 = vld [vmem:[%s1131 + $0x80] sm:$0xf]
      %v1165 = vld [vmem:[%s1131 + $0x84] sm:$0xf]
      %v1166 = vld [vmem:[%s1131 + $0x88] sm:$0xf]
      %v1167 = vld [vmem:[%s1131 + $0x8c] sm:$0xf]
      %v1168 = vld [vmem:[%s1131 + $0x90] sm:$0xf]
      %v1169 = vld [vmem:[%s1131 + $0x94] sm:$0xf]
      %v1170 = vld [vmem:[%s1131 + $0x98] sm:$0xf]
      %v1171 = vld [vmem:[%s1131 + $0x9c] sm:$0xf]
      %v1172 = vld [vmem:[%s1131 + $0xa0] sm:$0xf]
      %v1173 = vld [vmem:[%s1131 + $0xa4] sm:$0xf]
      %v1174 = vld [vmem:[%s1131 + $0xa8] sm:$0xf]
      %v1175 = vld [vmem:[%s1131 + $0xac] sm:$0xf]
      %v1176 = vld [vmem:[%s1131 + $0xb0] sm:$0xf]
      %v1177 = vld [vmem:[%s1131 + $0xb4] sm:$0xf]
      %v1178 = vld [vmem:[%s1131 + $0xb8] sm:$0xf]
      %v1179 = vld [vmem:[%s1131 + $0xbc] sm:$0xf]
      %v1195 = vrot.slane %v1116, 4
      %v1196 = vrot.slane %v1119, 4
      %v1197 = vsel %vm938, %v1195, %v1196
      %v1198 = vrot.slane %v1117, 4
      %v1199 = vrot.slane %v1120, 4
      %v1200 = vsel %vm938, %v1198, %v1199
      %v1201 = vrot.slane %v1118, 4
      %v1202 = vrot.slane %v1121, 4
      %v1203 = vsel %vm938, %v1201, %v1202
      %v1204 = vrot.slane %v1122, 4
      %v1205 = vsel %vm938, %v1196, %v1204
      %v1206 = vrot.slane %v1123, 4
      %v1207 = vsel %vm938, %v1199, %v1206
      %v1208 = vrot.slane %v1124, 4
      %v1209 = vsel %vm938, %v1202, %v1208
      %v1210 = vrot.slane %v1125, 4
      %v1211 = vsel %vm938, %v1204, %v1210
      %v1212 = vrot.slane %v1126, 4
      %v1213 = vsel %vm938, %v1206, %v1212
      %v1214 = vrot.slane %v1127, 4
      %v1215 = vsel %vm938, %v1208, %v1214
      %v1216 = vrot.slane %v1128, 4
      %v1217 = vsel %vm938, %v1210, %v1216
      %v1218 = vrot.slane %v1129, 4
      %v1219 = vsel %vm938, %v1212, %v1218
      %v1220 = vrot.slane %v1130, 4
      %v1221 = vsel %vm938, %v1214, %v1220
      %v1282 = vunpack.c.l.b16 %v1132
      %v1283 = vunpack.c.l.b16 %v1133
      %v1284 = vunpack.c.l.b16 %v1134
      %v1285 = vunpack.c.l.b16 %v1135
      %v1286 = vunpack.c.l.b16 %v1136
      %v1287 = vunpack.c.l.b16 %v1137
      %v1288 = vunpack.c.l.b16 %v1138
      %v1289 = vunpack.c.l.b16 %v1139
      %v1290 = vunpack.c.l.b16 %v1140
      %v1291 = vunpack.c.l.b16 %v1141
      %v1292 = vunpack.c.l.b16 %v1142
      %v1293 = vunpack.c.l.b16 %v1143
      %v1294 = vunpack.c.l.b16 %v1144
      %v1295 = vunpack.c.l.b16 %v1145
      %v1296 = vunpack.c.l.b16 %v1146
      %v1297 = vunpack.c.l.b16 %v1147
      %v1298 = vunpack.c.l.b16 %v1148
      %v1299 = vunpack.c.l.b16 %v1149
      %v1300 = vunpack.c.l.b16 %v1150
      %v1301 = vunpack.c.l.b16 %v1151
      %v1302 = vunpack.c.l.b16 %v1152
      %v1303 = vunpack.c.l.b16 %v1153
      %v1304 = vunpack.c.l.b16 %v1154
      %v1305 = vunpack.c.l.b16 %v1155
      %v1306 = vunpack.c.l.b16 %v1156
      %v1307 = vunpack.c.l.b16 %v1157
      %v1308 = vunpack.c.l.b16 %v1158
      %v1309 = vunpack.c.l.b16 %v1159
      %v1310 = vunpack.c.l.b16 %v1160
      %v1311 = vunpack.c.l.b16 %v1161
      %v1312 = vunpack.c.l.b16 %v1162
      %v1313 = vunpack.c.l.b16 %v1163
      %v1314 = vunpack.c.l.b16 %v1164
      %v1315 = vunpack.c.l.b16 %v1165
      %v1316 = vunpack.c.l.b16 %v1166
      %v1317 = vunpack.c.l.b16 %v1167
      %v1318 = vunpack.c.l.b16 %v1168
      %v1319 = vunpack.c.l.b16 %v1169
      %v1320 = vunpack.c.l.b16 %v1170
      %v1321 = vunpack.c.l.b16 %v1171
      %v1322 = vunpack.c.l.b16 %v1172
      %v1323 = vunpack.c.l.b16 %v1173
      %v1324 = vunpack.c.l.b16 %v1174
      %v1325 = vunpack.c.l.b16 %v1175
      %v1326 = vunpack.c.l.b16 %v1176
      %v1327 = vunpack.c.l.b16 %v1177
      %v1328 = vunpack.c.l.b16 %v1178
      %v1329 = vunpack.c.l.b16 %v1179
      %v1330 = vpack.c.b16 %v1283, %v1282
      %v1331 = vpack.c.b16 %v1285, %v1284
      %v1332 = vpack.c.b16 %v1287, %v1286
      %v1333 = vpack.c.b16 %v1289, %v1288
      %v1334 = vpack.c.b16 %v1291, %v1290
      %v1335 = vpack.c.b16 %v1293, %v1292
      %v1336 = vpack.c.b16 %v1295, %v1294
      %v1337 = vpack.c.b16 %v1297, %v1296
      %v1338 = vpack.c.b16 %v1299, %v1298
      %v1339 = vpack.c.b16 %v1301, %v1300
      %v1340 = vpack.c.b16 %v1303, %v1302
      %v1341 = vpack.c.b16 %v1305, %v1304
      %v1342 = vpack.c.b16 %v1307, %v1306
      %v1343 = vpack.c.b16 %v1309, %v1308
      %v1344 = vpack.c.b16 %v1311, %v1310
      %v1345 = vpack.c.b16 %v1313, %v1312
      %v1346 = vpack.c.b16 %v1315, %v1314
      %v1347 = vpack.c.b16 %v1317, %v1316
      %v1348 = vpack.c.b16 %v1319, %v1318
      %v1349 = vpack.c.b16 %v1321, %v1320
      %v1350 = vpack.c.b16 %v1323, %v1322
      %v1351 = vpack.c.b16 %v1325, %v1324
      %v1352 = vpack.c.b16 %v1327, %v1326
      %v1353 = vpack.c.b16 %v1329, %v1328
      %1378 = vmatprep.subr.bf16.mxu0 0
      %1379 = vmatpush1.bf16.msra.mxu0 %v1330
      %1380 = vmatprep.subr.bf16.mxu0 0
      %1381 = vmatpush1.bf16.msra.mxu0 %v1331
      %1382 = vmatprep.subr.bf16.mxu0 0
      %1383 = vmatpush1.bf16.msra.mxu0 %v1332
      %1384 = vmatprep.subr.bf16.mxu0 0
      %1385 = vmatpush1.bf16.msra.mxu0 %v1333
      %1386 = vmatprep.subr.bf16.mxu0 0
      %1387 = vmatpush1.bf16.msra.mxu0 %v1334
      %1388 = vmatprep.subr.bf16.mxu0 0
      %1389 = vmatpush1.bf16.msra.mxu0 %v1335
      %1390 = vmatprep.subr.bf16.mxu0 0
      %1391 = vmatpush1.bf16.msra.mxu0 %v1336
      %1392 = vmatprep.subr.bf16.mxu0 0
      %1393 = vmatpush1.bf16.msra.mxu0 %v1337
      %1394 = vmatprep.subr.bf16.mxu0 0
      %1395 = vmatpush1.bf16.msra.mxu0 %v1338
      %1396 = vmatprep.subr.bf16.mxu0 0
      %1397 = vmatpush1.bf16.msra.mxu0 %v1339
      %1398 = vmatprep.subr.bf16.mxu0 0
      %1399 = vmatpush1.bf16.msra.mxu0 %v1340
      %1400 = vmatprep.subr.bf16.mxu0 0
      %1401 = vmatpush1.bf16.msra.mxu0 %v1341
      %1402 = vmatprep.subr.bf16.mxu0 0
      %1403 = vmatpush1.bf16.msra.mxu0 %v1342
      %1404 = vmatprep.subr.bf16.mxu0 0
      %1405 = vmatpush1.bf16.msra.mxu0 %v1343
      %1406 = vmatprep.subr.bf16.mxu0 0
      %1407 = vmatpush1.bf16.msra.mxu0 %v1344
      %1408 = vmatprep.subr.bf16.mxu0 0
      %1409 = vmatpush1.bf16.msra.mxu0 %v1345
      %1410 = vmatprep.mubr.bf16.mxu0 %v1200
      %1411 = vmatmul.mubr.bf16.gmra.mrb[0].mxu0 %v1197
      %v1412 = vpop.f32.mrb[0].mxu0
      %v1413 = vadd.f32 0.0, %v1412
      %v1414 = vpop.f32.mrb[0].mxu0
      %v1415 = vpop.f32.mrb[0].mxu0
      %v1416 = vadd.f32 0.0, %v1415
      %v1417 = vpop.f32.mrb[0].mxu0
      %1418 = vmatprep.mubr.bf16.mxu0 %v1207
      %1419 = vmatmul.mubr.bf16.gmra.mrb[0].mxu0 %v1205
      %v1420 = vpop.f32.mrb[0].mxu0
      %v1421 = vadd.f32 0.0, %v1420
      %v1422 = vpop.f32.mrb[0].mxu0
      %v1423 = vpop.f32.mrb[0].mxu0
      %v1424 = vadd.f32 0.0, %v1423
      %v1425 = vpop.f32.mrb[0].mxu0
      %1426 = vmatprep.mubr.bf16.mxu0 %v1213
      %1427 = vmatmul.mubr.bf16.gmra.mrb[0].mxu0 %v1211
      %v1428 = vpop.f32.mrb[0].mxu0
      %v1429 = vadd.f32 0.0, %v1428
      %v1430 = vpop.f32.mrb[0].mxu0
      %v1431 = vpop.f32.mrb[0].mxu0
      %v1432 = vadd.f32 0.0, %v1431
      %v1433 = vpop.f32.mrb[0].mxu0
      %1434 = vmatprep.mubr.bf16.mxu0 %v1219
      %1435 = vmatmul.mubr.bf16.gmra.mrb[0].mxu0 %v1217
      %v1436 = vpop.f32.mrb[0].mxu0
      %v1437 = vadd.f32 0.0, %v1436
      %v1438 = vpop.f32.mrb[0].mxu0
      %v1439 = vpop.f32.mrb[0].mxu0
      %v1440 = vadd.f32 0.0, %v1439
      %v1441 = vpop.f32.mrb[0].mxu0
      %1442 = vdwg.mxu0
      %1443 = vmatprep.subr.bf16.mxu0 0
      %1444 = vmatpush1.bf16.msra.mxu0 %v1346
      %1445 = vmatprep.subr.bf16.mxu0 0
      %1446 = vmatpush1.bf16.msra.mxu0 %v1347
      %1447 = vmatprep.subr.bf16.mxu0 0
      %1448 = vmatpush1.bf16.msra.mxu0 %v1348
      %1449 = vmatprep.subr.bf16.mxu0 0
      %1450 = vmatpush1.bf16.msra.mxu0 %v1349
      %1451 = vmatprep.subr.bf16.mxu0 0
      %1452 = vmatpush1.bf16.msra.mxu0 %v1350
      %1453 = vmatprep.subr.bf16.mxu0 0
      %1454 = vmatpush1.bf16.msra.mxu0 %v1351
      %1455 = vmatprep.subr.bf16.mxu0 0
      %1456 = vmatpush1.bf16.msra.mxu0 %v1352
      %1457 = vmatprep.subr.bf16.mxu0 0
      %1458 = vmatpush1.bf16.msra.mxu0 %v1353
      %1459 = vmatprep.subr.bf16.mxu0 0
      %1460 = vmatpush1.bf16.msra.mxu0 0
      %1461 = vmatprep.subr.bf16.mxu0 0
      %1462 = vmatpush1.bf16.msra.mxu0 0
      %1463 = vmatprep.subr.bf16.mxu0 0
      %1464 = vmatpush1.bf16.msra.mxu0 0
      %1465 = vmatprep.subr.bf16.mxu0 0
      %1466 = vmatpush1.bf16.msra.mxu0 0
      %1467 = vmatprep.subr.bf16.mxu0 0
      %1468 = vmatpush1.bf16.msra.mxu0 0
      %1469 = vmatprep.subr.bf16.mxu0 0
      %1470 = vmatpush1.bf16.msra.mxu0 0
      %1471 = vmatprep.subr.bf16.mxu0 0
      %1472 = vmatpush1.bf16.msra.mxu0 0
      %1473 = vmatprep.subr.bf16.mxu0 0
      %1474 = vmatpush1.bf16.msra.mxu0 0
      %1475 = vmatprep.mubr.bf16.mxu0 0
      %1476 = vmatmul.mubr.bf16.gmra.mrb[0].mxu0 %v1203
      %v1477 = vpop.f32.mrb[0].mxu0
      %v1478 = vadd.f32 %v1413, %v1477
      %v1479 = vpop.f32.mrb[0].mxu0
      %v1480 = vpop.f32.mrb[0].mxu0
      %v1481 = vadd.f32 %v1416, %v1480
      %v1482 = vpop.f32.mrb[0].mxu0
      %1483 = vmatprep.mubr.bf16.mxu0 0
      %1484 = vmatmul.mubr.bf16.gmra.mrb[0].mxu0 %v1209
      %v1485 = vpop.f32.mrb[0].mxu0
      %v1486 = vadd.f32 %v1421, %v1485
      %v1487 = vpop.f32.mrb[0].mxu0
      %v1488 = vpop.f32.mrb[0].mxu0
      %v1489 = vadd.f32 %v1424, %v1488
      %v1490 = vpop.f32.mrb[0].mxu0
      %1491 = vmatprep.mubr.bf16.mxu0 0
      %1492 = vmatmul.mubr.bf16.gmra.mrb[0].mxu0 %v1215
      %v1493 = vpop.f32.mrb[0].mxu0
      %v1494 = vadd.f32 %v1429, %v1493
      %v1495 = vpop.f32.mrb[0].mxu0
      %v1496 = vpop.f32.mrb[0].mxu0
      %v1497 = vadd.f32 %v1432, %v1496
      %v1498 = vpop.f32.mrb[0].mxu0
      %1499 = vmatprep.mubr.bf16.mxu0 0
      %1500 = vmatmul.mubr.bf16.gmra.mrb[0].mxu0 %v1221
      %v1501 = vpop.f32.mrb[0].mxu0
      %v1502 = vadd.f32 %v1437, %v1501
      %v1503 = vpop.f32.mrb[0].mxu0
      %v1504 = vpop.f32.mrb[0].mxu0
      %v1505 = vadd.f32 %v1440, %v1504
      %v1506 = vpop.f32.mrb[0].mxu0
      %1507 = vdwg.mxu0
      %v1556 = vunpack.c.l.b16 %v1068
      %v1557 = vunpack.c.l.b16 %v1069
      %v1558 = vunpack.c.l.b16 %v1070
      %v1559 = vunpack.c.l.b16 %v1071
      %v1560 = vunpack.c.l.b16 %v1072
      %v1561 = vunpack.c.l.b16 %v1073
      %v1562 = vunpack.c.l.b16 %v1074
      %v1563 = vunpack.c.l.b16 %v1075
      %v1564 = vunpack.c.l.b16 %v1076
      %v1565 = vunpack.c.l.b16 %v1077
      %v1566 = vunpack.c.l.b16 %v1078
      %v1567 = vunpack.c.l.b16 %v1079
      %v1568 = vunpack.c.l.b16 %v1080
      %v1569 = vunpack.c.l.b16 %v1081
      %v1570 = vunpack.c.l.b16 %v1082
      %v1571 = vunpack.c.l.b16 %v1083
      %v1572 = vunpack.c.l.b16 %v1084
      %v1573 = vunpack.c.l.b16 %v1085
      %v1574 = vunpack.c.l.b16 %v1086
      %v1575 = vunpack.c.l.b16 %v1087
      %v1576 = vunpack.c.l.b16 %v1088
      %v1577 = vunpack.c.l.b16 %v1089
      %v1578 = vunpack.c.l.b16 %v1090
      %v1579 = vunpack.c.l.b16 %v1091
      %v1580 = vunpack.c.l.b16 %v1092
      %v1581 = vunpack.c.l.b16 %v1093
      %v1582 = vunpack.c.l.b16 %v1094
      %v1583 = vunpack.c.l.b16 %v1095
      %v1584 = vunpack.c.l.b16 %v1096
      %v1585 = vunpack.c.l.b16 %v1097
      %v1586 = vunpack.c.l.b16 %v1098
      %v1587 = vunpack.c.l.b16 %v1099
      %v1588 = vunpack.c.l.b16 %v1100
      %v1589 = vunpack.c.l.b16 %v1101
      %v1590 = vunpack.c.l.b16 %v1102
      %v1591 = vunpack.c.l.b16 %v1103
      %v1592 = vunpack.c.l.b16 %v1104
      %v1593 = vunpack.c.l.b16 %v1105
      %v1594 = vunpack.c.l.b16 %v1106
      %v1595 = vunpack.c.l.b16 %v1107
      %v1596 = vunpack.c.l.b16 %v1108
      %v1597 = vunpack.c.l.b16 %v1109
      %v1598 = vunpack.c.l.b16 %v1110
      %v1599 = vunpack.c.l.b16 %v1111
      %v1600 = vunpack.c.l.b16 %v1112
      %v1601 = vunpack.c.l.b16 %v1113
      %v1602 = vunpack.c.l.b16 %v1114
      %v1603 = vunpack.c.l.b16 %v1115
      %v1604 = vpack.c.b16 %v1557, %v1556
      %v1605 = vpack.c.b16 %v1559, %v1558
      %v1606 = vpack.c.b16 %v1561, %v1560
      %v1607 = vpack.c.b16 %v1563, %v1562
      %v1608 = vpack.c.b16 %v1565, %v1564
      %v1609 = vpack.c.b16 %v1567, %v1566
      %v1610 = vpack.c.b16 %v1569, %v1568
      %v1611 = vpack.c.b16 %v1571, %v1570
      %v1612 = vpack.c.b16 %v1573, %v1572
      %v1613 = vpack.c.b16 %v1575, %v1574
      %v1614 = vpack.c.b16 %v1577, %v1576
      %v1615 = vpack.c.b16 %v1579, %v1578
      %v1616 = vpack.c.b16 %v1581, %v1580
      %v1617 = vpack.c.b16 %v1583, %v1582
      %v1618 = vpack.c.b16 %v1585, %v1584
      %v1619 = vpack.c.b16 %v1587, %v1586
      %v1620 = vpack.c.b16 %v1589, %v1588
      %v1621 = vpack.c.b16 %v1591, %v1590
      %v1622 = vpack.c.b16 %v1593, %v1592
      %v1623 = vpack.c.b16 %v1595, %v1594
      %v1624 = vpack.c.b16 %v1597, %v1596
      %v1625 = vpack.c.b16 %v1599, %v1598
      %v1626 = vpack.c.b16 %v1601, %v1600
      %v1627 = vpack.c.b16 %v1603, %v1602
      %1652 = vmatprep.subr.bf16.mxu0 0
      %1653 = vmatpush1.bf16.msra.mxu0 %v1604
      %1654 = vmatprep.subr.bf16.mxu0 0
      %1655 = vmatpush1.bf16.msra.mxu0 %v1605
      %1656 = vmatprep.subr.bf16.mxu0 0
      %1657 = vmatpush1.bf16.msra.mxu0 %v1606
      %1658 = vmatprep.subr.bf16.mxu0 0
      %1659 = vmatpush1.bf16.msra.mxu0 %v1607
      %1660 = vmatprep.subr.bf16.mxu0 0
      %1661 = vmatpush1.bf16.msra.mxu0 %v1608
      %1662 = vmatprep.subr.bf16.mxu0 0
      %1663 = vmatpush1.bf16.msra.mxu0 %v1609
      %1664 = vmatprep.subr.bf16.mxu0 0
      %1665 = vmatpush1.bf16.msra.mxu0 %v1610
      %1666 = vmatprep.subr.bf16.mxu0 0
      %1667 = vmatpush1.bf16.msra.mxu0 %v1611
      %1668 = vmatprep.subr.bf16.mxu0 0
      %1669 = vmatpush1.bf16.msra.mxu0 %v1612
      %1670 = vmatprep.subr.bf16.mxu0 0
      %1671 = vmatpush1.bf16.msra.mxu0 %v1613
      %1672 = vmatprep.subr.bf16.mxu0 0
      %1673 = vmatpush1.bf16.msra.mxu0 %v1614
      %1674 = vmatprep.subr.bf16.mxu0 0
      %1675 = vmatpush1.bf16.msra.mxu0 %v1615
      %1676 = vmatprep.subr.bf16.mxu0 0
      %1677 = vmatpush1.bf16.msra.mxu0 %v1616
      %1678 = vmatprep.subr.bf16.mxu0 0
      %1679 = vmatpush1.bf16.msra.mxu0 %v1617
      %1680 = vmatprep.subr.bf16.mxu0 0
      %1681 = vmatpush1.bf16.msra.mxu0 %v1618
      %1682 = vmatprep.subr.bf16.mxu0 0
      %1683 = vmatpush1.bf16.msra.mxu0 %v1619
      %1684 = vmatprep.mubr.bf16.mxu0 %v1057
      %1685 = vmatmul.mubr.bf16.gmra.mrb[0].mxu0 %v1056
      %v1686 = vpop.f32.mrb[0].mxu0
      %v1687 = vadd.f32 %v1478, %v1686
      %v1688 = vpop.f32.mrb[0].mxu0
      %v1689 = vpop.f32.mrb[0].mxu0
      %v1690 = vadd.f32 %v1481, %v1689
      %v1691 = vpop.f32.mrb[0].mxu0
      %1692 = vmatprep.mubr.bf16.mxu0 %v1060
      %1693 = vmatmul.mubr.bf16.gmra.mrb[0].mxu0 %v1059
      %v1694 = vpop.f32.mrb[0].mxu0
      %v1695 = vadd.f32 %v1486, %v1694
      %v1696 = vpop.f32.mrb[0].mxu0
      %v1697 = vpop.f32.mrb[0].mxu0
      %v1698 = vadd.f32 %v1489, %v1697
      %v1699 = vpop.f32.mrb[0].mxu0
      %1700 = vmatprep.mubr.bf16.mxu0 %v1063
      %1701 = vmatmul.mubr.bf16.gmra.mrb[0].mxu0 %v1062
      %v1702 = vpop.f32.mrb[0].mxu0
      %v1703 = vadd.f32 %v1494, %v1702
      %v1704 = vpop.f32.mrb[0].mxu0
      %v1705 = vpop.f32.mrb[0].mxu0
      %v1706 = vadd.f32 %v1497, %v1705
      %v1707 = vpop.f32.mrb[0].mxu0
      %1708 = vmatprep.mubr.bf16.mxu0 %v1066
      %1709 = vmatmul.mubr.bf16.gmra.mrb[0].mxu0 %v1065
      %v1710 = vpop.f32.mrb[0].mxu0
      %v1711 = vadd.f32 %v1502, %v1710
      %v1712 = vpop.f32.mrb[0].mxu0
      %v1713 = vpop.f32.mrb[0].mxu0
      %v1714 = vadd.f32 %v1505, %v1713
      %v1715 = vpop.f32.mrb[0].mxu0
      %1716 = vdwg.mxu0
      %1717 = vmatprep.subr.bf16.mxu0 0
      %1718 = vmatpush1.bf16.msra.mxu0 %v1620
      %1719 = vmatprep.subr.bf16.mxu0 0
      %1720 = vmatpush1.bf16.msra.mxu0 %v1621
      %1721 = vmatprep.subr.bf16.mxu0 0
      %1722 = vmatpush1.bf16.msra.mxu0 %v1622
      %1723 = vmatprep.subr.bf16.mxu0 0
      %1724 = vmatpush1.bf16.msra.mxu0 %v1623
      %1725 = vmatprep.subr.bf16.mxu0 0
      %1726 = vmatpush1.bf16.msra.mxu0 %v1624
      %1727 = vmatprep.subr.bf16.mxu0 0
      %1728 = vmatpush1.bf16.msra.mxu0 %v1625
      %1729 = vmatprep.subr.bf16.mxu0 0
      %1730 = vmatpush1.bf16.msra.mxu0 %v1626
      %1731 = vmatprep.subr.bf16.mxu0 0
      %1732 = vmatpush1.bf16.msra.mxu0 %v1627
      %1733 = vmatprep.subr.bf16.mxu0 0
      %1734 = vmatpush1.bf16.msra.mxu0 0
      %1735 = vmatprep.subr.bf16.mxu0 0
      %1736 = vmatpush1.bf16.msra.mxu0 0
      %1737 = vmatprep.subr.bf16.mxu0 0
      %1738 = vmatpush1.bf16.msra.mxu0 0
      %1739 = vmatprep.subr.bf16.mxu0 0
      %1740 = vmatpush1.bf16.msra.mxu0 0
      %1741 = vmatprep.subr.bf16.mxu0 0
      %1742 = vmatpush1.bf16.msra.mxu0 0
      %1743 = vmatprep.subr.bf16.mxu0 0
      %1744 = vmatpush1.bf16.msra.mxu0 0
      %1745 = vmatprep.subr.bf16.mxu0 0
      %1746 = vmatpush1.bf16.msra.mxu0 0
      %1747 = vmatprep.subr.bf16.mxu0 0
      %1748 = vmatpush1.bf16.msra.mxu0 0
      %1749 = vmatprep.mubr.bf16.mxu0 0
      %1750 = vmatmul.mubr.bf16.gmra.mrb[0].mxu0 %v1058
      %v1751 = vpop.f32.mrb[0].mxu0
      %v1752 = vadd.f32 %v1687, %v1751
      %v1753 = vpop.f32.mrb[0].mxu0
      %v1754 = vpop.f32.mrb[0].mxu0
      %v1755 = vadd.f32 %v1690, %v1754
      %v1756 = vpop.f32.mrb[0].mxu0
      %1757 = vmatprep.mubr.bf16.mxu0 0
      %1758 = vmatmul.mubr.bf16.gmra.mrb[0].mxu0 %v1061
      %v1759 = vpop.f32.mrb[0].mxu0
      %v1760 = vadd.f32 %v1695, %v1759
      %v1761 = vpop.f32.mrb[0].mxu0
      %v1762 = vpop.f32.mrb[0].mxu0
      %v1763 = vadd.f32 %v1698, %v1762
      %v1764 = vpop.f32.mrb[0].mxu0
      %1765 = vmatprep.mubr.bf16.mxu0 0
      %1766 = vmatmul.mubr.bf16.gmra.mrb[0].mxu0 %v1064
      %v1767 = vpop.f32.mrb[0].mxu0
      %v1768 = vadd.f32 %v1703, %v1767
      %v1769 = vpop.f32.mrb[0].mxu0
      %v1770 = vpop.f32.mrb[0].mxu0
      %v1771 = vadd.f32 %v1706, %v1770
      %v1772 = vpop.f32.mrb[0].mxu0
      %1773 = vmatprep.mubr.bf16.mxu0 0
      %1774 = vmatmul.mubr.bf16.gmra.mrb[0].mxu0 %v1067
      %v1775 = vpop.f32.mrb[0].mxu0
      %v1776 = vadd.f32 %v1711, %v1775
      %v1777 = vpop.f32.mrb[0].mxu0
      %v1778 = vpop.f32.mrb[0].mxu0
      %v1779 = vadd.f32 %v1714, %v1778
      %v1780 = vpop.f32.mrb[0].mxu0
      %1781 = vdwg.mxu0
      %v1782 = vld [vmem:[#allocation2 + $0x60] sm:$0xff]
      %v1783 = vld [vmem:[#allocation2 + $0x68] sm:$0xff]
      %v1784 = vld [vmem:[#allocation2 + $0x70] sm:$0xff]
      %s1785 = scalar_lea.vmem %s5, 384
      %v1786 = vld [vmem:[%s1785] sm:$0xf]
      %v1787 = vld [vmem:[%s1785 + $0x4] sm:$0xf]
      %v1788 = vld [vmem:[%s1785 + $0x8] sm:$0xf]
      %v1789 = vld [vmem:[%s1785 + $0xc] sm:$0xf]
      %v1790 = vld [vmem:[%s1785 + $0x10] sm:$0xf]
      %v1791 = vld [vmem:[%s1785 + $0x14] sm:$0xf]
      %v1792 = vld [vmem:[%s1785 + $0x18] sm:$0xf]
      %v1793 = vld [vmem:[%s1785 + $0x1c] sm:$0xf]
      %v1794 = vld [vmem:[%s1785 + $0x20] sm:$0xf]
      %v1795 = vld [vmem:[%s1785 + $0x24] sm:$0xf]
      %v1796 = vld [vmem:[%s1785 + $0x28] sm:$0xf]
      %v1797 = vld [vmem:[%s1785 + $0x2c] sm:$0xf]
      %v1798 = vld [vmem:[%s1785 + $0x30] sm:$0xf]
      %v1799 = vld [vmem:[%s1785 + $0x34] sm:$0xf]
      %v1800 = vld [vmem:[%s1785 + $0x38] sm:$0xf]
      %v1801 = vld [vmem:[%s1785 + $0x3c] sm:$0xf]
      %v1802 = vld [vmem:[%s1785 + $0x40] sm:$0xf]
      %v1803 = vld [vmem:[%s1785 + $0x44] sm:$0xf]
      %v1804 = vld [vmem:[%s1785 + $0x48] sm:$0xf]
      %v1805 = vld [vmem:[%s1785 + $0x4c] sm:$0xf]
      %v1806 = vld [vmem:[%s1785 + $0x50] sm:$0xf]
      %v1807 = vld [vmem:[%s1785 + $0x54] sm:$0xf]
      %v1808 = vld [vmem:[%s1785 + $0x58] sm:$0xf]
      %v1809 = vld [vmem:[%s1785 + $0x5c] sm:$0xf]
      %v1810 = vld [vmem:[%s1785 + $0x60] sm:$0xf]
      %v1811 = vld [vmem:[%s1785 + $0x64] sm:$0xf]
      %v1812 = vld [vmem:[%s1785 + $0x68] sm:$0xf]
      %v1813 = vld [vmem:[%s1785 + $0x6c] sm:$0xf]
      %v1814 = vld [vmem:[%s1785 + $0x70] sm:$0xf]
      %v1815 = vld [vmem:[%s1785 + $0x74] sm:$0xf]
      %v1816 = vld [vmem:[%s1785 + $0x78] sm:$0xf]
      %v1817 = vld [vmem:[%s1785 + $0x7c] sm:$0xf]
      %v1818 = vld [vmem:[%s1785 + $0x80] sm:$0xf]
      %v1819 = vld [vmem:[%s1785 + $0x84] sm:$0xf]
      %v1820 = vld [vmem:[%s1785 + $0x88] sm:$0xf]
      %v1821 = vld [vmem:[%s1785 + $0x8c] sm:$0xf]
      %v1822 = vld [vmem:[%s1785 + $0x90] sm:$0xf]
      %v1823 = vld [vmem:[%s1785 + $0x94] sm:$0xf]
      %v1824 = vld [vmem:[%s1785 + $0x98] sm:$0xf]
      %v1825 = vld [vmem:[%s1785 + $0x9c] sm:$0xf]
      %v1826 = vld [vmem:[%s1785 + $0xa0] sm:$0xf]
      %v1827 = vld [vmem:[%s1785 + $0xa4] sm:$0xf]
      %v1828 = vld [vmem:[%s1785 + $0xa8] sm:$0xf]
      %v1829 = vld [vmem:[%s1785 + $0xac] sm:$0xf]
      %v1830 = vld [vmem:[%s1785 + $0xb0] sm:$0xf]
      %v1831 = vld [vmem:[%s1785 + $0xb4] sm:$0xf]
      %v1832 = vld [vmem:[%s1785 + $0xb8] sm:$0xf]
      %v1833 = vld [vmem:[%s1785 + $0xbc] sm:$0xf]
      %v1882 = vunpack.c.l.b16 %v1786
      %v1883 = vunpack.c.l.b16 %v1787
      %v1884 = vunpack.c.l.b16 %v1788
      %v1885 = vunpack.c.l.b16 %v1789
      %v1886 = vunpack.c.l.b16 %v1790
      %v1887 = vunpack.c.l.b16 %v1791
      %v1888 = vunpack.c.l.b16 %v1792
      %v1889 = vunpack.c.l.b16 %v1793
      %v1890 = vunpack.c.l.b16 %v1794
      %v1891 = vunpack.c.l.b16 %v1795
      %v1892 = vunpack.c.l.b16 %v1796
      %v1893 = vunpack.c.l.b16 %v1797
      %v1894 = vunpack.c.l.b16 %v1798
      %v1895 = vunpack.c.l.b16 %v1799
      %v1896 = vunpack.c.l.b16 %v1800
      %v1897 = vunpack.c.l.b16 %v1801
      %v1898 = vunpack.c.l.b16 %v1802
      %v1899 = vunpack.c.l.b16 %v1803
      %v1900 = vunpack.c.l.b16 %v1804
      %v1901 = vunpack.c.l.b16 %v1805
      %v1902 = vunpack.c.l.b16 %v1806
      %v1903 = vunpack.c.l.b16 %v1807
      %v1904 = vunpack.c.l.b16 %v1808
      %v1905 = vunpack.c.l.b16 %v1809
      %v1906 = vunpack.c.l.b16 %v1810
      %v1907 = vunpack.c.l.b16 %v1811
      %v1908 = vunpack.c.l.b16 %v1812
      %v1909 = vunpack.c.l.b16 %v1813
      %v1910 = vunpack.c.l.b16 %v1814
      %v1911 = vunpack.c.l.b16 %v1815
      %v1912 = vunpack.c.l.b16 %v1816
      %v1913 = vunpack.c.l.b16 %v1817
      %v1914 = vunpack.c.l.b16 %v1818
      %v1915 = vunpack.c.l.b16 %v1819
      %v1916 = vunpack.c.l.b16 %v1820
      %v1917 = vunpack.c.l.b16 %v1821
      %v1918 = vunpack.c.l.b16 %v1822
      %v1919 = vunpack.c.l.b16 %v1823
      %v1920 = vunpack.c.l.b16 %v1824
      %v1921 = vunpack.c.l.b16 %v1825
      %v1922 = vunpack.c.l.b16 %v1826
      %v1923 = vunpack.c.l.b16 %v1827
      %v1924 = vunpack.c.l.b16 %v1828
      %v1925 = vunpack.c.l.b16 %v1829
      %v1926 = vunpack.c.l.b16 %v1830
      %v1927 = vunpack.c.l.b16 %v1831
      %v1928 = vunpack.c.l.b16 %v1832
      %v1929 = vunpack.c.l.b16 %v1833
      %v1930 = vpack.c.b16 %v1883, %v1882
      %v1931 = vpack.c.b16 %v1885, %v1884
      %v1932 = vpack.c.b16 %v1887, %v1886
      %v1933 = vpack.c.b16 %v1889, %v1888
      %v1934 = vpack.c.b16 %v1891, %v1890
      %v1935 = vpack.c.b16 %v1893, %v1892
      %v1936 = vpack.c.b16 %v1895, %v1894
      %v1937 = vpack.c.b16 %v1897, %v1896
      %v1938 = vpack.c.b16 %v1899, %v1898
      %v1939 = vpack.c.b16 %v1901, %v1900
      %v1940 = vpack.c.b16 %v1903, %v1902
      %v1941 = vpack.c.b16 %v1905, %v1904
      %v1942 = vpack.c.b16 %v1907, %v1906
      %v1943 = vpack.c.b16 %v1909, %v1908
      %v1944 = vpack.c.b16 %v1911, %v1910
      %v1945 = vpack.c.b16 %v1913, %v1912
      %v1946 = vpack.c.b16 %v1915, %v1914
      %v1947 = vpack.c.b16 %v1917, %v1916
      %v1948 = vpack.c.b16 %v1919, %v1918
      %v1949 = vpack.c.b16 %v1921, %v1920
      %v1950 = vpack.c.b16 %v1923, %v1922
      %v1951 = vpack.c.b16 %v1925, %v1924
      %v1952 = vpack.c.b16 %v1927, %v1926
      %v1953 = vpack.c.b16 %v1929, %v1928
      %1978 = vmatprep.subr.bf16.mxu0 0
      %1979 = vmatpush1.bf16.msra.mxu0 %v1930
      %1980 = vmatprep.subr.bf16.mxu0 0
      %1981 = vmatpush1.bf16.msra.mxu0 %v1931
      %1982 = vmatprep.subr.bf16.mxu0 0
      %1983 = vmatpush1.bf16.msra.mxu0 %v1932
      %1984 = vmatprep.subr.bf16.mxu0 0
      %1985 = vmatpush1.bf16.msra.mxu0 %v1933
      %1986 = vmatprep.subr.bf16.mxu0 0
      %1987 = vmatpush1.bf16.msra.mxu0 %v1934
      %1988 = vmatprep.subr.bf16.mxu0 0
      %1989 = vmatpush1.bf16.msra.mxu0 %v1935
      %1990 = vmatprep.subr.bf16.mxu0 0
      %1991 = vmatpush1.bf16.msra.mxu0 %v1936
      %1992 = vmatprep.subr.bf16.mxu0 0
      %1993 = vmatpush1.bf16.msra.mxu0 %v1937
      %1994 = vmatprep.subr.bf16.mxu0 0
      %1995 = vmatpush1.bf16.msra.mxu0 %v1938
      %1996 = vmatprep.subr.bf16.mxu0 0
      %1997 = vmatpush1.bf16.msra.mxu0 %v1939
      %1998 = vmatprep.subr.bf16.mxu0 0
      %1999 = vmatpush1.bf16.msra.mxu0 %v1940
      %2000 = vmatprep.subr.bf16.mxu0 0
      %2001 = vmatpush1.bf16.msra.mxu0 %v1941
      %2002 = vmatprep.subr.bf16.mxu0 0
      %2003 = vmatpush1.bf16.msra.mxu0 %v1942
      %2004 = vmatprep.subr.bf16.mxu0 0
      %2005 = vmatpush1.bf16.msra.mxu0 %v1943
      %2006 = vmatprep.subr.bf16.mxu0 0
      %2007 = vmatpush1.bf16.msra.mxu0 %v1944
      %2008 = vmatprep.subr.bf16.mxu0 0
      %2009 = vmatpush1.bf16.msra.mxu0 %v1945
      %2010 = vmatprep.mubr.bf16.mxu0 %v1120
      %2011 = vmatmul.mubr.bf16.gmra.mrb[0].mxu0 %v1119
      %v2012 = vpop.f32.mrb[0].mxu0
      %v2013 = vadd.f32 0.0, %v2012
      %v2014 = vpop.f32.mrb[0].mxu0
      %v2015 = vpop.f32.mrb[0].mxu0
      %v2016 = vadd.f32 0.0, %v2015
      %v2017 = vpop.f32.mrb[0].mxu0
      %2018 = vmatprep.mubr.bf16.mxu0 %v1123
      %2019 = vmatmul.mubr.bf16.gmra.mrb[0].mxu0 %v1122
      %v2020 = vpop.f32.mrb[0].mxu0
      %v2021 = vadd.f32 0.0, %v2020
      %v2022 = vpop.f32.mrb[0].mxu0
      %v2023 = vpop.f32.mrb[0].mxu0
      %v2024 = vadd.f32 0.0, %v2023
      %v2025 = vpop.f32.mrb[0].mxu0
      %2026 = vmatprep.mubr.bf16.mxu0 %v1126
      %2027 = vmatmul.mubr.bf16.gmra.mrb[0].mxu0 %v1125
      %v2028 = vpop.f32.mrb[0].mxu0
      %v2029 = vadd.f32 0.0, %v2028
      %v2030 = vpop.f32.mrb[0].mxu0
      %v2031 = vpop.f32.mrb[0].mxu0
      %v2032 = vadd.f32 0.0, %v2031
      %v2033 = vpop.f32.mrb[0].mxu0
      %2034 = vmatprep.mubr.bf16.mxu0 %v1783
      %2035 = vmatmul.mubr.bf16.gmra.mrb[0].mxu0 %v1782
      %v2036 = vpop.f32.mrb[0].mxu0
      %v2037 = vadd.f32 0.0, %v2036
      %v2038 = vpop.f32.mrb[0].mxu0
      %v2039 = vpop.f32.mrb[0].mxu0
      %v2040 = vadd.f32 0.0, %v2039
      %v2041 = vpop.f32.mrb[0].mxu0
      %2042 = vdwg.mxu0
      %2043 = vmatprep.subr.bf16.mxu0 0
      %2044 = vmatpush1.bf16.msra.mxu0 %v1946
      %2045 = vmatprep.subr.bf16.mxu0 0
      %2046 = vmatpush1.bf16.msra.mxu0 %v1947
      %2047 = vmatprep.subr.bf16.mxu0 0
      %2048 = vmatpush1.bf16.msra.mxu0 %v1948
      %2049 = vmatprep.subr.bf16.mxu0 0
      %2050 = vmatpush1.bf16.msra.mxu0 %v1949
      %2051 = vmatprep.subr.bf16.mxu0 0
      %2052 = vmatpush1.bf16.msra.mxu0 %v1950
      %2053 = vmatprep.subr.bf16.mxu0 0
      %2054 = vmatpush1.bf16.msra.mxu0 %v1951
      %2055 = vmatprep.subr.bf16.mxu0 0
      %2056 = vmatpush1.bf16.msra.mxu0 %v1952
      %2057 = vmatprep.subr.bf16.mxu0 0
      %2058 = vmatpush1.bf16.msra.mxu0 %v1953
      %2059 = vmatprep.subr.bf16.mxu0 0
      %2060 = vmatpush1.bf16.msra.mxu0 0
      %2061 = vmatprep.subr.bf16.mxu0 0
      %2062 = vmatpush1.bf16.msra.mxu0 0
      %2063 = vmatprep.subr.bf16.mxu0 0
      %2064 = vmatpush1.bf16.msra.mxu0 0
      %2065 = vmatprep.subr.bf16.mxu0 0
      %2066 = vmatpush1.bf16.msra.mxu0 0
      %2067 = vmatprep.subr.bf16.mxu0 0
      %2068 = vmatpush1.bf16.msra.mxu0 0
      %2069 = vmatprep.subr.bf16.mxu0 0
      %2070 = vmatpush1.bf16.msra.mxu0 0
      %2071 = vmatprep.subr.bf16.mxu0 0
      %2072 = vmatpush1.bf16.msra.mxu0 0
      %2073 = vmatprep.subr.bf16.mxu0 0
      %2074 = vmatpush1.bf16.msra.mxu0 0
      %2075 = vmatprep.mubr.bf16.mxu0 0
      %2076 = vmatmul.mubr.bf16.gmra.mrb[0].mxu0 %v1121
      %v2077 = vpop.f32.mrb[0].mxu0
      %v2078 = vadd.f32 %v2013, %v2077
      %v2079 = vpop.f32.mrb[0].mxu0
      %v2080 = vpop.f32.mrb[0].mxu0
      %v2081 = vadd.f32 %v2016, %v2080
      %v2082 = vpop.f32.mrb[0].mxu0
      %2083 = vmatprep.mubr.bf16.mxu0 0
      %2084 = vmatmul.mubr.bf16.gmra.mrb[0].mxu0 %v1124
      %v2085 = vpop.f32.mrb[0].mxu0
      %v2086 = vadd.f32 %v2021, %v2085
      %v2087 = vpop.f32.mrb[0].mxu0
      %v2088 = vpop.f32.mrb[0].mxu0
      %v2089 = vadd.f32 %v2024, %v2088
      %v2090 = vpop.f32.mrb[0].mxu0
      %2091 = vmatprep.mubr.bf16.mxu0 0
      %2092 = vmatmul.mubr.bf16.gmra.mrb[0].mxu0 %v1127
      %v2093 = vpop.f32.mrb[0].mxu0
      %v2094 = vadd.f32 %v2029, %v2093
      %v2095 = vpop.f32.mrb[0].mxu0
      %v2096 = vpop.f32.mrb[0].mxu0
      %v2097 = vadd.f32 %v2032, %v2096
      %v2098 = vpop.f32.mrb[0].mxu0
      %2099 = vmatprep.mubr.bf16.mxu0 0
      %2100 = vmatmul.mubr.bf16.gmra.mrb[0].mxu0 %v1784
      %v2101 = vpop.f32.mrb[0].mxu0
      %v2102 = vadd.f32 %v2037, %v2101
      %v2103 = vpop.f32.mrb[0].mxu0
      %v2104 = vpop.f32.mrb[0].mxu0
      %v2105 = vadd.f32 %v2040, %v2104
      %v2106 = vpop.f32.mrb[0].mxu0
      %2107 = vdwg.mxu0
      %v2108 = vadd.f32 %v1752, %v2078
      %v2109 = vadd.f32 %v1755, %v2081
      %v2110 = vadd.f32 %v1760, %v2086
      %v2111 = vadd.f32 %v1763, %v2089
      %v2112 = vadd.f32 %v1768, %v2094
      %v2113 = vadd.f32 %v1771, %v2097
      %v2114 = vadd.f32 %v1776, %v2102
      %v2115 = vadd.f32 %v1779, %v2105
      %v2116 = vld [vmem:[%s6] sm:$0x1]
      %v2118 = vlaneseq
      %v2119 = vshrl.u32 %v2118, 7
      %v2120 = vsub.s32 0, %v2119
      %v2121 = vrot.slane %v2116, %v2120
      %v2123 = vmul.f32 %v2108, %v2121
      %v2124 = vmul.f32 %v2109, %v2121
      %v2125 = vmul.f32 %v2110, %v2121
      %v2126 = vmul.f32 %v2111, %v2121
      %v2127 = vmul.f32 %v2112, %v2121
      %v2128 = vmul.f32 %v2113, %v2121
      %v2129 = vmul.f32 %v2114, %v2121
      %v2130 = vmul.f32 %v2115, %v2121
      %v2131 = vld [vmem:[%s7] sm:$0x1]
      %v2133 = vlaneseq
      %v2134 = vshrl.u32 %v2133, 7
      %v2135 = vsub.s32 0, %v2134
      %v2136 = vrot.slane %v2131, %v2135
      %v2138 = vadd.f32 %v2123, %v2136
      %v2139 = vadd.f32 %v2124, %v2136
      %v2140 = vadd.f32 %v2125, %v2136
      %v2141 = vadd.f32 %v2126, %v2136
      %v2142 = vadd.f32 %v2127, %v2136
      %v2143 = vadd.f32 %v2128, %v2136
      %v2144 = vadd.f32 %v2129, %v2136
      %v2145 = vadd.f32 %v2130, %v2136
      %v2146 = vld [vmem:[%s8] sm:$0xf]
      %v2147 = vld [vmem:[%s8 + $0x4] sm:$0x3]
      %v2150 = vunpack.c.l.b16 %v2146
      %v2151 = vunpack.c.l.b16 %v2147
      %v2152 = vpack.c.b16 %v2151, %v2150
      %v2154 = vsel %vm467, %v2152, 0
      %2156 = vmatprep.subr.bf16.mxu0 0
      %2157 = vmatpush1.bf16.msra.mxu0 %v2154
      %2158 = vmatprep.subr.bf16.mxu0 0
      %2159 = vmatpush1.bf16.msra.mxu0 0
      %2160 = vmatprep.subr.bf16.mxu0 0
      %2161 = vmatpush1.bf16.msra.mxu0 0
      %2162 = vmatprep.subr.bf16.mxu0 0
      %2163 = vmatpush1.bf16.msra.mxu0 0
      %2164 = vmatprep.subr.bf16.mxu0 0
      %2165 = vmatpush1.bf16.msra.mxu0 0
      %2166 = vmatprep.subr.bf16.mxu0 0
      %2167 = vmatpush1.bf16.msra.mxu0 0
      %2168 = vmatprep.subr.bf16.mxu0 0
      %2169 = vmatpush1.bf16.msra.mxu0 0
      %2170 = vmatprep.subr.bf16.mxu0 0
      %2171 = vmatpush1.bf16.msra.mxu0 0
      %2172 = vmatprep.subr.bf16.mxu0 0
      %2173 = vmatpush1.bf16.msra.mxu0 0
      %2174 = vmatprep.subr.bf16.mxu0 0
      %2175 = vmatpush1.bf16.msra.mxu0 0
      %2176 = vmatprep.subr.bf16.mxu0 0
      %2177 = vmatpush1.bf16.msra.mxu0 0
      %2178 = vmatprep.subr.bf16.mxu0 0
      %2179 = vmatpush1.bf16.msra.mxu0 0
      %2180 = vmatprep.subr.bf16.mxu0 0
      %2181 = vmatpush1.bf16.msra.mxu0 0
      %2182 = vmatprep.subr.bf16.mxu0 0
      %2183 = vmatpush1.bf16.msra.mxu0 0
      %2184 = vmatprep.subr.bf16.mxu0 0
      %2185 = vmatpush1.bf16.msra.mxu0 0
      %2186 = vmatprep.subr.bf16.mxu0 0
      %2187 = vmatpush1.bf16.msra.mxu0 0
      %2188 = vmatprep.mubr.bf16.mxu0 0
      %2189 = vmatmul.mubr.bf16.gmra.mrb[0].mxu0 %v456
      %v2190 = vpop.f32.mrb[0].mxu0
      %v2191 = vadd.f32 0.0, %v2190
      %v2192 = vpop.f32.mrb[0].mxu0
      %v2193 = vpop.f32.mrb[0].mxu0
      %v2194 = vadd.f32 0.0, %v2193
      %v2195 = vpop.f32.mrb[0].mxu0
      %2196 = vmatprep.mubr.bf16.mxu0 0
      %2197 = vmatmul.mubr.bf16.gmra.mrb[0].mxu0 %v459
      %v2198 = vpop.f32.mrb[0].mxu0
      %v2199 = vadd.f32 0.0, %v2198
      %v2200 = vpop.f32.mrb[0].mxu0
      %v2201 = vpop.f32.mrb[0].mxu0
      %v2202 = vadd.f32 0.0, %v2201
      %v2203 = vpop.f32.mrb[0].mxu0
      %2204 = vmatprep.mubr.bf16.mxu0 0
      %2205 = vmatmul.mubr.bf16.gmra.mrb[0].mxu0 %v462
      %v2206 = vpop.f32.mrb[0].mxu0
      %v2207 = vadd.f32 0.0, %v2206
      %v2208 = vpop.f32.mrb[0].mxu0
      %v2209 = vpop.f32.mrb[0].mxu0
      %v2210 = vadd.f32 0.0, %v2209
      %v2211 = vpop.f32.mrb[0].mxu0
      %2212 = vmatprep.mubr.bf16.mxu0 0
      %2213 = vmatmul.mubr.bf16.gmra.mrb[0].mxu0 %v465
      %v2214 = vpop.f32.mrb[0].mxu0
      %v2215 = vadd.f32 0.0, %v2214
      %v2216 = vpop.f32.mrb[0].mxu0
      %v2217 = vpop.f32.mrb[0].mxu0
      %v2218 = vadd.f32 0.0, %v2217
      %v2219 = vpop.f32.mrb[0].mxu0
      %2220 = vdwg.mxu0
      %v2221 = vld [vmem:[%s9] sm:$0x1]
      %v2223 = vlaneseq
      %v2224 = vshrl.u32 %v2223, 7
      %v2225 = vsub.s32 0, %v2224
      %v2226 = vrot.slane %v2221, %v2225
      %v2228 = vmul.f32 %v2191, %v2226
      %v2229 = vmul.f32 %v2194, %v2226
      %v2230 = vmul.f32 %v2199, %v2226
      %v2231 = vmul.f32 %v2202, %v2226
      %v2232 = vmul.f32 %v2207, %v2226
      %v2233 = vmul.f32 %v2210, %v2226
      %v2234 = vmul.f32 %v2215, %v2226
      %v2235 = vmul.f32 %v2218, %v2226
      %v2236 = vld [vmem:[%s10] sm:$0x1]
      %v2238 = vlaneseq
      %v2239 = vshrl.u32 %v2238, 7
      %v2240 = vsub.s32 0, %v2239
      %v2241 = vrot.slane %v2236, %v2240
      %v2243 = vadd.f32 %v2228, %v2241
      %v2244 = vadd.f32 %v2229, %v2241
      %v2245 = vadd.f32 %v2230, %v2241
      %v2246 = vadd.f32 %v2231, %v2241
      %v2247 = vadd.f32 %v2232, %v2241
      %v2248 = vadd.f32 %v2233, %v2241
      %v2249 = vadd.f32 %v2234, %v2241
      %v2250 = vadd.f32 %v2235, %v2241
      %v2251 = vadd.f32 %v2138, %v2243
      %v2252 = vadd.f32 %v2139, %v2244
      %v2253 = vadd.f32 %v2140, %v2245
      %v2254 = vadd.f32 %v2141, %v2246
      %v2255 = vadd.f32 %v2142, %v2247
      %v2256 = vadd.f32 %v2143, %v2248
      %v2257 = vadd.f32 %v2144, %v2249
      %v2258 = vadd.f32 %v2145, %v2250
      %v2259 = vmax.f32 %v2251, 0.0
      %v2260 = vmax.f32 %v2252, 0.0
      %v2261 = vmax.f32 %v2253, 0.0
      %v2262 = vmax.f32 %v2254, 0.0
      %v2263 = vmax.f32 %v2255, 0.0
      %v2264 = vmax.f32 %v2256, 0.0
      %v2265 = vmax.f32 %v2257, 0.0
      %v2266 = vmax.f32 %v2258, 0.0
      %v2267 = vpack.c.bf16 %v2260, %v2259
      %v2268 = vpack.c.bf16 %v2262, %v2261
      %v2269 = vpack.c.bf16 %v2264, %v2263
      %v2270 = vpack.c.bf16 %v2266, %v2265
      %v2275 = vunpack.c.l.b16 %v2267
      %v2276 = vunpack.c.h.b16 %v2267
      %v2277 = vunpack.c.l.b16 %v2268
      %v2278 = vunpack.c.h.b16 %v2268
      %v2279 = vunpack.c.l.b16 %v2269
      %v2280 = vunpack.c.h.b16 %v2269
      %v2281 = vunpack.c.l.b16 %v2270
      %v2282 = vunpack.c.h.b16 %v2270
      %v2283 = vpack.c.b16 %v2275, %v2275
      %v2284 = vpack.c.b16 %v2276, %v2276
      %v2285 = vpack.c.b16 %v2277, %v2277
      %v2286 = vpack.c.b16 %v2278, %v2278
      %v2287 = vpack.c.b16 %v2279, %v2279
      %v2288 = vpack.c.b16 %v2280, %v2280
      %v2289 = vpack.c.b16 %v2281, %v2281
      %v2290 = vpack.c.b16 %v2282, %v2282
      %2299 = vst [vmem:[%s406] sm:$0xf] %v2283
      %2300 = vst [vmem:[%s406 + $0x4] sm:$0xf] %v2284
      %2301 = vst [vmem:[%s406 + $0x8] sm:$0xf] %v2285
      %2302 = vst [vmem:[%s406 + $0xc] sm:$0xf] %v2286
      %2303 = vst [vmem:[%s406 + $0x10] sm:$0xf] %v2287
      %2304 = vst [vmem:[%s406 + $0x14] sm:$0xf] %v2288
      %2305 = vst [vmem:[%s406 + $0x18] sm:$0xf] %v2289
      %2306 = vst [vmem:[%s406 + $0x1c] sm:$0xf] %v2290
      %p2307 = scmp.lt.s32.totalorder %s22, 1
      %s2308 = scalar_select %p2307, %s22, 1
      %s2309 = smul.addr %s2308, 8
      %s2310 = smul.addr %s2309, 4
      %s2311 = scalar_lea.vmem %s11, %s2310
      // Predicated region
      $region65: #{_lambda_.2} parent=63 // pred_check
        %p2312 = pneg %p281
      $region66: #{_lambda_.2} parent=63 // pred_check_branch
        %2314 = sbr.rel (%p2312) target = $region68
      $region67: #{_lambda_.2} parent=63 // pred_region
        _
      $region68: #{_lambda_.2} parent=63 // pred_fallthru
        _
    $region64: #{_lambda_.2} parent=5 // pred_fallthru
      _
    %p2315 = scmp.le.s32.totalorder 2, %s17
    // Predicated region
    $region69: #{_lambda_.2} parent=5 // pred_check
      %p2316 = pneg %p2315
    $region70: #{_lambda_.2} parent=5 // pred_check_branch
      %2318 = sbr.rel (%p2316) target = $region72
    $region71: #{_lambda_.2} parent=5 // pred_region
      %s2319 = ssub.s32 %s17, 2
      // Predicated region
      $region73: #{_lambda_.2} parent=71 // pred_check
        %p2320 = pneg %p287
      $region74: #{_lambda_.2} parent=71 // pred_check_branch
        %2322 = sbr.rel (%p2320) target = $region76
      $region75: #{_lambda_.2} parent=71 // pred_region
        %p2323 = scmp.lt.s32.totalorder %s23, 1
        %s2324 = scalar_select %p2323, %s23, 1
        %s2325 = smul.addr %s2324, 8
        %s2326 = smul.addr %s2325, 4
        %s2327 = scalar_lea.vmem %s11, %s2326
      $region76: #{_lambda_.2} parent=71 // pred_fallthru
        _
    $region72: #{_lambda_.2} parent=5 // pred_fallthru
      _
  $region6: #{_lambda_.2} parent=0 // loop_footer
    %s21 = sadd.s32 1, %s17
  $region7: #{_lambda_.2} parent=0 // loop_footer_branch
    %16 = sbr.rel target = $region3
  $region8: #{_lambda_.2} parent=0 // loop_exit
    _

// kernel: _lambda_.3
$region0: #{_lambda_.3}
  #allocation0 [shape = 'u32[]', space=smem, size = 0x4, offset = 0x4, fixed_abs, tag = 'smem constant byte address 0x4 - core index']
  #allocation1 [shape = 'u32[144,128]{1,0:T(1,128)}', space=vmem, size = 0x12000, scoped, tag = 'internal scratch']
  #allocation2 [shape = 'bf16[80,384]{1,0:T(16,128)(2,1)}', space=vmem, size = 0xf000, scoped, tag = 'scratch operand']
  %s0 = inlined_call_operand.vmem [shape: bf16[2,64,128], index: 0, kind: input, shape index: {}]
  %s1 = inlined_call_operand.vmem [shape: bf16[3,384,128], index: 1, kind: input, shape index: {}]
  %s2 = inlined_call_operand.vmem [shape: f32[1,128], index: 2, kind: input, shape index: {}, may-alias: {2,5}]
  %s3 = inlined_call_operand.vmem [shape: f32[1,128], index: 3, kind: input, shape index: {}, may-alias: {3,6}]
  %s4 = inlined_call_operand.vmem [shape: bf16[3,384,128], index: 4, kind: input, shape index: {}]
  %s5 = inlined_call_operand.vmem [shape: f32[1,128], index: 5, kind: input, shape index: {}, may-alias: {2,5}]
  %s6 = inlined_call_operand.vmem [shape: f32[1,128], index: 6, kind: input, shape index: {}, may-alias: {3,6}]
  %s7 = inlined_call_operand.vmem [shape: bf16[2,64,128], index: 7, kind: output, shape index: {}]
  %s8 = sld [smem:[#allocation0]]
  $region61: #{_lambda_.3} parent=0
    _
  %s10 = ssub.s32 1, %s8
  %s11 = scalar_select 0, %s10, %s8
  loop: start=0, step=1, limit=4
  $region2: #{_lambda_.3} parent=0 // loop_pre_header
    _
  $region3: #{_lambda_.3} parent=0 // loop_header
    %s13 = sphi 0, %s17
    %p14 = scmp.ge.s32.totalorder %s13, 4
    %s23 = sphi 0, %s25
    %s26 = sphi 0, %s23
    %s27 = sphi 0, %s26
    %s43 = sphi 0, %s27
    %s47 = sphi 0, %s47
    %s49 = sphi 0, %s47
    %s50 = sphi 0, %s49
    %s64 = sphi 0, %s50
    %s68 = sphi 0, %s68
    %s70 = sphi 0, %s68
    %s71 = sphi 0, %s70
    %s85 = sphi 0, %s71
    %s89 = sphi 0, %s89
    %s91 = sphi 0, %s89
    %s92 = sphi 0, %s91
    %s106 = sphi 0, %s92
    %s110 = sphi 0, %s110
    %s112 = sphi 0, %s110
    %s113 = sphi 0, %s112
    %s127 = sphi 0, %s113
    %s131 = sphi 0, %s131
    %s133 = sphi 0, %s131
    %s134 = sphi 0, %s133
    %s148 = sphi 0, %s134
    %s152 = sphi 0, %s152
    %s154 = sphi 0, %s152
    %s155 = sphi 0, %s154
    %s169 = sphi 0, %s155
    %s175 = sphi 0, %s177
    %s178 = sphi 0, %s175
    %s179 = sphi 0, %s178
    %s195 = sphi 0, %s179
  $region4: #{_lambda_.3} parent=0 // loop_header_branch
    %16 = sbr.rel (%p14) target = $region8
  $region5: #{_lambda_.3} parent=0 // loop_body
    %s18 = ssub.s32 %s13, 1
    %s19 = ssub.s32 %s13, 2
    %s20 = sadd.s32 %s13, 1
    %s21 = ssub.s32 %s13, %s20
    %p22 = scmp.eq.s32.totalorder %s21, 0
    %s24 = sadd.s32 %s23, 1
    %s25 = scalar_select %p22, %s23, %s24
    %p28 = pneg %p22
    %p29 = scmp.eq.s32.totalorder %s13, 1
    %p30 = por %p28, %p29
    %p31 = scmp.ne.s32.totalorder %s23, %s26
    %p32 = scmp.eq.s32.totalorder %s13, 0
    %p33 = por %p31, %p32
    %p34 = scmp.ne.s32.totalorder %s23, %s26
    %p35 = scmp.eq.s32.totalorder %s18, 1
    %p36 = por %p34, %p35
    %p37 = scmp.ne.s32.totalorder %s26, %s27
    %p38 = scmp.eq.s32.totalorder %s18, 0
    %p39 = por %p37, %p38
    %p40 = scmp.ne.s32.totalorder %s26, %s27
    %p41 = scmp.eq.s32.totalorder %s19, 1
    %p42 = por %p40, %p41
    %p44 = scmp.ne.s32.totalorder %s27, %s43
    %p45 = scmp.eq.s32.totalorder %s19, 0
    %p46 = por %p44, %p45
    %s48 = sadd.s32 %s47, 1
    %p51 = scmp.eq.s32.totalorder %s13, 1
    %p52 = scmp.ne.s32.totalorder %s47, %s49
    %p53 = scmp.eq.s32.totalorder %s13, 0
    %p54 = por %p52, %p53
    %p55 = scmp.ne.s32.totalorder %s47, %s49
    %p56 = scmp.eq.s32.totalorder %s18, 1
    %p57 = por %p55, %p56
    %p58 = scmp.ne.s32.totalorder %s49, %s50
    %p59 = scmp.eq.s32.totalorder %s18, 0
    %p60 = por %p58, %p59
    %p61 = scmp.ne.s32.totalorder %s49, %s50
    %p62 = scmp.eq.s32.totalorder %s19, 1
    %p63 = por %p61, %p62
    %p65 = scmp.ne.s32.totalorder %s50, %s64
    %p66 = scmp.eq.s32.totalorder %s19, 0
    %p67 = por %p65, %p66
    %s69 = sadd.s32 %s68, 1
    %p72 = scmp.eq.s32.totalorder %s13, 1
    %p73 = scmp.ne.s32.totalorder %s68, %s70
    %p74 = scmp.eq.s32.totalorder %s13, 0
    %p75 = por %p73, %p74
    %p76 = scmp.ne.s32.totalorder %s68, %s70
    %p77 = scmp.eq.s32.totalorder %s18, 1
    %p78 = por %p76, %p77
    %p79 = scmp.ne.s32.totalorder %s70, %s71
    %p80 = scmp.eq.s32.totalorder %s18, 0
    %p81 = por %p79, %p80
    %p82 = scmp.ne.s32.totalorder %s70, %s71
    %p83 = scmp.eq.s32.totalorder %s19, 1
    %p84 = por %p82, %p83
    %p86 = scmp.ne.s32.totalorder %s71, %s85
    %p87 = scmp.eq.s32.totalorder %s19, 0
    %p88 = por %p86, %p87
    %s90 = sadd.s32 %s89, 1
    %p93 = scmp.eq.s32.totalorder %s13, 1
    %p94 = scmp.ne.s32.totalorder %s89, %s91
    %p95 = scmp.eq.s32.totalorder %s13, 0
    %p96 = por %p94, %p95
    %p97 = scmp.ne.s32.totalorder %s89, %s91
    %p98 = scmp.eq.s32.totalorder %s18, 1
    %p99 = por %p97, %p98
    %p100 = scmp.ne.s32.totalorder %s91, %s92
    %p101 = scmp.eq.s32.totalorder %s18, 0
    %p102 = por %p100, %p101
    %p103 = scmp.ne.s32.totalorder %s91, %s92
    %p104 = scmp.eq.s32.totalorder %s19, 1
    %p105 = por %p103, %p104
    %p107 = scmp.ne.s32.totalorder %s92, %s106
    %p108 = scmp.eq.s32.totalorder %s19, 0
    %p109 = por %p107, %p108
    %s111 = sadd.s32 %s110, 1
    %p114 = scmp.eq.s32.totalorder %s13, 1
    %p115 = scmp.ne.s32.totalorder %s110, %s112
    %p116 = scmp.eq.s32.totalorder %s13, 0
    %p117 = por %p115, %p116
    %p118 = scmp.ne.s32.totalorder %s110, %s112
    %p119 = scmp.eq.s32.totalorder %s18, 1
    %p120 = por %p118, %p119
    %p121 = scmp.ne.s32.totalorder %s112, %s113
    %p122 = scmp.eq.s32.totalorder %s18, 0
    %p123 = por %p121, %p122
    %p124 = scmp.ne.s32.totalorder %s112, %s113
    %p125 = scmp.eq.s32.totalorder %s19, 1
    %p126 = por %p124, %p125
    %p128 = scmp.ne.s32.totalorder %s113, %s127
    %p129 = scmp.eq.s32.totalorder %s19, 0
    %p130 = por %p128, %p129
    %s132 = sadd.s32 %s131, 1
    %p135 = scmp.eq.s32.totalorder %s13, 1
    %p136 = scmp.ne.s32.totalorder %s131, %s133
    %p137 = scmp.eq.s32.totalorder %s13, 0
    %p138 = por %p136, %p137
    %p139 = scmp.ne.s32.totalorder %s131, %s133
    %p140 = scmp.eq.s32.totalorder %s18, 1
    %p141 = por %p139, %p140
    %p142 = scmp.ne.s32.totalorder %s133, %s134
    %p143 = scmp.eq.s32.totalorder %s18, 0
    %p144 = por %p142, %p143
    %p145 = scmp.ne.s32.totalorder %s133, %s134
    %p146 = scmp.eq.s32.totalorder %s19, 1
    %p147 = por %p145, %p146
    %p149 = scmp.ne.s32.totalorder %s134, %s148
    %p150 = scmp.eq.s32.totalorder %s19, 0
    %p151 = por %p149, %p150
    %s153 = sadd.s32 %s152, 1
    %p156 = scmp.eq.s32.totalorder %s13, 1
    %p157 = scmp.ne.s32.totalorder %s152, %s154
    %p158 = scmp.eq.s32.totalorder %s13, 0
    %p159 = por %p157, %p158
    %p160 = scmp.ne.s32.totalorder %s152, %s154
    %p161 = scmp.eq.s32.totalorder %s18, 1
    %p162 = por %p160, %p161
    %p163 = scmp.ne.s32.totalorder %s154, %s155
    %p164 = scmp.eq.s32.totalorder %s18, 0
    %p165 = por %p163, %p164
    %p166 = scmp.ne.s32.totalorder %s154, %s155
    %p167 = scmp.eq.s32.totalorder %s19, 1
    %p168 = por %p166, %p167
    %p170 = scmp.ne.s32.totalorder %s155, %s169
    %p171 = scmp.eq.s32.totalorder %s19, 0
    %p172 = por %p170, %p171
    %s173 = ssub.s32 %s13, %s20
    %p174 = scmp.eq.s32.totalorder %s173, 0
    %s176 = sadd.s32 %s175, 1
    %s177 = scalar_select %p174, %s175, %s176
    %p180 = pneg %p174
    %p181 = scmp.eq.s32.totalorder %s13, 1
    %p182 = por %p180, %p181
    %p183 = scmp.ne.s32.totalorder %s175, %s178
    %p184 = scmp.eq.s32.totalorder %s13, 0
    %p185 = por %p183, %p184
    %p186 = scmp.ne.s32.totalorder %s175, %s178
    %p187 = scmp.eq.s32.totalorder %s18, 1
    %p188 = por %p186, %p187
    %p189 = scmp.ne.s32.totalorder %s178, %s179
    %p190 = scmp.eq.s32.totalorder %s18, 0
    %p191 = por %p189, %p190
    %p192 = scmp.ne.s32.totalorder %s178, %s179
    %p193 = scmp.eq.s32.totalorder %s19, 1
    %p194 = por %p192, %p193
    %p196 = scmp.ne.s32.totalorder %s179, %s195
    %p197 = scmp.eq.s32.totalorder %s19, 0
    %p198 = por %p196, %p197
    %p199 = scmp.le.s32.totalorder 1, %s13
    %p200 = scmp.lt.s32.totalorder %s13, 3
    %p201 = pnand %p199, %p200
    %p202 = pneg %p201
    // Predicated region
    $region9: #{_lambda_.3} parent=5 // pred_check
      _
    $region10: #{_lambda_.3} parent=5 // pred_check_branch
      %204 = sbr.rel (%p201) target = $region12
    $region11: #{_lambda_.3} parent=5 // pred_region
      %s205 = ssub.s32 %s13, 1
      // Predicated region
      $region13: #{_lambda_.3} parent=11 // pred_check
        %p206 = pneg %p60
      $region14: #{_lambda_.3} parent=11 // pred_check_branch
        %208 = sbr.rel (%p206) target = $region16
      $region15: #{_lambda_.3} parent=11 // pred_region
        _
      $region16: #{_lambda_.3} parent=11 // pred_fallthru
        _
      // Predicated region
      $region17: #{_lambda_.3} parent=11 // pred_check
        %p209 = pneg %p81
      $region18: #{_lambda_.3} parent=11 // pred_check_branch
        %211 = sbr.rel (%p209) target = $region20
      $region19: #{_lambda_.3} parent=11 // pred_region
        _
      $region20: #{_lambda_.3} parent=11 // pred_fallthru
        _
      // Predicated region
      $region21: #{_lambda_.3} parent=11 // pred_check
        %p212 = pneg %p102
      $region22: #{_lambda_.3} parent=11 // pred_check_branch
        %214 = sbr.rel (%p212) target = $region24
      $region23: #{_lambda_.3} parent=11 // pred_region
        _
      $region24: #{_lambda_.3} parent=11 // pred_fallthru
        _
      // Predicated region
      $region25: #{_lambda_.3} parent=11 // pred_check
        %p215 = pneg %p123
      $region26: #{_lambda_.3} parent=11 // pred_check_branch
        %217 = sbr.rel (%p215) target = $region28
      $region27: #{_lambda_.3} parent=11 // pred_region
        _
      $region28: #{_lambda_.3} parent=11 // pred_fallthru
        _
      // Predicated region
      $region29: #{_lambda_.3} parent=11 // pred_check
        %p218 = pneg %p144
      $region30: #{_lambda_.3} parent=11 // pred_check_branch
        %220 = sbr.rel (%p218) target = $region32
      $region31: #{_lambda_.3} parent=11 // pred_region
        _
      $region32: #{_lambda_.3} parent=11 // pred_fallthru
        _
      // Predicated region
      $region33: #{_lambda_.3} parent=11 // pred_check
        %p221 = pneg %p165
      $region34: #{_lambda_.3} parent=11 // pred_check_branch
        %223 = sbr.rel (%p221) target = $region36
      $region35: #{_lambda_.3} parent=11 // pred_region
        _
      $region36: #{_lambda_.3} parent=11 // pred_fallthru
        _
    $region12: #{_lambda_.3} parent=5 // pred_fallthru
      _
    %p224 = scmp.lt.s32.totalorder %s13, 2
    // Predicated region
    $region37: #{_lambda_.3} parent=5 // pred_check
      %p225 = pneg %p224
    $region38: #{_lambda_.3} parent=5 // pred_check_branch
      %227 = sbr.rel (%p225) target = $region40
    $region39: #{_lambda_.3} parent=5 // pred_region
      // Predicated region
      $region41: #{_lambda_.3} parent=39 // pred_check
        %p228 = pneg %p33
      $region42: #{_lambda_.3} parent=39 // pred_check_branch
        %230 = sbr.rel (%p228) target = $region44
      $region43: #{_lambda_.3} parent=39 // pred_region
        %p231 = scmp.lt.s32.totalorder %s13, 1
        %s232 = scalar_select %p231, %s13, 1
        %s233 = smul.addr %s232, 8
        %s234 = smul.addr %s233, 4
        %s235 = scalar_lea.vmem %s0, %s234
      $region44: #{_lambda_.3} parent=39 // pred_fallthru
        _
    $region40: #{_lambda_.3} parent=5 // pred_fallthru
      _
    %p236 = scmp.le.s32.totalorder 1, %s13
    %p237 = scmp.lt.s32.totalorder %s13, 3
    %p238 = pnand %p236, %p237
    %p239 = pneg %p238
    // Predicated region
    $region45: #{_lambda_.3} parent=5 // pred_check
      _
    $region46: #{_lambda_.3} parent=5 // pred_check_branch
      %241 = sbr.rel (%p238) target = $region48
    $region47: #{_lambda_.3} parent=5 // pred_region
      %s242 = ssub.s32 %s13, 1
      %p243 = scmp.lt.s32.totalorder %s18, 1
      %s244 = scalar_select %p243, %s18, 1
      %s245 = smul.addr %s244, 8
      %s246 = smul.addr %s245, 4
      %s247 = scalar_lea.vmem %s0, %s246
      %p248 = pneg %p39
      %p249 = pneg %p36
      %p250 = pneg %p60
      %p251 = pneg %p57
      %p252 = pneg %p81
      %p253 = pneg %p78
      %p254 = pneg %p102
      %p255 = pneg %p99
      %p256 = pneg %p123
      %p257 = pneg %p120
      %p258 = pneg %p144
      %p259 = pneg %p141
      %p260 = pneg %p165
      %p261 = pneg %p162
      %p262 = pneg %p191
      %p263 = pneg %p188
      %p264 = scmp.lt.s32.totalorder %s18, 1
      %s265 = scalar_select %p264, %s18, 1
      %s266 = smul.addr %s265, 8
      %s267 = smul.addr %s266, 4
      %s268 = scalar_lea.vmem %s7, %s267
      %p269 = scmp.lt.s32.totalorder %s18, 1
      %s270 = scalar_select %p269, %s18, 1
      %s271 = smul.addr %s270, 8
      %s272 = smul.addr %s271, 4
      %s273 = scalar_lea.vmem %s0, %s272
      %p274 = scmp.lt.s32.totalorder %s18, 1
      %s275 = scalar_select %p274, %s18, 1
      %s276 = smul.addr %s275, 8
      %s277 = smul.addr %s276, 4
      %s278 = scalar_lea.vmem %s7, %s277
      %v280 = vld [vmem:[%s273] sm:$0xf]
      %v281 = vld [vmem:[%s273 + $0x4] sm:$0xf]
      %v282 = vld [vmem:[%s273 + $0x8] sm:$0xf]
      %v283 = vld [vmem:[%s273 + $0xc] sm:$0xf]
      %v284 = vld [vmem:[%s273 + $0x10] sm:$0xf]
      %v285 = vld [vmem:[%s273 + $0x14] sm:$0xf]
      %v286 = vld [vmem:[%s273 + $0x18] sm:$0xf]
      %v287 = vld [vmem:[%s273 + $0x1c] sm:$0xf]
      %v288 = vunpack.c.l.bf16 %v280
      %v289 = vunpack.c.l.bf16 %v281
      %v290 = vunpack.c.l.bf16 %v282
      %v291 = vunpack.c.l.bf16 %v283
      %v292 = vunpack.c.l.bf16 %v284
      %v293 = vunpack.c.l.bf16 %v285
      %v294 = vunpack.c.l.bf16 %v286
      %v295 = vunpack.c.l.bf16 %v287
      %v296 = vlaneseq
      %v297 = vshrl.u32 %v296, 7
      %v298 = vadd.s32 %v297, 8
      %v299 = vadd.s32 %v297, 16
      %v300 = vadd.s32 %v297, 24
      %v301 = vadd.s32 %v297, 32
      %v302 = vadd.s32 %v297, 40
      %v303 = vadd.s32 %v297, 48
      %v304 = vadd.s32 %v297, 56
      %vm305 = vcmp.lt.s32.totalorder %v297, 0
      %v306 = vsub.s32 0, %v297
      %v307 = vsel %vm305, %v306, %v297
      %v308 = vshrl.u32 %v307, 3
      %v309 = vand.u32 %v307, 7
      %v310 = vsub.s32 0, %v309
      %v311 = vsel %vm305, %v310, %v309
      %vm312 = vcmp.lt.s32.totalorder %v298, 0
      %v313 = vsub.s32 0, %v298
      %v314 = vsel %vm312, %v313, %v298
      %v315 = vshrl.u32 %v314, 3
      %v316 = vand.u32 %v314, 7
      %v317 = vsub.s32 0, %v316
      %v318 = vsel %vm312, %v317, %v316
      %vm319 = vcmp.lt.s32.totalorder %v299, 0
      %v320 = vsub.s32 0, %v299
      %v321 = vsel %vm319, %v320, %v299
      %v322 = vshrl.u32 %v321, 3
      %v323 = vand.u32 %v321, 7
      %v324 = vsub.s32 0, %v323
      %v325 = vsel %vm319, %v324, %v323
      %vm326 = vcmp.lt.s32.totalorder %v300, 0
      %v327 = vsub.s32 0, %v300
      %v328 = vsel %vm326, %v327, %v300
      %v329 = vshrl.u32 %v328, 3
      %v330 = vand.u32 %v328, 7
      %v331 = vsub.s32 0, %v330
      %v332 = vsel %vm326, %v331, %v330
      %vm333 = vcmp.lt.s32.totalorder %v301, 0
      %v334 = vsub.s32 0, %v301
      %v335 = vsel %vm333, %v334, %v301
      %v336 = vshrl.u32 %v335, 3
      %v337 = vand.u32 %v335, 7
      %v338 = vsub.s32 0, %v337
      %v339 = vsel %vm333, %v338, %v337
      %vm340 = vcmp.lt.s32.totalorder %v302, 0
      %v341 = vsub.s32 0, %v302
      %v342 = vsel %vm340, %v341, %v302
      %v343 = vshrl.u32 %v342, 3
      %v344 = vand.u32 %v342, 7
      %v345 = vsub.s32 0, %v344
      %v346 = vsel %vm340, %v345, %v344
      %vm347 = vcmp.lt.s32.totalorder %v303, 0
      %v348 = vsub.s32 0, %v303
      %v349 = vsel %vm347, %v348, %v303
      %v350 = vshrl.u32 %v349, 3
      %v351 = vand.u32 %v349, 7
      %v352 = vsub.s32 0, %v351
      %v353 = vsel %vm347, %v352, %v351
      %vm354 = vcmp.lt.s32.totalorder %v304, 0
      %v355 = vsub.s32 0, %v304
      %v356 = vsel %vm354, %v355, %v304
      %v357 = vshrl.u32 %v356, 3
      %v358 = vand.u32 %v356, 7
      %v359 = vsub.s32 0, %v358
      %v360 = vsel %vm354, %v359, %v358
      %vm361 = vcmp.ne.s32.totalorder %v311, 0
      %vm362 = vcmp.ne.s32.totalorder %v318, 0
      %vm363 = vcmp.ne.s32.totalorder %v325, 0
      %vm364 = vcmp.ne.s32.totalorder %v332, 0
      %vm365 = vcmp.ne.s32.totalorder %v339, 0
      %vm366 = vcmp.ne.s32.totalorder %v346, 0
      %vm367 = vcmp.ne.s32.totalorder %v353, 0
      %vm368 = vcmp.ne.s32.totalorder %v360, 0
      %vm369 = vcmp.lt.s32.totalorder %v311, 0
      %vm370 = vcmp.lt.s32.totalorder %v318, 0
      %vm371 = vcmp.lt.s32.totalorder %v325, 0
      %vm372 = vcmp.lt.s32.totalorder %v332, 0
      %vm373 = vcmp.lt.s32.totalorder %v339, 0
      %vm374 = vcmp.lt.s32.totalorder %v346, 0
      %vm375 = vcmp.lt.s32.totalorder %v353, 0
      %vm376 = vcmp.lt.s32.totalorder %v360, 0
      %vm377 = vmand %vm369, %vm361
      %vm378 = vmand %vm370, %vm362
      %vm379 = vmand %vm371, %vm363
      %vm380 = vmand %vm372, %vm364
      %vm381 = vmand %vm373, %vm365
      %vm382 = vmand %vm374, %vm366
      %vm383 = vmand %vm375, %vm367
      %vm384 = vmand %vm376, %vm368
      %v385 = vadd.s32 %v311, 8
      %v386 = vadd.s32 %v318, 8
      %v387 = vadd.s32 %v325, 8
      %v388 = vadd.s32 %v332, 8
      %v389 = vadd.s32 %v339, 8
      %v390 = vadd.s32 %v346, 8
      %v391 = vadd.s32 %v353, 8
      %v392 = vadd.s32 %v360, 8
      %v393 = vsel %vm377, %v385, %v311
      %v394 = vsel %vm378, %v386, %v318
      %v395 = vsel %vm379, %v387, %v325
      %v396 = vsel %vm380, %v388, %v332
      %v397 = vsel %vm381, %v389, %v339
      %v398 = vsel %vm382, %v390, %v346
      %v399 = vsel %vm383, %v391, %v353
      %v400 = vsel %vm384, %v392, %v360
      %vm401 = vcmp.gt.s32.totalorder %v393, 0
      %vm402 = vcmp.gt.s32.totalorder %v394, 0
      %vm403 = vcmp.gt.s32.totalorder %v395, 0
      %vm404 = vcmp.gt.s32.totalorder %v396, 0
      %vm405 = vcmp.gt.s32.totalorder %v397, 0
      %vm406 = vcmp.gt.s32.totalorder %v398, 0
      %vm407 = vcmp.gt.s32.totalorder %v399, 0
      %vm408 = vcmp.gt.s32.totalorder %v400, 0
      %vm409 = vcmp.lt.s32.totalorder %v393, 7
      %vm410 = vcmp.lt.s32.totalorder %v394, 7
      %vm411 = vcmp.lt.s32.totalorder %v395, 7
      %vm412 = vcmp.lt.s32.totalorder %v396, 7
      %vm413 = vcmp.lt.s32.totalorder %v397, 7
      %vm414 = vcmp.lt.s32.totalorder %v398, 7
      %vm415 = vcmp.lt.s32.totalorder %v399, 7
      %vm416 = vcmp.lt.s32.totalorder %v400, 7
      %417 = vst [vmem:[#allocation2] sm:$0xf] 0
      %418 = vst [vmem:[#allocation2 + $0x8] sm:$0xf] 0
      %419 = vst [vmem:[#allocation2 + $0x10] sm:$0xf] 0
      %420 = vst [vmem:[#allocation2 + $0x60] sm:$0xf0] 0
      %421 = vst [vmem:[#allocation2 + $0x68] sm:$0xf0] 0
      %422 = vst [vmem:[#allocation2 + $0x70] sm:$0xf0] 0
      %v431 = vunpack.c.l.b16 %v280
      %v432 = vunpack.c.l.b16 %v281
      %v433 = vunpack.c.l.b16 %v282
      %v434 = vunpack.c.l.b16 %v283
      %v435 = vunpack.c.l.b16 %v284
      %v436 = vunpack.c.l.b16 %v285
      %v437 = vunpack.c.l.b16 %v286
      %v438 = vunpack.c.l.b16 %v287
      %v439 = vpack.c.b16 %v431, %v431
      %v440 = vpack.c.b16 %v433, %v432
      %v441 = vpack.c.b16 %v435, %v434
      %v442 = vpack.c.b16 %v437, %v436
      %v443 = vpack.c.b16 %v438, %v438
      %449 = vst [vmem:[#allocation2 + $0x8] sm:$0xf0] %v439
      %450 = vst [vmem:[#allocation2 + $0x20] sm:$0xff] %v440
      %451 = vst [vmem:[#allocation2 + $0x38] sm:$0xff] %v441
      %452 = vst [vmem:[#allocation2 + $0x50] sm:$0xff] %v442
      %453 = vst [vmem:[#allocation2 + $0x68] sm:$0xf] %v443
      %v454 = vrot.slane %v288, 7
      %v455 = vrot.slane %v289, 7
      %v456 = vrot.slane %v290, 7
      %v457 = vrot.slane %v291, 7
      %v458 = vrot.slane %v292, 7
      %v459 = vrot.slane %v293, 7
      %v460 = vrot.slane %v294, 7
      %v461 = vrot.slane %v295, 7
      %vm462 = vcmp.lt.s32.totalorder %v297, 1
      %v463 = vsel %vm462, %v460, %v461
      %v464 = vsel %vm462, %v459, %v460
      %v465 = vsel %vm462, %v458, %v459
      %v466 = vsel %vm462, %v457, %v458
      %v467 = vsel %vm462, %v456, %v457
      %v468 = vsel %vm462, %v455, %v456
      %v469 = vsel %vm462, %v454, %v455
      %v470 = vsel %vm462, %v461, %v454
      %v471 = vsel %vm401, %v470, 0.0
      %v472 = vsel %vm402, %v469, 0.0
      %v473 = vsel %vm403, %v468, 0.0
      %v474 = vsel %vm404, %v467, 0.0
      %v475 = vsel %vm405, %v466, 0.0
      %v476 = vsel %vm406, %v465, 0.0
      %v477 = vsel %vm407, %v464, 0.0
      %v478 = vsel %vm408, %v463, 0.0
      %v479 = vpack.c.bf16 %v472, %v471
      %v480 = vpack.c.bf16 %v474, %v473
      %v481 = vpack.c.bf16 %v476, %v475
      %v482 = vpack.c.bf16 %v478, %v477
      %vm487 = vcmask 1043456
      %v488 = vrot.slane %v479, 4
      %v489 = vrot.slane %v480, 4
      %v490 = vsel %vm487, %v488, %v489
      %v491 = vrot.slane %v481, 4
      %v492 = vsel %vm487, %v489, %v491
      %v493 = vrot.slane %v482, 4
      %v494 = vsel %vm487, %v491, %v493
      %500 = vst [vmem:[#allocation2] sm:$0xf0] %v488
      %501 = vst [vmem:[#allocation2 + $0x18] sm:$0xff] %v490
      %502 = vst [vmem:[#allocation2 + $0x30] sm:$0xff] %v492
      %503 = vst [vmem:[#allocation2 + $0x48] sm:$0xff] %v494
      %504 = vst [vmem:[#allocation2 + $0x60] sm:$0xf] %v493
      %v505 = vrot.slane %v288, 1
      %v506 = vrot.slane %v289, 1
      %v507 = vrot.slane %v290, 1
      %v508 = vrot.slane %v291, 1
      %v509 = vrot.slane %v292, 1
      %v510 = vrot.slane %v293, 1
      %v511 = vrot.slane %v294, 1
      %v512 = vrot.slane %v295, 1
      %vm513 = vcmp.lt.s32.totalorder %v297, 7
      %v514 = vsel %vm513, %v511, %v512
      %v515 = vsel %vm513, %v510, %v511
      %v516 = vsel %vm513, %v509, %v510
      %v517 = vsel %vm513, %v508, %v509
      %v518 = vsel %vm513, %v507, %v508
      %v519 = vsel %vm513, %v506, %v507
      %v520 = vsel %vm513, %v505, %v506
      %v521 = vsel %vm513, %v512, %v505
      %v522 = vsel %vm409, %v520, 0.0
      %v523 = vsel %vm410, %v519, 0.0
      %v524 = vsel %vm411, %v518, 0.0
      %v525 = vsel %vm412, %v517, 0.0
      %v526 = vsel %vm413, %v516, 0.0
      %v527 = vsel %vm414, %v515, 0.0
      %v528 = vsel %vm415, %v514, 0.0
      %v529 = vsel %vm416, %v521, 0.0
      %v530 = vpack.c.bf16 %v523, %v522
      %v531 = vpack.c.bf16 %v525, %v524
      %v532 = vpack.c.bf16 %v527, %v526
      %v533 = vpack.c.bf16 %v529, %v528
      %v538 = vrot.slane %v530, 4
      %v539 = vrot.slane %v531, 4
      %v540 = vsel %vm487, %v538, %v539
      %v541 = vrot.slane %v532, 4
      %v542 = vsel %vm487, %v539, %v541
      %v543 = vrot.slane %v533, 4
      %v544 = vsel %vm487, %v541, %v543
      %550 = vst [vmem:[#allocation2 + $0x10] sm:$0xf0] %v538
      %551 = vst [vmem:[#allocation2 + $0x28] sm:$0xff] %v540
      %552 = vst [vmem:[#allocation2 + $0x40] sm:$0xff] %v542
      %553 = vst [vmem:[#allocation2 + $0x58] sm:$0xff] %v544
      %554 = vst [vmem:[#allocation2 + $0x70] sm:$0xf] %v543
      %v555 = vld [vmem:[#allocation2] sm:$0xff]
      %v556 = vld [vmem:[#allocation2 + $0x8] sm:$0xff]
      %v557 = vld [vmem:[#allocation2 + $0x10] sm:$0xff]
      %v558 = vld [vmem:[#allocation2 + $0x18] sm:$0xff]
      %v559 = vld [vmem:[#allocation2 + $0x20] sm:$0xff]
      %v560 = vld [vmem:[#allocation2 + $0x28] sm:$0xff]
      %v561 = vld [vmem:[#allocation2 + $0x30] sm:$0xff]
      %v562 = vld [vmem:[#allocation2 + $0x38] sm:$0xff]
      %v563 = vld [vmem:[#allocation2 + $0x40] sm:$0xff]
      %v564 = vld [vmem:[#allocation2 + $0x48] sm:$0xff]
      %v565 = vld [vmem:[#allocation2 + $0x50] sm:$0xff]
      %v566 = vld [vmem:[#allocation2 + $0x58] sm:$0xff]
      %v567 = vld [vmem:[%s1] sm:$0xf]
      %v568 = vld [vmem:[%s1 + $0x4] sm:$0xf]
      %v569 = vld [vmem:[%s1 + $0x8] sm:$0xf]
      %v570 = vld [vmem:[%s1 + $0xc] sm:$0xf]
      %v571 = vld [vmem:[%s1 + $0x10] sm:$0xf]
      %v572 = vld [vmem:[%s1 + $0x14] sm:$0xf]
      %v573 = vld [vmem:[%s1 + $0x18] sm:$0xf]
      %v574 = vld [vmem:[%s1 + $0x1c] sm:$0xf]
      %v575 = vld [vmem:[%s1 + $0x20] sm:$0xf]
      %v576 = vld [vmem:[%s1 + $0x24] sm:$0xf]
      %v577 = vld [vmem:[%s1 + $0x28] sm:$0xf]
      %v578 = vld [vmem:[%s1 + $0x2c] sm:$0xf]
      %v579 = vld [vmem:[%s1 + $0x30] sm:$0xf]
      %v580 = vld [vmem:[%s1 + $0x34] sm:$0xf]
      %v581 = vld [vmem:[%s1 + $0x38] sm:$0xf]
      %v582 = vld [vmem:[%s1 + $0x3c] sm:$0xf]
      %v583 = vld [vmem:[%s1 + $0x40] sm:$0xf]
      %v584 = vld [vmem:[%s1 + $0x44] sm:$0xf]
      %v585 = vld [vmem:[%s1 + $0x48] sm:$0xf]
      %v586 = vld [vmem:[%s1 + $0x4c] sm:$0xf]
      %v587 = vld [vmem:[%s1 + $0x50] sm:$0xf]
      %v588 = vld [vmem:[%s1 + $0x54] sm:$0xf]
      %v589 = vld [vmem:[%s1 + $0x58] sm:$0xf]
      %v590 = vld [vmem:[%s1 + $0x5c] sm:$0xf]
      %v591 = vld [vmem:[%s1 + $0x60] sm:$0xf]
      %v592 = vld [vmem:[%s1 + $0x64] sm:$0xf]
      %v593 = vld [vmem:[%s1 + $0x68] sm:$0xf]
      %v594 = vld [vmem:[%s1 + $0x6c] sm:$0xf]
      %v595 = vld [vmem:[%s1 + $0x70] sm:$0xf]
      %v596 = vld [vmem:[%s1 + $0x74] sm:$0xf]
      %v597 = vld [vmem:[%s1 + $0x78] sm:$0xf]
      %v598 = vld [vmem:[%s1 + $0x7c] sm:$0xf]
      %v599 = vld [vmem:[%s1 + $0x80] sm:$0xf]
      %v600 = vld [vmem:[%s1 + $0x84] sm:$0xf]
      %v601 = vld [vmem:[%s1 + $0x88] sm:$0xf]
      %v602 = vld [vmem:[%s1 + $0x8c] sm:$0xf]
      %v603 = vld [vmem:[%s1 + $0x90] sm:$0xf]
      %v604 = vld [vmem:[%s1 + $0x94] sm:$0xf]
      %v605 = vld [vmem:[%s1 + $0x98] sm:$0xf]
      %v606 = vld [vmem:[%s1 + $0x9c] sm:$0xf]
      %v607 = vld [vmem:[%s1 + $0xa0] sm:$0xf]
      %v608 = vld [vmem:[%s1 + $0xa4] sm:$0xf]
      %v609 = vld [vmem:[%s1 + $0xa8] sm:$0xf]
      %v610 = vld [vmem:[%s1 + $0xac] sm:$0xf]
      %v611 = vld [vmem:[%s1 + $0xb0] sm:$0xf]
      %v612 = vld [vmem:[%s1 + $0xb4] sm:$0xf]
      %v613 = vld [vmem:[%s1 + $0xb8] sm:$0xf]
      %v614 = vld [vmem:[%s1 + $0xbc] sm:$0xf]
      %v615 = vld [vmem:[#allocation2] sm:$0xf0]
      %v616 = vld [vmem:[#allocation2 + $0x8] sm:$0xf0]
      %v617 = vld [vmem:[#allocation2 + $0x10] sm:$0xf0]
      %v618 = vld [vmem:[#allocation2 + $0x18] sm:$0xff]
      %v619 = vld [vmem:[#allocation2 + $0x20] sm:$0xff]
      %v620 = vld [vmem:[#allocation2 + $0x28] sm:$0xff]
      %v621 = vld [vmem:[#allocation2 + $0x30] sm:$0xff]
      %v622 = vld [vmem:[#allocation2 + $0x38] sm:$0xff]
      %v623 = vld [vmem:[#allocation2 + $0x40] sm:$0xff]
      %v624 = vld [vmem:[#allocation2 + $0x48] sm:$0xff]
      %v625 = vld [vmem:[#allocation2 + $0x50] sm:$0xff]
      %v626 = vld [vmem:[#allocation2 + $0x58] sm:$0xff]
      %v627 = vld [vmem:[#allocation2 + $0x60] sm:$0xf]
      %v628 = vld [vmem:[#allocation2 + $0x68] sm:$0xf]
      %v629 = vld [vmem:[#allocation2 + $0x70] sm:$0xf]
      %s630 = scalar_lea.vmem %s1, 192
      %v631 = vld [vmem:[%s630] sm:$0xf]
      %v632 = vld [vmem:[%s630 + $0x4] sm:$0xf]
      %v633 = vld [vmem:[%s630 + $0x8] sm:$0xf]
      %v634 = vld [vmem:[%s630 + $0xc] sm:$0xf]
      %v635 = vld [vmem:[%s630 + $0x10] sm:$0xf]
      %v636 = vld [vmem:[%s630 + $0x14] sm:$0xf]
      %v637 = vld [vmem:[%s630 + $0x18] sm:$0xf]
      %v638 = vld [vmem:[%s630 + $0x1c] sm:$0xf]
      %v639 = vld [vmem:[%s630 + $0x20] sm:$0xf]
      %v640 = vld [vmem:[%s630 + $0x24] sm:$0xf]
      %v641 = vld [vmem:[%s630 + $0x28] sm:$0xf]
      %v642 = vld [vmem:[%s630 + $0x2c] sm:$0xf]
      %v643 = vld [vmem:[%s630 + $0x30] sm:$0xf]
      %v644 = vld [vmem:[%s630 + $0x34] sm:$0xf]
      %v645 = vld [vmem:[%s630 + $0x38] sm:$0xf]
      %v646 = vld [vmem:[%s630 + $0x3c] sm:$0xf]
      %v647 = vld [vmem:[%s630 + $0x40] sm:$0xf]
      %v648 = vld [vmem:[%s630 + $0x44] sm:$0xf]
      %v649 = vld [vmem:[%s630 + $0x48] sm:$0xf]
      %v650 = vld [vmem:[%s630 + $0x4c] sm:$0xf]
      %v651 = vld [vmem:[%s630 + $0x50] sm:$0xf]
      %v652 = vld [vmem:[%s630 + $0x54] sm:$0xf]
      %v653 = vld [vmem:[%s630 + $0x58] sm:$0xf]
      %v654 = vld [vmem:[%s630 + $0x5c] sm:$0xf]
      %v655 = vld [vmem:[%s630 + $0x60] sm:$0xf]
      %v656 = vld [vmem:[%s630 + $0x64] sm:$0xf]
      %v657 = vld [vmem:[%s630 + $0x68] sm:$0xf]
      %v658 = vld [vmem:[%s630 + $0x6c] sm:$0xf]
      %v659 = vld [vmem:[%s630 + $0x70] sm:$0xf]
      %v660 = vld [vmem:[%s630 + $0x74] sm:$0xf]
      %v661 = vld [vmem:[%s630 + $0x78] sm:$0xf]
      %v662 = vld [vmem:[%s630 + $0x7c] sm:$0xf]
      %v663 = vld [vmem:[%s630 + $0x80] sm:$0xf]
      %v664 = vld [vmem:[%s630 + $0x84] sm:$0xf]
      %v665 = vld [vmem:[%s630 + $0x88] sm:$0xf]
      %v666 = vld [vmem:[%s630 + $0x8c] sm:$0xf]
      %v667 = vld [vmem:[%s630 + $0x90] sm:$0xf]
      %v668 = vld [vmem:[%s630 + $0x94] sm:$0xf]
      %v669 = vld [vmem:[%s630 + $0x98] sm:$0xf]
      %v670 = vld [vmem:[%s630 + $0x9c] sm:$0xf]
      %v671 = vld [vmem:[%s630 + $0xa0] sm:$0xf]
      %v672 = vld [vmem:[%s630 + $0xa4] sm:$0xf]
      %v673 = vld [vmem:[%s630 + $0xa8] sm:$0xf]
      %v674 = vld [vmem:[%s630 + $0xac] sm:$0xf]
      %v675 = vld [vmem:[%s630 + $0xb0] sm:$0xf]
      %v676 = vld [vmem:[%s630 + $0xb4] sm:$0xf]
      %v677 = vld [vmem:[%s630 + $0xb8] sm:$0xf]
      %v678 = vld [vmem:[%s630 + $0xbc] sm:$0xf]
      %v694 = vrot.slane %v615, 4
      %v695 = vrot.slane %v618, 4
      %v696 = vsel %vm487, %v694, %v695
      %v697 = vrot.slane %v616, 4
      %v698 = vrot.slane %v619, 4
      %v699 = vsel %vm487, %v697, %v698
      %v700 = vrot.slane %v617, 4
      %v701 = vrot.slane %v620, 4
      %v702 = vsel %vm487, %v700, %v701
      %v703 = vrot.slane %v621, 4
      %v704 = vsel %vm487, %v695, %v703
      %v705 = vrot.slane %v622, 4
      %v706 = vsel %vm487, %v698, %v705
      %v707 = vrot.slane %v623, 4
      %v708 = vsel %vm487, %v701, %v707
      %v709 = vrot.slane %v624, 4
      %v710 = vsel %vm487, %v703, %v709
      %v711 = vrot.slane %v625, 4
      %v712 = vsel %vm487, %v705, %v711
      %v713 = vrot.slane %v626, 4
      %v714 = vsel %vm487, %v707, %v713
      %v715 = vrot.slane %v627, 4
      %v716 = vsel %vm487, %v709, %v715
      %v717 = vrot.slane %v628, 4
      %v718 = vsel %vm487, %v711, %v717
      %v719 = vrot.slane %v629, 4
      %v720 = vsel %vm487, %v713, %v719
      %v781 = vunpack.c.l.b16 %v631
      %v782 = vunpack.c.l.b16 %v632
      %v783 = vunpack.c.l.b16 %v633
      %v784 = vunpack.c.l.b16 %v634
      %v785 = vunpack.c.l.b16 %v635
      %v786 = vunpack.c.l.b16 %v636
      %v787 = vunpack.c.l.b16 %v637
      %v788 = vunpack.c.l.b16 %v638
      %v789 = vunpack.c.l.b16 %v639
      %v790 = vunpack.c.l.b16 %v640
      %v791 = vunpack.c.l.b16 %v641
      %v792 = vunpack.c.l.b16 %v642
      %v793 = vunpack.c.l.b16 %v643
      %v794 = vunpack.c.l.b16 %v644
      %v795 = vunpack.c.l.b16 %v645
      %v796 = vunpack.c.l.b16 %v646
      %v797 = vunpack.c.l.b16 %v647
      %v798 = vunpack.c.l.b16 %v648
      %v799 = vunpack.c.l.b16 %v649
      %v800 = vunpack.c.l.b16 %v650
      %v801 = vunpack.c.l.b16 %v651
      %v802 = vunpack.c.l.b16 %v652
      %v803 = vunpack.c.l.b16 %v653
      %v804 = vunpack.c.l.b16 %v654
      %v805 = vunpack.c.l.b16 %v655
      %v806 = vunpack.c.l.b16 %v656
      %v807 = vunpack.c.l.b16 %v657
      %v808 = vunpack.c.l.b16 %v658
      %v809 = vunpack.c.l.b16 %v659
      %v810 = vunpack.c.l.b16 %v660
      %v811 = vunpack.c.l.b16 %v661
      %v812 = vunpack.c.l.b16 %v662
      %v813 = vunpack.c.l.b16 %v663
      %v814 = vunpack.c.l.b16 %v664
      %v815 = vunpack.c.l.b16 %v665
      %v816 = vunpack.c.l.b16 %v666
      %v817 = vunpack.c.l.b16 %v667
      %v818 = vunpack.c.l.b16 %v668
      %v819 = vunpack.c.l.b16 %v669
      %v820 = vunpack.c.l.b16 %v670
      %v821 = vunpack.c.l.b16 %v671
      %v822 = vunpack.c.l.b16 %v672
      %v823 = vunpack.c.l.b16 %v673
      %v824 = vunpack.c.l.b16 %v674
      %v825 = vunpack.c.l.b16 %v675
      %v826 = vunpack.c.l.b16 %v676
      %v827 = vunpack.c.l.b16 %v677
      %v828 = vunpack.c.l.b16 %v678
      %v829 = vpack.c.b16 %v782, %v781
      %v830 = vpack.c.b16 %v784, %v783
      %v831 = vpack.c.b16 %v786, %v785
      %v832 = vpack.c.b16 %v788, %v787
      %v833 = vpack.c.b16 %v790, %v789
      %v834 = vpack.c.b16 %v792, %v791
      %v835 = vpack.c.b16 %v794, %v793
      %v836 = vpack.c.b16 %v796, %v795
      %v837 = vpack.c.b16 %v798, %v797
      %v838 = vpack.c.b16 %v800, %v799
      %v839 = vpack.c.b16 %v802, %v801
      %v840 = vpack.c.b16 %v804, %v803
      %v841 = vpack.c.b16 %v806, %v805
      %v842 = vpack.c.b16 %v808, %v807
      %v843 = vpack.c.b16 %v810, %v809
      %v844 = vpack.c.b16 %v812, %v811
      %v845 = vpack.c.b16 %v814, %v813
      %v846 = vpack.c.b16 %v816, %v815
      %v847 = vpack.c.b16 %v818, %v817
      %v848 = vpack.c.b16 %v820, %v819
      %v849 = vpack.c.b16 %v822, %v821
      %v850 = vpack.c.b16 %v824, %v823
      %v851 = vpack.c.b16 %v826, %v825
      %v852 = vpack.c.b16 %v828, %v827
      %877 = vmatprep.subr.bf16.mxu0 0
      %878 = vmatpush1.bf16.msra.mxu0 %v829
      %879 = vmatprep.subr.bf16.mxu0 0
      %880 = vmatpush1.bf16.msra.mxu0 %v830
      %881 = vmatprep.subr.bf16.mxu0 0
      %882 = vmatpush1.bf16.msra.mxu0 %v831
      %883 = vmatprep.subr.bf16.mxu0 0
      %884 = vmatpush1.bf16.msra.mxu0 %v832
      %885 = vmatprep.subr.bf16.mxu0 0
      %886 = vmatpush1.bf16.msra.mxu0 %v833
      %887 = vmatprep.subr.bf16.mxu0 0
      %888 = vmatpush1.bf16.msra.mxu0 %v834
      %889 = vmatprep.subr.bf16.mxu0 0
      %890 = vmatpush1.bf16.msra.mxu0 %v835
      %891 = vmatprep.subr.bf16.mxu0 0
      %892 = vmatpush1.bf16.msra.mxu0 %v836
      %893 = vmatprep.subr.bf16.mxu0 0
      %894 = vmatpush1.bf16.msra.mxu0 %v837
      %895 = vmatprep.subr.bf16.mxu0 0
      %896 = vmatpush1.bf16.msra.mxu0 %v838
      %897 = vmatprep.subr.bf16.mxu0 0
      %898 = vmatpush1.bf16.msra.mxu0 %v839
      %899 = vmatprep.subr.bf16.mxu0 0
      %900 = vmatpush1.bf16.msra.mxu0 %v840
      %901 = vmatprep.subr.bf16.mxu0 0
      %902 = vmatpush1.bf16.msra.mxu0 %v841
      %903 = vmatprep.subr.bf16.mxu0 0
      %904 = vmatpush1.bf16.msra.mxu0 %v842
      %905 = vmatprep.subr.bf16.mxu0 0
      %906 = vmatpush1.bf16.msra.mxu0 %v843
      %907 = vmatprep.subr.bf16.mxu0 0
      %908 = vmatpush1.bf16.msra.mxu0 %v844
      %909 = vmatprep.mubr.bf16.mxu0 %v699
      %910 = vmatmul.mubr.bf16.gmra.mrb[0].mxu0 %v696
      %v911 = vpop.f32.mrb[0].mxu0
      %v912 = vadd.f32 0.0, %v911
      %v913 = vpop.f32.mrb[0].mxu0
      %v914 = vpop.f32.mrb[0].mxu0
      %v915 = vadd.f32 0.0, %v914
      %v916 = vpop.f32.mrb[0].mxu0
      %917 = vmatprep.mubr.bf16.mxu0 %v706
      %918 = vmatmul.mubr.bf16.gmra.mrb[0].mxu0 %v704
      %v919 = vpop.f32.mrb[0].mxu0
      %v920 = vadd.f32 0.0, %v919
      %v921 = vpop.f32.mrb[0].mxu0
      %v922 = vpop.f32.mrb[0].mxu0
      %v923 = vadd.f32 0.0, %v922
      %v924 = vpop.f32.mrb[0].mxu0
      %925 = vmatprep.mubr.bf16.mxu0 %v712
      %926 = vmatmul.mubr.bf16.gmra.mrb[0].mxu0 %v710
      %v927 = vpop.f32.mrb[0].mxu0
      %v928 = vadd.f32 0.0, %v927
      %v929 = vpop.f32.mrb[0].mxu0
      %v930 = vpop.f32.mrb[0].mxu0
      %v931 = vadd.f32 0.0, %v930
      %v932 = vpop.f32.mrb[0].mxu0
      %933 = vmatprep.mubr.bf16.mxu0 %v718
      %934 = vmatmul.mubr.bf16.gmra.mrb[0].mxu0 %v716
      %v935 = vpop.f32.mrb[0].mxu0
      %v936 = vadd.f32 0.0, %v935
      %v937 = vpop.f32.mrb[0].mxu0
      %v938 = vpop.f32.mrb[0].mxu0
      %v939 = vadd.f32 0.0, %v938
      %v940 = vpop.f32.mrb[0].mxu0
      %941 = vdwg.mxu0
      %942 = vmatprep.subr.bf16.mxu0 0
      %943 = vmatpush1.bf16.msra.mxu0 %v845
      %944 = vmatprep.subr.bf16.mxu0 0
      %945 = vmatpush1.bf16.msra.mxu0 %v846
      %946 = vmatprep.subr.bf16.mxu0 0
      %947 = vmatpush1.bf16.msra.mxu0 %v847
      %948 = vmatprep.subr.bf16.mxu0 0
      %949 = vmatpush1.bf16.msra.mxu0 %v848
      %950 = vmatprep.subr.bf16.mxu0 0
      %951 = vmatpush1.bf16.msra.mxu0 %v849
      %952 = vmatprep.subr.bf16.mxu0 0
      %953 = vmatpush1.bf16.msra.mxu0 %v850
      %954 = vmatprep.subr.bf16.mxu0 0
      %955 = vmatpush1.bf16.msra.mxu0 %v851
      %956 = vmatprep.subr.bf16.mxu0 0
      %957 = vmatpush1.bf16.msra.mxu0 %v852
      %958 = vmatprep.subr.bf16.mxu0 0
      %959 = vmatpush1.bf16.msra.mxu0 0
      %960 = vmatprep.subr.bf16.mxu0 0
      %961 = vmatpush1.bf16.msra.mxu0 0
      %962 = vmatprep.subr.bf16.mxu0 0
      %963 = vmatpush1.bf16.msra.mxu0 0
      %964 = vmatprep.subr.bf16.mxu0 0
      %965 = vmatpush1.bf16.msra.mxu0 0
      %966 = vmatprep.subr.bf16.mxu0 0
      %967 = vmatpush1.bf16.msra.mxu0 0
      %968 = vmatprep.subr.bf16.mxu0 0
      %969 = vmatpush1.bf16.msra.mxu0 0
      %970 = vmatprep.subr.bf16.mxu0 0
      %971 = vmatpush1.bf16.msra.mxu0 0
      %972 = vmatprep.subr.bf16.mxu0 0
      %973 = vmatpush1.bf16.msra.mxu0 0
      %974 = vmatprep.mubr.bf16.mxu0 0
      %975 = vmatmul.mubr.bf16.gmra.mrb[0].mxu0 %v702
      %v976 = vpop.f32.mrb[0].mxu0
      %v977 = vadd.f32 %v912, %v976
      %v978 = vpop.f32.mrb[0].mxu0
      %v979 = vpop.f32.mrb[0].mxu0
      %v980 = vadd.f32 %v915, %v979
      %v981 = vpop.f32.mrb[0].mxu0
      %982 = vmatprep.mubr.bf16.mxu0 0
      %983 = vmatmul.mubr.bf16.gmra.mrb[0].mxu0 %v708
      %v984 = vpop.f32.mrb[0].mxu0
      %v985 = vadd.f32 %v920, %v984
      %v986 = vpop.f32.mrb[0].mxu0
      %v987 = vpop.f32.mrb[0].mxu0
      %v988 = vadd.f32 %v923, %v987
      %v989 = vpop.f32.mrb[0].mxu0
      %990 = vmatprep.mubr.bf16.mxu0 0
      %991 = vmatmul.mubr.bf16.gmra.mrb[0].mxu0 %v714
      %v992 = vpop.f32.mrb[0].mxu0
      %v993 = vadd.f32 %v928, %v992
      %v994 = vpop.f32.mrb[0].mxu0
      %v995 = vpop.f32.mrb[0].mxu0
      %v996 = vadd.f32 %v931, %v995
      %v997 = vpop.f32.mrb[0].mxu0
      %998 = vmatprep.mubr.bf16.mxu0 0
      %999 = vmatmul.mubr.bf16.gmra.mrb[0].mxu0 %v720
      %v1000 = vpop.f32.mrb[0].mxu0
      %v1001 = vadd.f32 %v936, %v1000
      %v1002 = vpop.f32.mrb[0].mxu0
      %v1003 = vpop.f32.mrb[0].mxu0
      %v1004 = vadd.f32 %v939, %v1003
      %v1005 = vpop.f32.mrb[0].mxu0
      %1006 = vdwg.mxu0
      %v1055 = vunpack.c.l.b16 %v567
      %v1056 = vunpack.c.l.b16 %v568
      %v1057 = vunpack.c.l.b16 %v569
      %v1058 = vunpack.c.l.b16 %v570
      %v1059 = vunpack.c.l.b16 %v571
      %v1060 = vunpack.c.l.b16 %v572
      %v1061 = vunpack.c.l.b16 %v573
      %v1062 = vunpack.c.l.b16 %v574
      %v1063 = vunpack.c.l.b16 %v575
      %v1064 = vunpack.c.l.b16 %v576
      %v1065 = vunpack.c.l.b16 %v577
      %v1066 = vunpack.c.l.b16 %v578
      %v1067 = vunpack.c.l.b16 %v579
      %v1068 = vunpack.c.l.b16 %v580
      %v1069 = vunpack.c.l.b16 %v581
      %v1070 = vunpack.c.l.b16 %v582
      %v1071 = vunpack.c.l.b16 %v583
      %v1072 = vunpack.c.l.b16 %v584
      %v1073 = vunpack.c.l.b16 %v585
      %v1074 = vunpack.c.l.b16 %v586
      %v1075 = vunpack.c.l.b16 %v587
      %v1076 = vunpack.c.l.b16 %v588
      %v1077 = vunpack.c.l.b16 %v589
      %v1078 = vunpack.c.l.b16 %v590
      %v1079 = vunpack.c.l.b16 %v591
      %v1080 = vunpack.c.l.b16 %v592
      %v1081 = vunpack.c.l.b16 %v593
      %v1082 = vunpack.c.l.b16 %v594
      %v1083 = vunpack.c.l.b16 %v595
      %v1084 = vunpack.c.l.b16 %v596
      %v1085 = vunpack.c.l.b16 %v597
      %v1086 = vunpack.c.l.b16 %v598
      %v1087 = vunpack.c.l.b16 %v599
      %v1088 = vunpack.c.l.b16 %v600
      %v1089 = vunpack.c.l.b16 %v601
      %v1090 = vunpack.c.l.b16 %v602
      %v1091 = vunpack.c.l.b16 %v603
      %v1092 = vunpack.c.l.b16 %v604
      %v1093 = vunpack.c.l.b16 %v605
      %v1094 = vunpack.c.l.b16 %v606
      %v1095 = vunpack.c.l.b16 %v607
      %v1096 = vunpack.c.l.b16 %v608
      %v1097 = vunpack.c.l.b16 %v609
      %v1098 = vunpack.c.l.b16 %v610
      %v1099 = vunpack.c.l.b16 %v611
      %v1100 = vunpack.c.l.b16 %v612
      %v1101 = vunpack.c.l.b16 %v613
      %v1102 = vunpack.c.l.b16 %v614
      %v1103 = vpack.c.b16 %v1056, %v1055
      %v1104 = vpack.c.b16 %v1058, %v1057
      %v1105 = vpack.c.b16 %v1060, %v1059
      %v1106 = vpack.c.b16 %v1062, %v1061
      %v1107 = vpack.c.b16 %v1064, %v1063
      %v1108 = vpack.c.b16 %v1066, %v1065
      %v1109 = vpack.c.b16 %v1068, %v1067
      %v1110 = vpack.c.b16 %v1070, %v1069
      %v1111 = vpack.c.b16 %v1072, %v1071
      %v1112 = vpack.c.b16 %v1074, %v1073
      %v1113 = vpack.c.b16 %v1076, %v1075
      %v1114 = vpack.c.b16 %v1078, %v1077
      %v1115 = vpack.c.b16 %v1080, %v1079
      %v1116 = vpack.c.b16 %v1082, %v1081
      %v1117 = vpack.c.b16 %v1084, %v1083
      %v1118 = vpack.c.b16 %v1086, %v1085
      %v1119 = vpack.c.b16 %v1088, %v1087
      %v1120 = vpack.c.b16 %v1090, %v1089
      %v1121 = vpack.c.b16 %v1092, %v1091
      %v1122 = vpack.c.b16 %v1094, %v1093
      %v1123 = vpack.c.b16 %v1096, %v1095
      %v1124 = vpack.c.b16 %v1098, %v1097
      %v1125 = vpack.c.b16 %v1100, %v1099
      %v1126 = vpack.c.b16 %v1102, %v1101
      %1151 = vmatprep.subr.bf16.mxu0 0
      %1152 = vmatpush1.bf16.msra.mxu0 %v1103
      %1153 = vmatprep.subr.bf16.mxu0 0
      %1154 = vmatpush1.bf16.msra.mxu0 %v1104
      %1155 = vmatprep.subr.bf16.mxu0 0
      %1156 = vmatpush1.bf16.msra.mxu0 %v1105
      %1157 = vmatprep.subr.bf16.mxu0 0
      %1158 = vmatpush1.bf16.msra.mxu0 %v1106
      %1159 = vmatprep.subr.bf16.mxu0 0
      %1160 = vmatpush1.bf16.msra.mxu0 %v1107
      %1161 = vmatprep.subr.bf16.mxu0 0
      %1162 = vmatpush1.bf16.msra.mxu0 %v1108
      %1163 = vmatprep.subr.bf16.mxu0 0
      %1164 = vmatpush1.bf16.msra.mxu0 %v1109
      %1165 = vmatprep.subr.bf16.mxu0 0
      %1166 = vmatpush1.bf16.msra.mxu0 %v1110
      %1167 = vmatprep.subr.bf16.mxu0 0
      %1168 = vmatpush1.bf16.msra.mxu0 %v1111
      %1169 = vmatprep.subr.bf16.mxu0 0
      %1170 = vmatpush1.bf16.msra.mxu0 %v1112
      %1171 = vmatprep.subr.bf16.mxu0 0
      %1172 = vmatpush1.bf16.msra.mxu0 %v1113
      %1173 = vmatprep.subr.bf16.mxu0 0
      %1174 = vmatpush1.bf16.msra.mxu0 %v1114
      %1175 = vmatprep.subr.bf16.mxu0 0
      %1176 = vmatpush1.bf16.msra.mxu0 %v1115
      %1177 = vmatprep.subr.bf16.mxu0 0
      %1178 = vmatpush1.bf16.msra.mxu0 %v1116
      %1179 = vmatprep.subr.bf16.mxu0 0
      %1180 = vmatpush1.bf16.msra.mxu0 %v1117
      %1181 = vmatprep.subr.bf16.mxu0 0
      %1182 = vmatpush1.bf16.msra.mxu0 %v1118
      %1183 = vmatprep.mubr.bf16.mxu0 %v556
      %1184 = vmatmul.mubr.bf16.gmra.mrb[0].mxu0 %v555
      %v1185 = vpop.f32.mrb[0].mxu0
      %v1186 = vadd.f32 %v977, %v1185
      %v1187 = vpop.f32.mrb[0].mxu0
      %v1188 = vpop.f32.mrb[0].mxu0
      %v1189 = vadd.f32 %v980, %v1188
      %v1190 = vpop.f32.mrb[0].mxu0
      %1191 = vmatprep.mubr.bf16.mxu0 %v559
      %1192 = vmatmul.mubr.bf16.gmra.mrb[0].mxu0 %v558
      %v1193 = vpop.f32.mrb[0].mxu0
      %v1194 = vadd.f32 %v985, %v1193
      %v1195 = vpop.f32.mrb[0].mxu0
      %v1196 = vpop.f32.mrb[0].mxu0
      %v1197 = vadd.f32 %v988, %v1196
      %v1198 = vpop.f32.mrb[0].mxu0
      %1199 = vmatprep.mubr.bf16.mxu0 %v562
      %1200 = vmatmul.mubr.bf16.gmra.mrb[0].mxu0 %v561
      %v1201 = vpop.f32.mrb[0].mxu0
      %v1202 = vadd.f32 %v993, %v1201
      %v1203 = vpop.f32.mrb[0].mxu0
      %v1204 = vpop.f32.mrb[0].mxu0
      %v1205 = vadd.f32 %v996, %v1204
      %v1206 = vpop.f32.mrb[0].mxu0
      %1207 = vmatprep.mubr.bf16.mxu0 %v565
      %1208 = vmatmul.mubr.bf16.gmra.mrb[0].mxu0 %v564
      %v1209 = vpop.f32.mrb[0].mxu0
      %v1210 = vadd.f32 %v1001, %v1209
      %v1211 = vpop.f32.mrb[0].mxu0
      %v1212 = vpop.f32.mrb[0].mxu0
      %v1213 = vadd.f32 %v1004, %v1212
      %v1214 = vpop.f32.mrb[0].mxu0
      %1215 = vdwg.mxu0
      %1216 = vmatprep.subr.bf16.mxu0 0
      %1217 = vmatpush1.bf16.msra.mxu0 %v1119
      %1218 = vmatprep.subr.bf16.mxu0 0
      %1219 = vmatpush1.bf16.msra.mxu0 %v1120
      %1220 = vmatprep.subr.bf16.mxu0 0
      %1221 = vmatpush1.bf16.msra.mxu0 %v1121
      %1222 = vmatprep.subr.bf16.mxu0 0
      %1223 = vmatpush1.bf16.msra.mxu0 %v1122
      %1224 = vmatprep.subr.bf16.mxu0 0
      %1225 = vmatpush1.bf16.msra.mxu0 %v1123
      %1226 = vmatprep.subr.bf16.mxu0 0
      %1227 = vmatpush1.bf16.msra.mxu0 %v1124
      %1228 = vmatprep.subr.bf16.mxu0 0
      %1229 = vmatpush1.bf16.msra.mxu0 %v1125
      %1230 = vmatprep.subr.bf16.mxu0 0
      %1231 = vmatpush1.bf16.msra.mxu0 %v1126
      %1232 = vmatprep.subr.bf16.mxu0 0
      %1233 = vmatpush1.bf16.msra.mxu0 0
      %1234 = vmatprep.subr.bf16.mxu0 0
      %1235 = vmatpush1.bf16.msra.mxu0 0
      %1236 = vmatprep.subr.bf16.mxu0 0
      %1237 = vmatpush1.bf16.msra.mxu0 0
      %1238 = vmatprep.subr.bf16.mxu0 0
      %1239 = vmatpush1.bf16.msra.mxu0 0
      %1240 = vmatprep.subr.bf16.mxu0 0
      %1241 = vmatpush1.bf16.msra.mxu0 0
      %1242 = vmatprep.subr.bf16.mxu0 0
      %1243 = vmatpush1.bf16.msra.mxu0 0
      %1244 = vmatprep.subr.bf16.mxu0 0
      %1245 = vmatpush1.bf16.msra.mxu0 0
      %1246 = vmatprep.subr.bf16.mxu0 0
      %1247 = vmatpush1.bf16.msra.mxu0 0
      %1248 = vmatprep.mubr.bf16.mxu0 0
      %1249 = vmatmul.mubr.bf16.gmra.mrb[0].mxu0 %v557
      %v1250 = vpop.f32.mrb[0].mxu0
      %v1251 = vadd.f32 %v1186, %v1250
      %v1252 = vpop.f32.mrb[0].mxu0
      %v1253 = vpop.f32.mrb[0].mxu0
      %v1254 = vadd.f32 %v1189, %v1253
      %v1255 = vpop.f32.mrb[0].mxu0
      %1256 = vmatprep.mubr.bf16.mxu0 0
      %1257 = vmatmul.mubr.bf16.gmra.mrb[0].mxu0 %v560
      %v1258 = vpop.f32.mrb[0].mxu0
      %v1259 = vadd.f32 %v1194, %v1258
      %v1260 = vpop.f32.mrb[0].mxu0
      %v1261 = vpop.f32.mrb[0].mxu0
      %v1262 = vadd.f32 %v1197, %v1261
      %v1263 = vpop.f32.mrb[0].mxu0
      %1264 = vmatprep.mubr.bf16.mxu0 0
      %1265 = vmatmul.mubr.bf16.gmra.mrb[0].mxu0 %v563
      %v1266 = vpop.f32.mrb[0].mxu0
      %v1267 = vadd.f32 %v1202, %v1266
      %v1268 = vpop.f32.mrb[0].mxu0
      %v1269 = vpop.f32.mrb[0].mxu0
      %v1270 = vadd.f32 %v1205, %v1269
      %v1271 = vpop.f32.mrb[0].mxu0
      %1272 = vmatprep.mubr.bf16.mxu0 0
      %1273 = vmatmul.mubr.bf16.gmra.mrb[0].mxu0 %v566
      %v1274 = vpop.f32.mrb[0].mxu0
      %v1275 = vadd.f32 %v1210, %v1274
      %v1276 = vpop.f32.mrb[0].mxu0
      %v1277 = vpop.f32.mrb[0].mxu0
      %v1278 = vadd.f32 %v1213, %v1277
      %v1279 = vpop.f32.mrb[0].mxu0
      %1280 = vdwg.mxu0
      %v1281 = vld [vmem:[#allocation2 + $0x60] sm:$0xff]
      %v1282 = vld [vmem:[#allocation2 + $0x68] sm:$0xff]
      %v1283 = vld [vmem:[#allocation2 + $0x70] sm:$0xff]
      %s1284 = scalar_lea.vmem %s1, 384
      %v1285 = vld [vmem:[%s1284] sm:$0xf]
      %v1286 = vld [vmem:[%s1284 + $0x4] sm:$0xf]
      %v1287 = vld [vmem:[%s1284 + $0x8] sm:$0xf]
      %v1288 = vld [vmem:[%s1284 + $0xc] sm:$0xf]
      %v1289 = vld [vmem:[%s1284 + $0x10] sm:$0xf]
      %v1290 = vld [vmem:[%s1284 + $0x14] sm:$0xf]
      %v1291 = vld [vmem:[%s1284 + $0x18] sm:$0xf]
      %v1292 = vld [vmem:[%s1284 + $0x1c] sm:$0xf]
      %v1293 = vld [vmem:[%s1284 + $0x20] sm:$0xf]
      %v1294 = vld [vmem:[%s1284 + $0x24] sm:$0xf]
      %v1295 = vld [vmem:[%s1284 + $0x28] sm:$0xf]
      %v1296 = vld [vmem:[%s1284 + $0x2c] sm:$0xf]
      %v1297 = vld [vmem:[%s1284 + $0x30] sm:$0xf]
      %v1298 = vld [vmem:[%s1284 + $0x34] sm:$0xf]
      %v1299 = vld [vmem:[%s1284 + $0x38] sm:$0xf]
      %v1300 = vld [vmem:[%s1284 + $0x3c] sm:$0xf]
      %v1301 = vld [vmem:[%s1284 + $0x40] sm:$0xf]
      %v1302 = vld [vmem:[%s1284 + $0x44] sm:$0xf]
      %v1303 = vld [vmem:[%s1284 + $0x48] sm:$0xf]
      %v1304 = vld [vmem:[%s1284 + $0x4c] sm:$0xf]
      %v1305 = vld [vmem:[%s1284 + $0x50] sm:$0xf]
      %v1306 = vld [vmem:[%s1284 + $0x54] sm:$0xf]
      %v1307 = vld [vmem:[%s1284 + $0x58] sm:$0xf]
      %v1308 = vld [vmem:[%s1284 + $0x5c] sm:$0xf]
      %v1309 = vld [vmem:[%s1284 + $0x60] sm:$0xf]
      %v1310 = vld [vmem:[%s1284 + $0x64] sm:$0xf]
      %v1311 = vld [vmem:[%s1284 + $0x68] sm:$0xf]
      %v1312 = vld [vmem:[%s1284 + $0x6c] sm:$0xf]
      %v1313 = vld [vmem:[%s1284 + $0x70] sm:$0xf]
      %v1314 = vld [vmem:[%s1284 + $0x74] sm:$0xf]
      %v1315 = vld [vmem:[%s1284 + $0x78] sm:$0xf]
      %v1316 = vld [vmem:[%s1284 + $0x7c] sm:$0xf]
      %v1317 = vld [vmem:[%s1284 + $0x80] sm:$0xf]
      %v1318 = vld [vmem:[%s1284 + $0x84] sm:$0xf]
      %v1319 = vld [vmem:[%s1284 + $0x88] sm:$0xf]
      %v1320 = vld [vmem:[%s1284 + $0x8c] sm:$0xf]
      %v1321 = vld [vmem:[%s1284 + $0x90] sm:$0xf]
      %v1322 = vld [vmem:[%s1284 + $0x94] sm:$0xf]
      %v1323 = vld [vmem:[%s1284 + $0x98] sm:$0xf]
      %v1324 = vld [vmem:[%s1284 + $0x9c] sm:$0xf]
      %v1325 = vld [vmem:[%s1284 + $0xa0] sm:$0xf]
      %v1326 = vld [vmem:[%s1284 + $0xa4] sm:$0xf]
      %v1327 = vld [vmem:[%s1284 + $0xa8] sm:$0xf]
      %v1328 = vld [vmem:[%s1284 + $0xac] sm:$0xf]
      %v1329 = vld [vmem:[%s1284 + $0xb0] sm:$0xf]
      %v1330 = vld [vmem:[%s1284 + $0xb4] sm:$0xf]
      %v1331 = vld [vmem:[%s1284 + $0xb8] sm:$0xf]
      %v1332 = vld [vmem:[%s1284 + $0xbc] sm:$0xf]
      %v1381 = vunpack.c.l.b16 %v1285
      %v1382 = vunpack.c.l.b16 %v1286
      %v1383 = vunpack.c.l.b16 %v1287
      %v1384 = vunpack.c.l.b16 %v1288
      %v1385 = vunpack.c.l.b16 %v1289
      %v1386 = vunpack.c.l.b16 %v1290
      %v1387 = vunpack.c.l.b16 %v1291
      %v1388 = vunpack.c.l.b16 %v1292
      %v1389 = vunpack.c.l.b16 %v1293
      %v1390 = vunpack.c.l.b16 %v1294
      %v1391 = vunpack.c.l.b16 %v1295
      %v1392 = vunpack.c.l.b16 %v1296
      %v1393 = vunpack.c.l.b16 %v1297
      %v1394 = vunpack.c.l.b16 %v1298
      %v1395 = vunpack.c.l.b16 %v1299
      %v1396 = vunpack.c.l.b16 %v1300
      %v1397 = vunpack.c.l.b16 %v1301
      %v1398 = vunpack.c.l.b16 %v1302
      %v1399 = vunpack.c.l.b16 %v1303
      %v1400 = vunpack.c.l.b16 %v1304
      %v1401 = vunpack.c.l.b16 %v1305
      %v1402 = vunpack.c.l.b16 %v1306
      %v1403 = vunpack.c.l.b16 %v1307
      %v1404 = vunpack.c.l.b16 %v1308
      %v1405 = vunpack.c.l.b16 %v1309
      %v1406 = vunpack.c.l.b16 %v1310
      %v1407 = vunpack.c.l.b16 %v1311
      %v1408 = vunpack.c.l.b16 %v1312
      %v1409 = vunpack.c.l.b16 %v1313
      %v1410 = vunpack.c.l.b16 %v1314
      %v1411 = vunpack.c.l.b16 %v1315
      %v1412 = vunpack.c.l.b16 %v1316
      %v1413 = vunpack.c.l.b16 %v1317
      %v1414 = vunpack.c.l.b16 %v1318
      %v1415 = vunpack.c.l.b16 %v1319
      %v1416 = vunpack.c.l.b16 %v1320
      %v1417 = vunpack.c.l.b16 %v1321
      %v1418 = vunpack.c.l.b16 %v1322
      %v1419 = vunpack.c.l.b16 %v1323
      %v1420 = vunpack.c.l.b16 %v1324
      %v1421 = vunpack.c.l.b16 %v1325
      %v1422 = vunpack.c.l.b16 %v1326
      %v1423 = vunpack.c.l.b16 %v1327
      %v1424 = vunpack.c.l.b16 %v1328
      %v1425 = vunpack.c.l.b16 %v1329
      %v1426 = vunpack.c.l.b16 %v1330
      %v1427 = vunpack.c.l.b16 %v1331
      %v1428 = vunpack.c.l.b16 %v1332
      %v1429 = vpack.c.b16 %v1382, %v1381
      %v1430 = vpack.c.b16 %v1384, %v1383
      %v1431 = vpack.c.b16 %v1386, %v1385
      %v1432 = vpack.c.b16 %v1388, %v1387
      %v1433 = vpack.c.b16 %v1390, %v1389
      %v1434 = vpack.c.b16 %v1392, %v1391
      %v1435 = vpack.c.b16 %v1394, %v1393
      %v1436 = vpack.c.b16 %v1396, %v1395
      %v1437 = vpack.c.b16 %v1398, %v1397
      %v1438 = vpack.c.b16 %v1400, %v1399
      %v1439 = vpack.c.b16 %v1402, %v1401
      %v1440 = vpack.c.b16 %v1404, %v1403
      %v1441 = vpack.c.b16 %v1406, %v1405
      %v1442 = vpack.c.b16 %v1408, %v1407
      %v1443 = vpack.c.b16 %v1410, %v1409
      %v1444 = vpack.c.b16 %v1412, %v1411
      %v1445 = vpack.c.b16 %v1414, %v1413
      %v1446 = vpack.c.b16 %v1416, %v1415
      %v1447 = vpack.c.b16 %v1418, %v1417
      %v1448 = vpack.c.b16 %v1420, %v1419
      %v1449 = vpack.c.b16 %v1422, %v1421
      %v1450 = vpack.c.b16 %v1424, %v1423
      %v1451 = vpack.c.b16 %v1426, %v1425
      %v1452 = vpack.c.b16 %v1428, %v1427
      %1477 = vmatprep.subr.bf16.mxu0 0
      %1478 = vmatpush1.bf16.msra.mxu0 %v1429
      %1479 = vmatprep.subr.bf16.mxu0 0
      %1480 = vmatpush1.bf16.msra.mxu0 %v1430
      %1481 = vmatprep.subr.bf16.mxu0 0
      %1482 = vmatpush1.bf16.msra.mxu0 %v1431
      %1483 = vmatprep.subr.bf16.mxu0 0
      %1484 = vmatpush1.bf16.msra.mxu0 %v1432
      %1485 = vmatprep.subr.bf16.mxu0 0
      %1486 = vmatpush1.bf16.msra.mxu0 %v1433
      %1487 = vmatprep.subr.bf16.mxu0 0
      %1488 = vmatpush1.bf16.msra.mxu0 %v1434
      %1489 = vmatprep.subr.bf16.mxu0 0
      %1490 = vmatpush1.bf16.msra.mxu0 %v1435
      %1491 = vmatprep.subr.bf16.mxu0 0
      %1492 = vmatpush1.bf16.msra.mxu0 %v1436
      %1493 = vmatprep.subr.bf16.mxu0 0
      %1494 = vmatpush1.bf16.msra.mxu0 %v1437
      %1495 = vmatprep.subr.bf16.mxu0 0
      %1496 = vmatpush1.bf16.msra.mxu0 %v1438
      %1497 = vmatprep.subr.bf16.mxu0 0
      %1498 = vmatpush1.bf16.msra.mxu0 %v1439
      %1499 = vmatprep.subr.bf16.mxu0 0
      %1500 = vmatpush1.bf16.msra.mxu0 %v1440
      %1501 = vmatprep.subr.bf16.mxu0 0
      %1502 = vmatpush1.bf16.msra.mxu0 %v1441
      %1503 = vmatprep.subr.bf16.mxu0 0
      %1504 = vmatpush1.bf16.msra.mxu0 %v1442
      %1505 = vmatprep.subr.bf16.mxu0 0
      %1506 = vmatpush1.bf16.msra.mxu0 %v1443
      %1507 = vmatprep.subr.bf16.mxu0 0
      %1508 = vmatpush1.bf16.msra.mxu0 %v1444
      %1509 = vmatprep.mubr.bf16.mxu0 %v619
      %1510 = vmatmul.mubr.bf16.gmra.mrb[0].mxu0 %v618
      %v1511 = vpop.f32.mrb[0].mxu0
      %v1512 = vadd.f32 0.0, %v1511
      %v1513 = vpop.f32.mrb[0].mxu0
      %v1514 = vpop.f32.mrb[0].mxu0
      %v1515 = vadd.f32 0.0, %v1514
      %v1516 = vpop.f32.mrb[0].mxu0
      %1517 = vmatprep.mubr.bf16.mxu0 %v622
      %1518 = vmatmul.mubr.bf16.gmra.mrb[0].mxu0 %v621
      %v1519 = vpop.f32.mrb[0].mxu0
      %v1520 = vadd.f32 0.0, %v1519
      %v1521 = vpop.f32.mrb[0].mxu0
      %v1522 = vpop.f32.mrb[0].mxu0
      %v1523 = vadd.f32 0.0, %v1522
      %v1524 = vpop.f32.mrb[0].mxu0
      %1525 = vmatprep.mubr.bf16.mxu0 %v625
      %1526 = vmatmul.mubr.bf16.gmra.mrb[0].mxu0 %v624
      %v1527 = vpop.f32.mrb[0].mxu0
      %v1528 = vadd.f32 0.0, %v1527
      %v1529 = vpop.f32.mrb[0].mxu0
      %v1530 = vpop.f32.mrb[0].mxu0
      %v1531 = vadd.f32 0.0, %v1530
      %v1532 = vpop.f32.mrb[0].mxu0
      %1533 = vmatprep.mubr.bf16.mxu0 %v1282
      %1534 = vmatmul.mubr.bf16.gmra.mrb[0].mxu0 %v1281
      %v1535 = vpop.f32.mrb[0].mxu0
      %v1536 = vadd.f32 0.0, %v1535
      %v1537 = vpop.f32.mrb[0].mxu0
      %v1538 = vpop.f32.mrb[0].mxu0
      %v1539 = vadd.f32 0.0, %v1538
      %v1540 = vpop.f32.mrb[0].mxu0
      %1541 = vdwg.mxu0
      %1542 = vmatprep.subr.bf16.mxu0 0
      %1543 = vmatpush1.bf16.msra.mxu0 %v1445
      %1544 = vmatprep.subr.bf16.mxu0 0
      %1545 = vmatpush1.bf16.msra.mxu0 %v1446
      %1546 = vmatprep.subr.bf16.mxu0 0
      %1547 = vmatpush1.bf16.msra.mxu0 %v1447
      %1548 = vmatprep.subr.bf16.mxu0 0
      %1549 = vmatpush1.bf16.msra.mxu0 %v1448
      %1550 = vmatprep.subr.bf16.mxu0 0
      %1551 = vmatpush1.bf16.msra.mxu0 %v1449
      %1552 = vmatprep.subr.bf16.mxu0 0
      %1553 = vmatpush1.bf16.msra.mxu0 %v1450
      %1554 = vmatprep.subr.bf16.mxu0 0
      %1555 = vmatpush1.bf16.msra.mxu0 %v1451
      %1556 = vmatprep.subr.bf16.mxu0 0
      %1557 = vmatpush1.bf16.msra.mxu0 %v1452
      %1558 = vmatprep.subr.bf16.mxu0 0
      %1559 = vmatpush1.bf16.msra.mxu0 0
      %1560 = vmatprep.subr.bf16.mxu0 0
      %1561 = vmatpush1.bf16.msra.mxu0 0
      %1562 = vmatprep.subr.bf16.mxu0 0
      %1563 = vmatpush1.bf16.msra.mxu0 0
      %1564 = vmatprep.subr.bf16.mxu0 0
      %1565 = vmatpush1.bf16.msra.mxu0 0
      %1566 = vmatprep.subr.bf16.mxu0 0
      %1567 = vmatpush1.bf16.msra.mxu0 0
      %1568 = vmatprep.subr.bf16.mxu0 0
      %1569 = vmatpush1.bf16.msra.mxu0 0
      %1570 = vmatprep.subr.bf16.mxu0 0
      %1571 = vmatpush1.bf16.msra.mxu0 0
      %1572 = vmatprep.subr.bf16.mxu0 0
      %1573 = vmatpush1.bf16.msra.mxu0 0
      %1574 = vmatprep.mubr.bf16.mxu0 0
      %1575 = vmatmul.mubr.bf16.gmra.mrb[0].mxu0 %v620
      %v1576 = vpop.f32.mrb[0].mxu0
      %v1577 = vadd.f32 %v1512, %v1576
      %v1578 = vpop.f32.mrb[0].mxu0
      %v1579 = vpop.f32.mrb[0].mxu0
      %v1580 = vadd.f32 %v1515, %v1579
      %v1581 = vpop.f32.mrb[0].mxu0
      %1582 = vmatprep.mubr.bf16.mxu0 0
      %1583 = vmatmul.mubr.bf16.gmra.mrb[0].mxu0 %v623
      %v1584 = vpop.f32.mrb[0].mxu0
      %v1585 = vadd.f32 %v1520, %v1584
      %v1586 = vpop.f32.mrb[0].mxu0
      %v1587 = vpop.f32.mrb[0].mxu0
      %v1588 = vadd.f32 %v1523, %v1587
      %v1589 = vpop.f32.mrb[0].mxu0
      %1590 = vmatprep.mubr.bf16.mxu0 0
      %1591 = vmatmul.mubr.bf16.gmra.mrb[0].mxu0 %v626
      %v1592 = vpop.f32.mrb[0].mxu0
      %v1593 = vadd.f32 %v1528, %v1592
      %v1594 = vpop.f32.mrb[0].mxu0
      %v1595 = vpop.f32.mrb[0].mxu0
      %v1596 = vadd.f32 %v1531, %v1595
      %v1597 = vpop.f32.mrb[0].mxu0
      %1598 = vmatprep.mubr.bf16.mxu0 0
      %1599 = vmatmul.mubr.bf16.gmra.mrb[0].mxu0 %v1283
      %v1600 = vpop.f32.mrb[0].mxu0
      %v1601 = vadd.f32 %v1536, %v1600
      %v1602 = vpop.f32.mrb[0].mxu0
      %v1603 = vpop.f32.mrb[0].mxu0
      %v1604 = vadd.f32 %v1539, %v1603
      %v1605 = vpop.f32.mrb[0].mxu0
      %1606 = vdwg.mxu0
      %v1607 = vadd.f32 %v1251, %v1577
      %v1608 = vadd.f32 %v1254, %v1580
      %v1609 = vadd.f32 %v1259, %v1585
      %v1610 = vadd.f32 %v1262, %v1588
      %v1611 = vadd.f32 %v1267, %v1593
      %v1612 = vadd.f32 %v1270, %v1596
      %v1613 = vadd.f32 %v1275, %v1601
      %v1614 = vadd.f32 %v1278, %v1604
      %v1615 = vld [vmem:[%s2] sm:$0x1]
      %v1617 = vlaneseq
      %v1618 = vshrl.u32 %v1617, 7
      %v1619 = vsub.s32 0, %v1618
      %v1620 = vrot.slane %v1615, %v1619
      %v1622 = vmul.f32 %v1607, %v1620
      %v1623 = vmul.f32 %v1608, %v1620
      %v1624 = vmul.f32 %v1609, %v1620
      %v1625 = vmul.f32 %v1610, %v1620
      %v1626 = vmul.f32 %v1611, %v1620
      %v1627 = vmul.f32 %v1612, %v1620
      %v1628 = vmul.f32 %v1613, %v1620
      %v1629 = vmul.f32 %v1614, %v1620
      %v1630 = vld [vmem:[%s3] sm:$0x1]
      %v1632 = vlaneseq
      %v1633 = vshrl.u32 %v1632, 7
      %v1634 = vsub.s32 0, %v1633
      %v1635 = vrot.slane %v1630, %v1634
      %v1637 = vadd.f32 %v1622, %v1635
      %v1638 = vadd.f32 %v1623, %v1635
      %v1639 = vadd.f32 %v1624, %v1635
      %v1640 = vadd.f32 %v1625, %v1635
      %v1641 = vadd.f32 %v1626, %v1635
      %v1642 = vadd.f32 %v1627, %v1635
      %v1643 = vadd.f32 %v1628, %v1635
      %v1644 = vadd.f32 %v1629, %v1635
      %v1645 = vmax.f32 %v1637, 0.0
      %v1646 = vmax.f32 %v1638, 0.0
      %v1647 = vmax.f32 %v1639, 0.0
      %v1648 = vmax.f32 %v1640, 0.0
      %v1649 = vmax.f32 %v1641, 0.0
      %v1650 = vmax.f32 %v1642, 0.0
      %v1651 = vmax.f32 %v1643, 0.0
      %v1652 = vmax.f32 %v1644, 0.0
      %1653 = vst [vmem:[#allocation2] sm:$0xf] 0
      %1654 = vst [vmem:[#allocation2 + $0x8] sm:$0xf] 0
      %1655 = vst [vmem:[#allocation2 + $0x10] sm:$0xf] 0
      %1656 = vst [vmem:[#allocation2 + $0x60] sm:$0xf0] 0
      %1657 = vst [vmem:[#allocation2 + $0x68] sm:$0xf0] 0
      %1658 = vst [vmem:[#allocation2 + $0x70] sm:$0xf0] 0
      %v1659 = vpack.c.bf16 %v1646, %v1645
      %v1660 = vpack.c.bf16 %v1648, %v1647
      %v1661 = vpack.c.bf16 %v1650, %v1649
      %v1662 = vpack.c.bf16 %v1652, %v1651
      %v1667 = vrot.slane %v1659, 4
      %v1668 = vrot.slane %v1660, 4
      %v1669 = vsel %vm487, %v1667, %v1668
      %v1670 = vrot.slane %v1661, 4
      %v1671 = vsel %vm487, %v1668, %v1670
      %v1672 = vrot.slane %v1662, 4
      %v1673 = vsel %vm487, %v1670, %v1672
      %1679 = vst [vmem:[#allocation2 + $0x8] sm:$0xf0] %v1667
      %1680 = vst [vmem:[#allocation2 + $0x20] sm:$0xff] %v1669
      %1681 = vst [vmem:[#allocation2 + $0x38] sm:$0xff] %v1671
      %1682 = vst [vmem:[#allocation2 + $0x50] sm:$0xff] %v1673
      %1683 = vst [vmem:[#allocation2 + $0x68] sm:$0xf] %v1672
      %v1684 = vrot.slane %v1645, 7
      %v1685 = vrot.slane %v1646, 7
      %v1686 = vrot.slane %v1647, 7
      %v1687 = vrot.slane %v1648, 7
      %v1688 = vrot.slane %v1649, 7
      %v1689 = vrot.slane %v1650, 7
      %v1690 = vrot.slane %v1651, 7
      %v1691 = vrot.slane %v1652, 7
      %v1692 = vsel %vm462, %v1690, %v1691
      %v1693 = vsel %vm462, %v1689, %v1690
      %v1694 = vsel %vm462, %v1688, %v1689
      %v1695 = vsel %vm462, %v1687, %v1688
      %v1696 = vsel %vm462, %v1686, %v1687
      %v1697 = vsel %vm462, %v1685, %v1686
      %v1698 = vsel %vm462, %v1684, %v1685
      %v1699 = vsel %vm462, %v1691, %v1684
      %v1700 = vsel %vm401, %v1699, 0.0
      %v1701 = vsel %vm402, %v1698, 0.0
      %v1702 = vsel %vm403, %v1697, 0.0
      %v1703 = vsel %vm404, %v1696, 0.0
      %v1704 = vsel %vm405, %v1695, 0.0
      %v1705 = vsel %vm406, %v1694, 0.0
      %v1706 = vsel %vm407, %v1693, 0.0
      %v1707 = vsel %vm408, %v1692, 0.0
      %v1708 = vpack.c.bf16 %v1701, %v1700
      %v1709 = vpack.c.bf16 %v1703, %v1702
      %v1710 = vpack.c.bf16 %v1705, %v1704
      %v1711 = vpack.c.bf16 %v1707, %v1706
      %v1716 = vrot.slane %v1708, 4
      %v1717 = vrot.slane %v1709, 4
      %v1718 = vsel %vm487, %v1716, %v1717
      %v1719 = vrot.slane %v1710, 4
      %v1720 = vsel %vm487, %v1717, %v1719
      %v1721 = vrot.slane %v1711, 4
      %v1722 = vsel %vm487, %v1719, %v1721
      %1728 = vst [vmem:[#allocation2] sm:$0xf0] %v1716
      %1729 = vst [vmem:[#allocation2 + $0x18] sm:$0xff] %v1718
      %1730 = vst [vmem:[#allocation2 + $0x30] sm:$0xff] %v1720
      %1731 = vst [vmem:[#allocation2 + $0x48] sm:$0xff] %v1722
      %1732 = vst [vmem:[#allocation2 + $0x60] sm:$0xf] %v1721
      %v1733 = vrot.slane %v1645, 1
      %v1734 = vrot.slane %v1646, 1
      %v1735 = vrot.slane %v1647, 1
      %v1736 = vrot.slane %v1648, 1
      %v1737 = vrot.slane %v1649, 1
      %v1738 = vrot.slane %v1650, 1
      %v1739 = vrot.slane %v1651, 1
      %v1740 = vrot.slane %v1652, 1
      %v1741 = vsel %vm513, %v1739, %v1740
      %v1742 = vsel %vm513, %v1738, %v1739
      %v1743 = vsel %vm513, %v1737, %v1738
      %v1744 = vsel %vm513, %v1736, %v1737
      %v1745 = vsel %vm513, %v1735, %v1736
      %v1746 = vsel %vm513, %v1734, %v1735
      %v1747 = vsel %vm513, %v1733, %v1734
      %v1748 = vsel %vm513, %v1740, %v1733
      %v1749 = vsel %vm409, %v1747, 0.0
      %v1750 = vsel %vm410, %v1746, 0.0
      %v1751 = vsel %vm411, %v1745, 0.0
      %v1752 = vsel %vm412, %v1744, 0.0
      %v1753 = vsel %vm413, %v1743, 0.0
      %v1754 = vsel %vm414, %v1742, 0.0
      %v1755 = vsel %vm415, %v1741, 0.0
      %v1756 = vsel %vm416, %v1748, 0.0
      %v1757 = vpack.c.bf16 %v1750, %v1749
      %v1758 = vpack.c.bf16 %v1752, %v1751
      %v1759 = vpack.c.bf16 %v1754, %v1753
      %v1760 = vpack.c.bf16 %v1756, %v1755
      %v1765 = vrot.slane %v1757, 4
      %v1766 = vrot.slane %v1758, 4
      %v1767 = vsel %vm487, %v1765, %v1766
      %v1768 = vrot.slane %v1759, 4
      %v1769 = vsel %vm487, %v1766, %v1768
      %v1770 = vrot.slane %v1760, 4
      %v1771 = vsel %vm487, %v1768, %v1770
      %1777 = vst [vmem:[#allocation2 + $0x10] sm:$0xf0] %v1765
      %1778 = vst [vmem:[#allocation2 + $0x28] sm:$0xff] %v1767
      %1779 = vst [vmem:[#allocation2 + $0x40] sm:$0xff] %v1769
      %1780 = vst [vmem:[#allocation2 + $0x58] sm:$0xff] %v1771
      %1781 = vst [vmem:[#allocation2 + $0x70] sm:$0xf] %v1770
      %v1782 = vld [vmem:[#allocation2] sm:$0xff]
      %v1783 = vld [vmem:[#allocation2 + $0x8] sm:$0xff]
      %v1784 = vld [vmem:[#allocation2 + $0x10] sm:$0xff]
      %v1785 = vld [vmem:[#allocation2 + $0x18] sm:$0xff]
      %v1786 = vld [vmem:[#allocation2 + $0x20] sm:$0xff]
      %v1787 = vld [vmem:[#allocation2 + $0x28] sm:$0xff]
      %v1788 = vld [vmem:[#allocation2 + $0x30] sm:$0xff]
      %v1789 = vld [vmem:[#allocation2 + $0x38] sm:$0xff]
      %v1790 = vld [vmem:[#allocation2 + $0x40] sm:$0xff]
      %v1791 = vld [vmem:[#allocation2 + $0x48] sm:$0xff]
      %v1792 = vld [vmem:[#allocation2 + $0x50] sm:$0xff]
      %v1793 = vld [vmem:[#allocation2 + $0x58] sm:$0xff]
      %v1794 = vld [vmem:[%s4] sm:$0xf]
      %v1795 = vld [vmem:[%s4 + $0x4] sm:$0xf]
      %v1796 = vld [vmem:[%s4 + $0x8] sm:$0xf]
      %v1797 = vld [vmem:[%s4 + $0xc] sm:$0xf]
      %v1798 = vld [vmem:[%s4 + $0x10] sm:$0xf]
      %v1799 = vld [vmem:[%s4 + $0x14] sm:$0xf]
      %v1800 = vld [vmem:[%s4 + $0x18] sm:$0xf]
      %v1801 = vld [vmem:[%s4 + $0x1c] sm:$0xf]
      %v1802 = vld [vmem:[%s4 + $0x20] sm:$0xf]
      %v1803 = vld [vmem:[%s4 + $0x24] sm:$0xf]
      %v1804 = vld [vmem:[%s4 + $0x28] sm:$0xf]
      %v1805 = vld [vmem:[%s4 + $0x2c] sm:$0xf]
      %v1806 = vld [vmem:[%s4 + $0x30] sm:$0xf]
      %v1807 = vld [vmem:[%s4 + $0x34] sm:$0xf]
      %v1808 = vld [vmem:[%s4 + $0x38] sm:$0xf]
      %v1809 = vld [vmem:[%s4 + $0x3c] sm:$0xf]
      %v1810 = vld [vmem:[%s4 + $0x40] sm:$0xf]
      %v1811 = vld [vmem:[%s4 + $0x44] sm:$0xf]
      %v1812 = vld [vmem:[%s4 + $0x48] sm:$0xf]
      %v1813 = vld [vmem:[%s4 + $0x4c] sm:$0xf]
      %v1814 = vld [vmem:[%s4 + $0x50] sm:$0xf]
      %v1815 = vld [vmem:[%s4 + $0x54] sm:$0xf]
      %v1816 = vld [vmem:[%s4 + $0x58] sm:$0xf]
      %v1817 = vld [vmem:[%s4 + $0x5c] sm:$0xf]
      %v1818 = vld [vmem:[%s4 + $0x60] sm:$0xf]
      %v1819 = vld [vmem:[%s4 + $0x64] sm:$0xf]
      %v1820 = vld [vmem:[%s4 + $0x68] sm:$0xf]
      %v1821 = vld [vmem:[%s4 + $0x6c] sm:$0xf]
      %v1822 = vld [vmem:[%s4 + $0x70] sm:$0xf]
      %v1823 = vld [vmem:[%s4 + $0x74] sm:$0xf]
      %v1824 = vld [vmem:[%s4 + $0x78] sm:$0xf]
      %v1825 = vld [vmem:[%s4 + $0x7c] sm:$0xf]
      %v1826 = vld [vmem:[%s4 + $0x80] sm:$0xf]
      %v1827 = vld [vmem:[%s4 + $0x84] sm:$0xf]
      %v1828 = vld [vmem:[%s4 + $0x88] sm:$0xf]
      %v1829 = vld [vmem:[%s4 + $0x8c] sm:$0xf]
      %v1830 = vld [vmem:[%s4 + $0x90] sm:$0xf]
      %v1831 = vld [vmem:[%s4 + $0x94] sm:$0xf]
      %v1832 = vld [vmem:[%s4 + $0x98] sm:$0xf]
      %v1833 = vld [vmem:[%s4 + $0x9c] sm:$0xf]
      %v1834 = vld [vmem:[%s4 + $0xa0] sm:$0xf]
      %v1835 = vld [vmem:[%s4 + $0xa4] sm:$0xf]
      %v1836 = vld [vmem:[%s4 + $0xa8] sm:$0xf]
      %v1837 = vld [vmem:[%s4 + $0xac] sm:$0xf]
      %v1838 = vld [vmem:[%s4 + $0xb0] sm:$0xf]
      %v1839 = vld [vmem:[%s4 + $0xb4] sm:$0xf]
      %v1840 = vld [vmem:[%s4 + $0xb8] sm:$0xf]
      %v1841 = vld [vmem:[%s4 + $0xbc] sm:$0xf]
      %v1842 = vld [vmem:[#allocation2] sm:$0xf0]
      %v1843 = vld [vmem:[#allocation2 + $0x8] sm:$0xf0]
      %v1844 = vld [vmem:[#allocation2 + $0x10] sm:$0xf0]
      %v1845 = vld [vmem:[#allocation2 + $0x18] sm:$0xff]
      %v1846 = vld [vmem:[#allocation2 + $0x20] sm:$0xff]
      %v1847 = vld [vmem:[#allocation2 + $0x28] sm:$0xff]
      %v1848 = vld [vmem:[#allocation2 + $0x30] sm:$0xff]
      %v1849 = vld [vmem:[#allocation2 + $0x38] sm:$0xff]
      %v1850 = vld [vmem:[#allocation2 + $0x40] sm:$0xff]
      %v1851 = vld [vmem:[#allocation2 + $0x48] sm:$0xff]
      %v1852 = vld [vmem:[#allocation2 + $0x50] sm:$0xff]
      %v1853 = vld [vmem:[#allocation2 + $0x58] sm:$0xff]
      %v1854 = vld [vmem:[#allocation2 + $0x60] sm:$0xf]
      %v1855 = vld [vmem:[#allocation2 + $0x68] sm:$0xf]
      %v1856 = vld [vmem:[#allocation2 + $0x70] sm:$0xf]
      %s1857 = scalar_lea.vmem %s4, 192
      %v1858 = vld [vmem:[%s1857] sm:$0xf]
      %v1859 = vld [vmem:[%s1857 + $0x4] sm:$0xf]
      %v1860 = vld [vmem:[%s1857 + $0x8] sm:$0xf]
      %v1861 = vld [vmem:[%s1857 + $0xc] sm:$0xf]
      %v1862 = vld [vmem:[%s1857 + $0x10] sm:$0xf]
      %v1863 = vld [vmem:[%s1857 + $0x14] sm:$0xf]
      %v1864 = vld [vmem:[%s1857 + $0x18] sm:$0xf]
      %v1865 = vld [vmem:[%s1857 + $0x1c] sm:$0xf]
      %v1866 = vld [vmem:[%s1857 + $0x20] sm:$0xf]
      %v1867 = vld [vmem:[%s1857 + $0x24] sm:$0xf]
      %v1868 = vld [vmem:[%s1857 + $0x28] sm:$0xf]
      %v1869 = vld [vmem:[%s1857 + $0x2c] sm:$0xf]
      %v1870 = vld [vmem:[%s1857 + $0x30] sm:$0xf]
      %v1871 = vld [vmem:[%s1857 + $0x34] sm:$0xf]
      %v1872 = vld [vmem:[%s1857 + $0x38] sm:$0xf]
      %v1873 = vld [vmem:[%s1857 + $0x3c] sm:$0xf]
      %v1874 = vld [vmem:[%s1857 + $0x40] sm:$0xf]
      %v1875 = vld [vmem:[%s1857 + $0x44] sm:$0xf]
      %v1876 = vld [vmem:[%s1857 + $0x48] sm:$0xf]
      %v1877 = vld [vmem:[%s1857 + $0x4c] sm:$0xf]
      %v1878 = vld [vmem:[%s1857 + $0x50] sm:$0xf]
      %v1879 = vld [vmem:[%s1857 + $0x54] sm:$0xf]
      %v1880 = vld [vmem:[%s1857 + $0x58] sm:$0xf]
      %v1881 = vld [vmem:[%s1857 + $0x5c] sm:$0xf]
      %v1882 = vld [vmem:[%s1857 + $0x60] sm:$0xf]
      %v1883 = vld [vmem:[%s1857 + $0x64] sm:$0xf]
      %v1884 = vld [vmem:[%s1857 + $0x68] sm:$0xf]
      %v1885 = vld [vmem:[%s1857 + $0x6c] sm:$0xf]
      %v1886 = vld [vmem:[%s1857 + $0x70] sm:$0xf]
      %v1887 = vld [vmem:[%s1857 + $0x74] sm:$0xf]
      %v1888 = vld [vmem:[%s1857 + $0x78] sm:$0xf]
      %v1889 = vld [vmem:[%s1857 + $0x7c] sm:$0xf]
      %v1890 = vld [vmem:[%s1857 + $0x80] sm:$0xf]
      %v1891 = vld [vmem:[%s1857 + $0x84] sm:$0xf]
      %v1892 = vld [vmem:[%s1857 + $0x88] sm:$0xf]
      %v1893 = vld [vmem:[%s1857 + $0x8c] sm:$0xf]
      %v1894 = vld [vmem:[%s1857 + $0x90] sm:$0xf]
      %v1895 = vld [vmem:[%s1857 + $0x94] sm:$0xf]
      %v1896 = vld [vmem:[%s1857 + $0x98] sm:$0xf]
      %v1897 = vld [vmem:[%s1857 + $0x9c] sm:$0xf]
      %v1898 = vld [vmem:[%s1857 + $0xa0] sm:$0xf]
      %v1899 = vld [vmem:[%s1857 + $0xa4] sm:$0xf]
      %v1900 = vld [vmem:[%s1857 + $0xa8] sm:$0xf]
      %v1901 = vld [vmem:[%s1857 + $0xac] sm:$0xf]
      %v1902 = vld [vmem:[%s1857 + $0xb0] sm:$0xf]
      %v1903 = vld [vmem:[%s1857 + $0xb4] sm:$0xf]
      %v1904 = vld [vmem:[%s1857 + $0xb8] sm:$0xf]
      %v1905 = vld [vmem:[%s1857 + $0xbc] sm:$0xf]
      %v1921 = vrot.slane %v1842, 4
      %v1922 = vrot.slane %v1845, 4
      %v1923 = vsel %vm487, %v1921, %v1922
      %v1924 = vrot.slane %v1843, 4
      %v1925 = vrot.slane %v1846, 4
      %v1926 = vsel %vm487, %v1924, %v1925
      %v1927 = vrot.slane %v1844, 4
      %v1928 = vrot.slane %v1847, 4
      %v1929 = vsel %vm487, %v1927, %v1928
      %v1930 = vrot.slane %v1848, 4
      %v1931 = vsel %vm487, %v1922, %v1930
      %v1932 = vrot.slane %v1849, 4
      %v1933 = vsel %vm487, %v1925, %v1932
      %v1934 = vrot.slane %v1850, 4
      %v1935 = vsel %vm487, %v1928, %v1934
      %v1936 = vrot.slane %v1851, 4
      %v1937 = vsel %vm487, %v1930, %v1936
      %v1938 = vrot.slane %v1852, 4
      %v1939 = vsel %vm487, %v1932, %v1938
      %v1940 = vrot.slane %v1853, 4
      %v1941 = vsel %vm487, %v1934, %v1940
      %v1942 = vrot.slane %v1854, 4
      %v1943 = vsel %vm487, %v1936, %v1942
      %v1944 = vrot.slane %v1855, 4
      %v1945 = vsel %vm487, %v1938, %v1944
      %v1946 = vrot.slane %v1856, 4
      %v1947 = vsel %vm487, %v1940, %v1946
      %v2008 = vunpack.c.l.b16 %v1858
      %v2009 = vunpack.c.l.b16 %v1859
      %v2010 = vunpack.c.l.b16 %v1860
      %v2011 = vunpack.c.l.b16 %v1861
      %v2012 = vunpack.c.l.b16 %v1862
      %v2013 = vunpack.c.l.b16 %v1863
      %v2014 = vunpack.c.l.b16 %v1864
      %v2015 = vunpack.c.l.b16 %v1865
      %v2016 = vunpack.c.l.b16 %v1866
      %v2017 = vunpack.c.l.b16 %v1867
      %v2018 = vunpack.c.l.b16 %v1868
      %v2019 = vunpack.c.l.b16 %v1869
      %v2020 = vunpack.c.l.b16 %v1870
      %v2021 = vunpack.c.l.b16 %v1871
      %v2022 = vunpack.c.l.b16 %v1872
      %v2023 = vunpack.c.l.b16 %v1873
      %v2024 = vunpack.c.l.b16 %v1874
      %v2025 = vunpack.c.l.b16 %v1875
      %v2026 = vunpack.c.l.b16 %v1876
      %v2027 = vunpack.c.l.b16 %v1877
      %v2028 = vunpack.c.l.b16 %v1878
      %v2029 = vunpack.c.l.b16 %v1879
      %v2030 = vunpack.c.l.b16 %v1880
      %v2031 = vunpack.c.l.b16 %v1881
      %v2032 = vunpack.c.l.b16 %v1882
      %v2033 = vunpack.c.l.b16 %v1883
      %v2034 = vunpack.c.l.b16 %v1884
      %v2035 = vunpack.c.l.b16 %v1885
      %v2036 = vunpack.c.l.b16 %v1886
      %v2037 = vunpack.c.l.b16 %v1887
      %v2038 = vunpack.c.l.b16 %v1888
      %v2039 = vunpack.c.l.b16 %v1889
      %v2040 = vunpack.c.l.b16 %v1890
      %v2041 = vunpack.c.l.b16 %v1891
      %v2042 = vunpack.c.l.b16 %v1892
      %v2043 = vunpack.c.l.b16 %v1893
      %v2044 = vunpack.c.l.b16 %v1894
      %v2045 = vunpack.c.l.b16 %v1895
      %v2046 = vunpack.c.l.b16 %v1896
      %v2047 = vunpack.c.l.b16 %v1897
      %v2048 = vunpack.c.l.b16 %v1898
      %v2049 = vunpack.c.l.b16 %v1899
      %v2050 = vunpack.c.l.b16 %v1900
      %v2051 = vunpack.c.l.b16 %v1901
      %v2052 = vunpack.c.l.b16 %v1902
      %v2053 = vunpack.c.l.b16 %v1903
      %v2054 = vunpack.c.l.b16 %v1904
      %v2055 = vunpack.c.l.b16 %v1905
      %v2056 = vpack.c.b16 %v2009, %v2008
      %v2057 = vpack.c.b16 %v2011, %v2010
      %v2058 = vpack.c.b16 %v2013, %v2012
      %v2059 = vpack.c.b16 %v2015, %v2014
      %v2060 = vpack.c.b16 %v2017, %v2016
      %v2061 = vpack.c.b16 %v2019, %v2018
      %v2062 = vpack.c.b16 %v2021, %v2020
      %v2063 = vpack.c.b16 %v2023, %v2022
      %v2064 = vpack.c.b16 %v2025, %v2024
      %v2065 = vpack.c.b16 %v2027, %v2026
      %v2066 = vpack.c.b16 %v2029, %v2028
      %v2067 = vpack.c.b16 %v2031, %v2030
      %v2068 = vpack.c.b16 %v2033, %v2032
      %v2069 = vpack.c.b16 %v2035, %v2034
      %v2070 = vpack.c.b16 %v2037, %v2036
      %v2071 = vpack.c.b16 %v2039, %v2038
      %v2072 = vpack.c.b16 %v2041, %v2040
      %v2073 = vpack.c.b16 %v2043, %v2042
      %v2074 = vpack.c.b16 %v2045, %v2044
      %v2075 = vpack.c.b16 %v2047, %v2046
      %v2076 = vpack.c.b16 %v2049, %v2048
      %v2077 = vpack.c.b16 %v2051, %v2050
      %v2078 = vpack.c.b16 %v2053, %v2052
      %v2079 = vpack.c.b16 %v2055, %v2054
      %2104 = vmatprep.subr.bf16.mxu0 0
      %2105 = vmatpush1.bf16.msra.mxu0 %v2056
      %2106 = vmatprep.subr.bf16.mxu0 0
      %2107 = vmatpush1.bf16.msra.mxu0 %v2057
      %2108 = vmatprep.subr.bf16.mxu0 0
      %2109 = vmatpush1.bf16.msra.mxu0 %v2058
      %2110 = vmatprep.subr.bf16.mxu0 0
      %2111 = vmatpush1.bf16.msra.mxu0 %v2059
      %2112 = vmatprep.subr.bf16.mxu0 0
      %2113 = vmatpush1.bf16.msra.mxu0 %v2060
      %2114 = vmatprep.subr.bf16.mxu0 0
      %2115 = vmatpush1.bf16.msra.mxu0 %v2061
      %2116 = vmatprep.subr.bf16.mxu0 0
      %2117 = vmatpush1.bf16.msra.mxu0 %v2062
      %2118 = vmatprep.subr.bf16.mxu0 0
      %2119 = vmatpush1.bf16.msra.mxu0 %v2063
      %2120 = vmatprep.subr.bf16.mxu0 0
      %2121 = vmatpush1.bf16.msra.mxu0 %v2064
      %2122 = vmatprep.subr.bf16.mxu0 0
      %2123 = vmatpush1.bf16.msra.mxu0 %v2065
      %2124 = vmatprep.subr.bf16.mxu0 0
      %2125 = vmatpush1.bf16.msra.mxu0 %v2066
      %2126 = vmatprep.subr.bf16.mxu0 0
      %2127 = vmatpush1.bf16.msra.mxu0 %v2067
      %2128 = vmatprep.subr.bf16.mxu0 0
      %2129 = vmatpush1.bf16.msra.mxu0 %v2068
      %2130 = vmatprep.subr.bf16.mxu0 0
      %2131 = vmatpush1.bf16.msra.mxu0 %v2069
      %2132 = vmatprep.subr.bf16.mxu0 0
      %2133 = vmatpush1.bf16.msra.mxu0 %v2070
      %2134 = vmatprep.subr.bf16.mxu0 0
      %2135 = vmatpush1.bf16.msra.mxu0 %v2071
      %2136 = vmatprep.mubr.bf16.mxu0 %v1926
      %2137 = vmatmul.mubr.bf16.gmra.mrb[0].mxu0 %v1923
      %v2138 = vpop.f32.mrb[0].mxu0
      %v2139 = vadd.f32 0.0, %v2138
      %v2140 = vpop.f32.mrb[0].mxu0
      %v2141 = vpop.f32.mrb[0].mxu0
      %v2142 = vadd.f32 0.0, %v2141
      %v2143 = vpop.f32.mrb[0].mxu0
      %2144 = vmatprep.mubr.bf16.mxu0 %v1933
      %2145 = vmatmul.mubr.bf16.gmra.mrb[0].mxu0 %v1931
      %v2146 = vpop.f32.mrb[0].mxu0
      %v2147 = vadd.f32 0.0, %v2146
      %v2148 = vpop.f32.mrb[0].mxu0
      %v2149 = vpop.f32.mrb[0].mxu0
      %v2150 = vadd.f32 0.0, %v2149
      %v2151 = vpop.f32.mrb[0].mxu0
      %2152 = vmatprep.mubr.bf16.mxu0 %v1939
      %2153 = vmatmul.mubr.bf16.gmra.mrb[0].mxu0 %v1937
      %v2154 = vpop.f32.mrb[0].mxu0
      %v2155 = vadd.f32 0.0, %v2154
      %v2156 = vpop.f32.mrb[0].mxu0
      %v2157 = vpop.f32.mrb[0].mxu0
      %v2158 = vadd.f32 0.0, %v2157
      %v2159 = vpop.f32.mrb[0].mxu0
      %2160 = vmatprep.mubr.bf16.mxu0 %v1945
      %2161 = vmatmul.mubr.bf16.gmra.mrb[0].mxu0 %v1943
      %v2162 = vpop.f32.mrb[0].mxu0
      %v2163 = vadd.f32 0.0, %v2162
      %v2164 = vpop.f32.mrb[0].mxu0
      %v2165 = vpop.f32.mrb[0].mxu0
      %v2166 = vadd.f32 0.0, %v2165
      %v2167 = vpop.f32.mrb[0].mxu0
      %2168 = vdwg.mxu0
      %2169 = vmatprep.subr.bf16.mxu0 0
      %2170 = vmatpush1.bf16.msra.mxu0 %v2072
      %2171 = vmatprep.subr.bf16.mxu0 0
      %2172 = vmatpush1.bf16.msra.mxu0 %v2073
      %2173 = vmatprep.subr.bf16.mxu0 0
      %2174 = vmatpush1.bf16.msra.mxu0 %v2074
      %2175 = vmatprep.subr.bf16.mxu0 0
      %2176 = vmatpush1.bf16.msra.mxu0 %v2075
      %2177 = vmatprep.subr.bf16.mxu0 0
      %2178 = vmatpush1.bf16.msra.mxu0 %v2076
      %2179 = vmatprep.subr.bf16.mxu0 0
      %2180 = vmatpush1.bf16.msra.mxu0 %v2077
      %2181 = vmatprep.subr.bf16.mxu0 0
      %2182 = vmatpush1.bf16.msra.mxu0 %v2078
      %2183 = vmatprep.subr.bf16.mxu0 0
      %2184 = vmatpush1.bf16.msra.mxu0 %v2079
      %2185 = vmatprep.subr.bf16.mxu0 0
      %2186 = vmatpush1.bf16.msra.mxu0 0
      %2187 = vmatprep.subr.bf16.mxu0 0
      %2188 = vmatpush1.bf16.msra.mxu0 0
      %2189 = vmatprep.subr.bf16.mxu0 0
      %2190 = vmatpush1.bf16.msra.mxu0 0
      %2191 = vmatprep.subr.bf16.mxu0 0
      %2192 = vmatpush1.bf16.msra.mxu0 0
      %2193 = vmatprep.subr.bf16.mxu0 0
      %2194 = vmatpush1.bf16.msra.mxu0 0
      %2195 = vmatprep.subr.bf16.mxu0 0
      %2196 = vmatpush1.bf16.msra.mxu0 0
      %2197 = vmatprep.subr.bf16.mxu0 0
      %2198 = vmatpush1.bf16.msra.mxu0 0
      %2199 = vmatprep.subr.bf16.mxu0 0
      %2200 = vmatpush1.bf16.msra.mxu0 0
      %2201 = vmatprep.mubr.bf16.mxu0 0
      %2202 = vmatmul.mubr.bf16.gmra.mrb[0].mxu0 %v1929
      %v2203 = vpop.f32.mrb[0].mxu0
      %v2204 = vadd.f32 %v2139, %v2203
      %v2205 = vpop.f32.mrb[0].mxu0
      %v2206 = vpop.f32.mrb[0].mxu0
      %v2207 = vadd.f32 %v2142, %v2206
      %v2208 = vpop.f32.mrb[0].mxu0
      %2209 = vmatprep.mubr.bf16.mxu0 0
      %2210 = vmatmul.mubr.bf16.gmra.mrb[0].mxu0 %v1935
      %v2211 = vpop.f32.mrb[0].mxu0
      %v2212 = vadd.f32 %v2147, %v2211
      %v2213 = vpop.f32.mrb[0].mxu0
      %v2214 = vpop.f32.mrb[0].mxu0
      %v2215 = vadd.f32 %v2150, %v2214
      %v2216 = vpop.f32.mrb[0].mxu0
      %2217 = vmatprep.mubr.bf16.mxu0 0
      %2218 = vmatmul.mubr.bf16.gmra.mrb[0].mxu0 %v1941
      %v2219 = vpop.f32.mrb[0].mxu0
      %v2220 = vadd.f32 %v2155, %v2219
      %v2221 = vpop.f32.mrb[0].mxu0
      %v2222 = vpop.f32.mrb[0].mxu0
      %v2223 = vadd.f32 %v2158, %v2222
      %v2224 = vpop.f32.mrb[0].mxu0
      %2225 = vmatprep.mubr.bf16.mxu0 0
      %2226 = vmatmul.mubr.bf16.gmra.mrb[0].mxu0 %v1947
      %v2227 = vpop.f32.mrb[0].mxu0
      %v2228 = vadd.f32 %v2163, %v2227
      %v2229 = vpop.f32.mrb[0].mxu0
      %v2230 = vpop.f32.mrb[0].mxu0
      %v2231 = vadd.f32 %v2166, %v2230
      %v2232 = vpop.f32.mrb[0].mxu0
      %2233 = vdwg.mxu0
      %v2282 = vunpack.c.l.b16 %v1794
      %v2283 = vunpack.c.l.b16 %v1795
      %v2284 = vunpack.c.l.b16 %v1796
      %v2285 = vunpack.c.l.b16 %v1797
      %v2286 = vunpack.c.l.b16 %v1798
      %v2287 = vunpack.c.l.b16 %v1799
      %v2288 = vunpack.c.l.b16 %v1800
      %v2289 = vunpack.c.l.b16 %v1801
      %v2290 = vunpack.c.l.b16 %v1802
      %v2291 = vunpack.c.l.b16 %v1803
      %v2292 = vunpack.c.l.b16 %v1804
      %v2293 = vunpack.c.l.b16 %v1805
      %v2294 = vunpack.c.l.b16 %v1806
      %v2295 = vunpack.c.l.b16 %v1807
      %v2296 = vunpack.c.l.b16 %v1808
      %v2297 = vunpack.c.l.b16 %v1809
      %v2298 = vunpack.c.l.b16 %v1810
      %v2299 = vunpack.c.l.b16 %v1811
      %v2300 = vunpack.c.l.b16 %v1812
      %v2301 = vunpack.c.l.b16 %v1813
      %v2302 = vunpack.c.l.b16 %v1814
      %v2303 = vunpack.c.l.b16 %v1815
      %v2304 = vunpack.c.l.b16 %v1816
      %v2305 = vunpack.c.l.b16 %v1817
      %v2306 = vunpack.c.l.b16 %v1818
      %v2307 = vunpack.c.l.b16 %v1819
      %v2308 = vunpack.c.l.b16 %v1820
      %v2309 = vunpack.c.l.b16 %v1821
      %v2310 = vunpack.c.l.b16 %v1822
      %v2311 = vunpack.c.l.b16 %v1823
      %v2312 = vunpack.c.l.b16 %v1824
      %v2313 = vunpack.c.l.b16 %v1825
      %v2314 = vunpack.c.l.b16 %v1826
      %v2315 = vunpack.c.l.b16 %v1827
      %v2316 = vunpack.c.l.b16 %v1828
      %v2317 = vunpack.c.l.b16 %v1829
      %v2318 = vunpack.c.l.b16 %v1830
      %v2319 = vunpack.c.l.b16 %v1831
      %v2320 = vunpack.c.l.b16 %v1832
      %v2321 = vunpack.c.l.b16 %v1833
      %v2322 = vunpack.c.l.b16 %v1834
      %v2323 = vunpack.c.l.b16 %v1835
      %v2324 = vunpack.c.l.b16 %v1836
      %v2325 = vunpack.c.l.b16 %v1837
      %v2326 = vunpack.c.l.b16 %v1838
      %v2327 = vunpack.c.l.b16 %v1839
      %v2328 = vunpack.c.l.b16 %v1840
      %v2329 = vunpack.c.l.b16 %v1841
      %v2330 = vpack.c.b16 %v2283, %v2282
      %v2331 = vpack.c.b16 %v2285, %v2284
      %v2332 = vpack.c.b16 %v2287, %v2286
      %v2333 = vpack.c.b16 %v2289, %v2288
      %v2334 = vpack.c.b16 %v2291, %v2290
      %v2335 = vpack.c.b16 %v2293, %v2292
      %v2336 = vpack.c.b16 %v2295, %v2294
      %v2337 = vpack.c.b16 %v2297, %v2296
      %v2338 = vpack.c.b16 %v2299, %v2298
      %v2339 = vpack.c.b16 %v2301, %v2300
      %v2340 = vpack.c.b16 %v2303, %v2302
      %v2341 = vpack.c.b16 %v2305, %v2304
      %v2342 = vpack.c.b16 %v2307, %v2306
      %v2343 = vpack.c.b16 %v2309, %v2308
      %v2344 = vpack.c.b16 %v2311, %v2310
      %v2345 = vpack.c.b16 %v2313, %v2312
      %v2346 = vpack.c.b16 %v2315, %v2314
      %v2347 = vpack.c.b16 %v2317, %v2316
      %v2348 = vpack.c.b16 %v2319, %v2318
      %v2349 = vpack.c.b16 %v2321, %v2320
      %v2350 = vpack.c.b16 %v2323, %v2322
      %v2351 = vpack.c.b16 %v2325, %v2324
      %v2352 = vpack.c.b16 %v2327, %v2326
      %v2353 = vpack.c.b16 %v2329, %v2328
      %2378 = vmatprep.subr.bf16.mxu0 0
      %2379 = vmatpush1.bf16.msra.mxu0 %v2330
      %2380 = vmatprep.subr.bf16.mxu0 0
      %2381 = vmatpush1.bf16.msra.mxu0 %v2331
      %2382 = vmatprep.subr.bf16.mxu0 0
      %2383 = vmatpush1.bf16.msra.mxu0 %v2332
      %2384 = vmatprep.subr.bf16.mxu0 0
      %2385 = vmatpush1.bf16.msra.mxu0 %v2333
      %2386 = vmatprep.subr.bf16.mxu0 0
      %2387 = vmatpush1.bf16.msra.mxu0 %v2334
      %2388 = vmatprep.subr.bf16.mxu0 0
      %2389 = vmatpush1.bf16.msra.mxu0 %v2335
      %2390 = vmatprep.subr.bf16.mxu0 0
      %2391 = vmatpush1.bf16.msra.mxu0 %v2336
      %2392 = vmatprep.subr.bf16.mxu0 0
      %2393 = vmatpush1.bf16.msra.mxu0 %v2337
      %2394 = vmatprep.subr.bf16.mxu0 0
      %2395 = vmatpush1.bf16.msra.mxu0 %v2338
      %2396 = vmatprep.subr.bf16.mxu0 0
      %2397 = vmatpush1.bf16.msra.mxu0 %v2339
      %2398 = vmatprep.subr.bf16.mxu0 0
      %2399 = vmatpush1.bf16.msra.mxu0 %v2340
      %2400 = vmatprep.subr.bf16.mxu0 0
      %2401 = vmatpush1.bf16.msra.mxu0 %v2341
      %2402 = vmatprep.subr.bf16.mxu0 0
      %2403 = vmatpush1.bf16.msra.mxu0 %v2342
      %2404 = vmatprep.subr.bf16.mxu0 0
      %2405 = vmatpush1.bf16.msra.mxu0 %v2343
      %2406 = vmatprep.subr.bf16.mxu0 0
      %2407 = vmatpush1.bf16.msra.mxu0 %v2344
      %2408 = vmatprep.subr.bf16.mxu0 0
      %2409 = vmatpush1.bf16.msra.mxu0 %v2345
      %2410 = vmatprep.mubr.bf16.mxu0 %v1783
      %2411 = vmatmul.mubr.bf16.gmra.mrb[0].mxu0 %v1782
      %v2412 = vpop.f32.mrb[0].mxu0
      %v2413 = vadd.f32 %v2204, %v2412
      %v2414 = vpop.f32.mrb[0].mxu0
      %v2415 = vpop.f32.mrb[0].mxu0
      %v2416 = vadd.f32 %v2207, %v2415
      %v2417 = vpop.f32.mrb[0].mxu0
      %2418 = vmatprep.mubr.bf16.mxu0 %v1786
      %2419 = vmatmul.mubr.bf16.gmra.mrb[0].mxu0 %v1785
      %v2420 = vpop.f32.mrb[0].mxu0
      %v2421 = vadd.f32 %v2212, %v2420
      %v2422 = vpop.f32.mrb[0].mxu0
      %v2423 = vpop.f32.mrb[0].mxu0
      %v2424 = vadd.f32 %v2215, %v2423
      %v2425 = vpop.f32.mrb[0].mxu0
      %2426 = vmatprep.mubr.bf16.mxu0 %v1789
      %2427 = vmatmul.mubr.bf16.gmra.mrb[0].mxu0 %v1788
      %v2428 = vpop.f32.mrb[0].mxu0
      %v2429 = vadd.f32 %v2220, %v2428
      %v2430 = vpop.f32.mrb[0].mxu0
      %v2431 = vpop.f32.mrb[0].mxu0
      %v2432 = vadd.f32 %v2223, %v2431
      %v2433 = vpop.f32.mrb[0].mxu0
      %2434 = vmatprep.mubr.bf16.mxu0 %v1792
      %2435 = vmatmul.mubr.bf16.gmra.mrb[0].mxu0 %v1791
      %v2436 = vpop.f32.mrb[0].mxu0
      %v2437 = vadd.f32 %v2228, %v2436
      %v2438 = vpop.f32.mrb[0].mxu0
      %v2439 = vpop.f32.mrb[0].mxu0
      %v2440 = vadd.f32 %v2231, %v2439
      %v2441 = vpop.f32.mrb[0].mxu0
      %2442 = vdwg.mxu0
      %2443 = vmatprep.subr.bf16.mxu0 0
      %2444 = vmatpush1.bf16.msra.mxu0 %v2346
      %2445 = vmatprep.subr.bf16.mxu0 0
      %2446 = vmatpush1.bf16.msra.mxu0 %v2347
      %2447 = vmatprep.subr.bf16.mxu0 0
      %2448 = vmatpush1.bf16.msra.mxu0 %v2348
      %2449 = vmatprep.subr.bf16.mxu0 0
      %2450 = vmatpush1.bf16.msra.mxu0 %v2349
      %2451 = vmatprep.subr.bf16.mxu0 0
      %2452 = vmatpush1.bf16.msra.mxu0 %v2350
      %2453 = vmatprep.subr.bf16.mxu0 0
      %2454 = vmatpush1.bf16.msra.mxu0 %v2351
      %2455 = vmatprep.subr.bf16.mxu0 0
      %2456 = vmatpush1.bf16.msra.mxu0 %v2352
      %2457 = vmatprep.subr.bf16.mxu0 0
      %2458 = vmatpush1.bf16.msra.mxu0 %v2353
      %2459 = vmatprep.subr.bf16.mxu0 0
      %2460 = vmatpush1.bf16.msra.mxu0 0
      %2461 = vmatprep.subr.bf16.mxu0 0
      %2462 = vmatpush1.bf16.msra.mxu0 0
      %2463 = vmatprep.subr.bf16.mxu0 0
      %2464 = vmatpush1.bf16.msra.mxu0 0
      %2465 = vmatprep.subr.bf16.mxu0 0
      %2466 = vmatpush1.bf16.msra.mxu0 0
      %2467 = vmatprep.subr.bf16.mxu0 0
      %2468 = vmatpush1.bf16.msra.mxu0 0
      %2469 = vmatprep.subr.bf16.mxu0 0
      %2470 = vmatpush1.bf16.msra.mxu0 0
      %2471 = vmatprep.subr.bf16.mxu0 0
      %2472 = vmatpush1.bf16.msra.mxu0 0
      %2473 = vmatprep.subr.bf16.mxu0 0
      %2474 = vmatpush1.bf16.msra.mxu0 0
      %2475 = vmatprep.mubr.bf16.mxu0 0
      %2476 = vmatmul.mubr.bf16.gmra.mrb[0].mxu0 %v1784
      %v2477 = vpop.f32.mrb[0].mxu0
      %v2478 = vadd.f32 %v2413, %v2477
      %v2479 = vpop.f32.mrb[0].mxu0
      %v2480 = vpop.f32.mrb[0].mxu0
      %v2481 = vadd.f32 %v2416, %v2480
      %v2482 = vpop.f32.mrb[0].mxu0
      %2483 = vmatprep.mubr.bf16.mxu0 0
      %2484 = vmatmul.mubr.bf16.gmra.mrb[0].mxu0 %v1787
      %v2485 = vpop.f32.mrb[0].mxu0
      %v2486 = vadd.f32 %v2421, %v2485
      %v2487 = vpop.f32.mrb[0].mxu0
      %v2488 = vpop.f32.mrb[0].mxu0
      %v2489 = vadd.f32 %v2424, %v2488
      %v2490 = vpop.f32.mrb[0].mxu0
      %2491 = vmatprep.mubr.bf16.mxu0 0
      %2492 = vmatmul.mubr.bf16.gmra.mrb[0].mxu0 %v1790
      %v2493 = vpop.f32.mrb[0].mxu0
      %v2494 = vadd.f32 %v2429, %v2493
      %v2495 = vpop.f32.mrb[0].mxu0
      %v2496 = vpop.f32.mrb[0].mxu0
      %v2497 = vadd.f32 %v2432, %v2496
      %v2498 = vpop.f32.mrb[0].mxu0
      %2499 = vmatprep.mubr.bf16.mxu0 0
      %2500 = vmatmul.mubr.bf16.gmra.mrb[0].mxu0 %v1793
      %v2501 = vpop.f32.mrb[0].mxu0
      %v2502 = vadd.f32 %v2437, %v2501
      %v2503 = vpop.f32.mrb[0].mxu0
      %v2504 = vpop.f32.mrb[0].mxu0
      %v2505 = vadd.f32 %v2440, %v2504
      %v2506 = vpop.f32.mrb[0].mxu0
      %2507 = vdwg.mxu0
      %v2508 = vld [vmem:[#allocation2 + $0x60] sm:$0xff]
      %v2509 = vld [vmem:[#allocation2 + $0x68] sm:$0xff]
      %v2510 = vld [vmem:[#allocation2 + $0x70] sm:$0xff]
      %s2511 = scalar_lea.vmem %s4, 384
      %v2512 = vld [vmem:[%s2511] sm:$0xf]
      %v2513 = vld [vmem:[%s2511 + $0x4] sm:$0xf]
      %v2514 = vld [vmem:[%s2511 + $0x8] sm:$0xf]
      %v2515 = vld [vmem:[%s2511 + $0xc] sm:$0xf]
      %v2516 = vld [vmem:[%s2511 + $0x10] sm:$0xf]
      %v2517 = vld [vmem:[%s2511 + $0x14] sm:$0xf]
      %v2518 = vld [vmem:[%s2511 + $0x18] sm:$0xf]
      %v2519 = vld [vmem:[%s2511 + $0x1c] sm:$0xf]
      %v2520 = vld [vmem:[%s2511 + $0x20] sm:$0xf]
      %v2521 = vld [vmem:[%s2511 + $0x24] sm:$0xf]
      %v2522 = vld [vmem:[%s2511 + $0x28] sm:$0xf]
      %v2523 = vld [vmem:[%s2511 + $0x2c] sm:$0xf]
      %v2524 = vld [vmem:[%s2511 + $0x30] sm:$0xf]
      %v2525 = vld [vmem:[%s2511 + $0x34] sm:$0xf]
      %v2526 = vld [vmem:[%s2511 + $0x38] sm:$0xf]
      %v2527 = vld [vmem:[%s2511 + $0x3c] sm:$0xf]
      %v2528 = vld [vmem:[%s2511 + $0x40] sm:$0xf]
      %v2529 = vld [vmem:[%s2511 + $0x44] sm:$0xf]
      %v2530 = vld [vmem:[%s2511 + $0x48] sm:$0xf]
      %v2531 = vld [vmem:[%s2511 + $0x4c] sm:$0xf]
      %v2532 = vld [vmem:[%s2511 + $0x50] sm:$0xf]
      %v2533 = vld [vmem:[%s2511 + $0x54] sm:$0xf]
      %v2534 = vld [vmem:[%s2511 + $0x58] sm:$0xf]
      %v2535 = vld [vmem:[%s2511 + $0x5c] sm:$0xf]
      %v2536 = vld [vmem:[%s2511 + $0x60] sm:$0xf]
      %v2537 = vld [vmem:[%s2511 + $0x64] sm:$0xf]
      %v2538 = vld [vmem:[%s2511 + $0x68] sm:$0xf]
      %v2539 = vld [vmem:[%s2511 + $0x6c] sm:$0xf]
      %v2540 = vld [vmem:[%s2511 + $0x70] sm:$0xf]
      %v2541 = vld [vmem:[%s2511 + $0x74] sm:$0xf]
      %v2542 = vld [vmem:[%s2511 + $0x78] sm:$0xf]
      %v2543 = vld [vmem:[%s2511 + $0x7c] sm:$0xf]
      %v2544 = vld [vmem:[%s2511 + $0x80] sm:$0xf]
      %v2545 = vld [vmem:[%s2511 + $0x84] sm:$0xf]
      %v2546 = vld [vmem:[%s2511 + $0x88] sm:$0xf]
      %v2547 = vld [vmem:[%s2511 + $0x8c] sm:$0xf]
      %v2548 = vld [vmem:[%s2511 + $0x90] sm:$0xf]
      %v2549 = vld [vmem:[%s2511 + $0x94] sm:$0xf]
      %v2550 = vld [vmem:[%s2511 + $0x98] sm:$0xf]
      %v2551 = vld [vmem:[%s2511 + $0x9c] sm:$0xf]
      %v2552 = vld [vmem:[%s2511 + $0xa0] sm:$0xf]
      %v2553 = vld [vmem:[%s2511 + $0xa4] sm:$0xf]
      %v2554 = vld [vmem:[%s2511 + $0xa8] sm:$0xf]
      %v2555 = vld [vmem:[%s2511 + $0xac] sm:$0xf]
      %v2556 = vld [vmem:[%s2511 + $0xb0] sm:$0xf]
      %v2557 = vld [vmem:[%s2511 + $0xb4] sm:$0xf]
      %v2558 = vld [vmem:[%s2511 + $0xb8] sm:$0xf]
      %v2559 = vld [vmem:[%s2511 + $0xbc] sm:$0xf]
      %v2608 = vunpack.c.l.b16 %v2512
      %v2609 = vunpack.c.l.b16 %v2513
      %v2610 = vunpack.c.l.b16 %v2514
      %v2611 = vunpack.c.l.b16 %v2515
      %v2612 = vunpack.c.l.b16 %v2516
      %v2613 = vunpack.c.l.b16 %v2517
      %v2614 = vunpack.c.l.b16 %v2518
      %v2615 = vunpack.c.l.b16 %v2519
      %v2616 = vunpack.c.l.b16 %v2520
      %v2617 = vunpack.c.l.b16 %v2521
      %v2618 = vunpack.c.l.b16 %v2522
      %v2619 = vunpack.c.l.b16 %v2523
      %v2620 = vunpack.c.l.b16 %v2524
      %v2621 = vunpack.c.l.b16 %v2525
      %v2622 = vunpack.c.l.b16 %v2526
      %v2623 = vunpack.c.l.b16 %v2527
      %v2624 = vunpack.c.l.b16 %v2528
      %v2625 = vunpack.c.l.b16 %v2529
      %v2626 = vunpack.c.l.b16 %v2530
      %v2627 = vunpack.c.l.b16 %v2531
      %v2628 = vunpack.c.l.b16 %v2532
      %v2629 = vunpack.c.l.b16 %v2533
      %v2630 = vunpack.c.l.b16 %v2534
      %v2631 = vunpack.c.l.b16 %v2535
      %v2632 = vunpack.c.l.b16 %v2536
      %v2633 = vunpack.c.l.b16 %v2537
      %v2634 = vunpack.c.l.b16 %v2538
      %v2635 = vunpack.c.l.b16 %v2539
      %v2636 = vunpack.c.l.b16 %v2540
      %v2637 = vunpack.c.l.b16 %v2541
      %v2638 = vunpack.c.l.b16 %v2542
      %v2639 = vunpack.c.l.b16 %v2543
      %v2640 = vunpack.c.l.b16 %v2544
      %v2641 = vunpack.c.l.b16 %v2545
      %v2642 = vunpack.c.l.b16 %v2546
      %v2643 = vunpack.c.l.b16 %v2547
      %v2644 = vunpack.c.l.b16 %v2548
      %v2645 = vunpack.c.l.b16 %v2549
      %v2646 = vunpack.c.l.b16 %v2550
      %v2647 = vunpack.c.l.b16 %v2551
      %v2648 = vunpack.c.l.b16 %v2552
      %v2649 = vunpack.c.l.b16 %v2553
      %v2650 = vunpack.c.l.b16 %v2554
      %v2651 = vunpack.c.l.b16 %v2555
      %v2652 = vunpack.c.l.b16 %v2556
      %v2653 = vunpack.c.l.b16 %v2557
      %v2654 = vunpack.c.l.b16 %v2558
      %v2655 = vunpack.c.l.b16 %v2559
      %v2656 = vpack.c.b16 %v2609, %v2608
      %v2657 = vpack.c.b16 %v2611, %v2610
      %v2658 = vpack.c.b16 %v2613, %v2612
      %v2659 = vpack.c.b16 %v2615, %v2614
      %v2660 = vpack.c.b16 %v2617, %v2616
      %v2661 = vpack.c.b16 %v2619, %v2618
      %v2662 = vpack.c.b16 %v2621, %v2620
      %v2663 = vpack.c.b16 %v2623, %v2622
      %v2664 = vpack.c.b16 %v2625, %v2624
      %v2665 = vpack.c.b16 %v2627, %v2626
      %v2666 = vpack.c.b16 %v2629, %v2628
      %v2667 = vpack.c.b16 %v2631, %v2630
      %v2668 = vpack.c.b16 %v2633, %v2632
      %v2669 = vpack.c.b16 %v2635, %v2634
      %v2670 = vpack.c.b16 %v2637, %v2636
      %v2671 = vpack.c.b16 %v2639, %v2638
      %v2672 = vpack.c.b16 %v2641, %v2640
      %v2673 = vpack.c.b16 %v2643, %v2642
      %v2674 = vpack.c.b16 %v2645, %v2644
      %v2675 = vpack.c.b16 %v2647, %v2646
      %v2676 = vpack.c.b16 %v2649, %v2648
      %v2677 = vpack.c.b16 %v2651, %v2650
      %v2678 = vpack.c.b16 %v2653, %v2652
      %v2679 = vpack.c.b16 %v2655, %v2654
      %2704 = vmatprep.subr.bf16.mxu0 0
      %2705 = vmatpush1.bf16.msra.mxu0 %v2656
      %2706 = vmatprep.subr.bf16.mxu0 0
      %2707 = vmatpush1.bf16.msra.mxu0 %v2657
      %2708 = vmatprep.subr.bf16.mxu0 0
      %2709 = vmatpush1.bf16.msra.mxu0 %v2658
      %2710 = vmatprep.subr.bf16.mxu0 0
      %2711 = vmatpush1.bf16.msra.mxu0 %v2659
      %2712 = vmatprep.subr.bf16.mxu0 0
      %2713 = vmatpush1.bf16.msra.mxu0 %v2660
      %2714 = vmatprep.subr.bf16.mxu0 0
      %2715 = vmatpush1.bf16.msra.mxu0 %v2661
      %2716 = vmatprep.subr.bf16.mxu0 0
      %2717 = vmatpush1.bf16.msra.mxu0 %v2662
      %2718 = vmatprep.subr.bf16.mxu0 0
      %2719 = vmatpush1.bf16.msra.mxu0 %v2663
      %2720 = vmatprep.subr.bf16.mxu0 0
      %2721 = vmatpush1.bf16.msra.mxu0 %v2664
      %2722 = vmatprep.subr.bf16.mxu0 0
      %2723 = vmatpush1.bf16.msra.mxu0 %v2665
      %2724 = vmatprep.subr.bf16.mxu0 0
      %2725 = vmatpush1.bf16.msra.mxu0 %v2666
      %2726 = vmatprep.subr.bf16.mxu0 0
      %2727 = vmatpush1.bf16.msra.mxu0 %v2667
      %2728 = vmatprep.subr.bf16.mxu0 0
      %2729 = vmatpush1.bf16.msra.mxu0 %v2668
      %2730 = vmatprep.subr.bf16.mxu0 0
      %2731 = vmatpush1.bf16.msra.mxu0 %v2669
      %2732 = vmatprep.subr.bf16.mxu0 0
      %2733 = vmatpush1.bf16.msra.mxu0 %v2670
      %2734 = vmatprep.subr.bf16.mxu0 0
      %2735 = vmatpush1.bf16.msra.mxu0 %v2671
      %2736 = vmatprep.mubr.bf16.mxu0 %v1846
      %2737 = vmatmul.mubr.bf16.gmra.mrb[0].mxu0 %v1845
      %v2738 = vpop.f32.mrb[0].mxu0
      %v2739 = vadd.f32 0.0, %v2738
      %v2740 = vpop.f32.mrb[0].mxu0
      %v2741 = vpop.f32.mrb[0].mxu0
      %v2742 = vadd.f32 0.0, %v2741
      %v2743 = vpop.f32.mrb[0].mxu0
      %2744 = vmatprep.mubr.bf16.mxu0 %v1849
      %2745 = vmatmul.mubr.bf16.gmra.mrb[0].mxu0 %v1848
      %v2746 = vpop.f32.mrb[0].mxu0
      %v2747 = vadd.f32 0.0, %v2746
      %v2748 = vpop.f32.mrb[0].mxu0
      %v2749 = vpop.f32.mrb[0].mxu0
      %v2750 = vadd.f32 0.0, %v2749
      %v2751 = vpop.f32.mrb[0].mxu0
      %2752 = vmatprep.mubr.bf16.mxu0 %v1852
      %2753 = vmatmul.mubr.bf16.gmra.mrb[0].mxu0 %v1851
      %v2754 = vpop.f32.mrb[0].mxu0
      %v2755 = vadd.f32 0.0, %v2754
      %v2756 = vpop.f32.mrb[0].mxu0
      %v2757 = vpop.f32.mrb[0].mxu0
      %v2758 = vadd.f32 0.0, %v2757
      %v2759 = vpop.f32.mrb[0].mxu0
      %2760 = vmatprep.mubr.bf16.mxu0 %v2509
      %2761 = vmatmul.mubr.bf16.gmra.mrb[0].mxu0 %v2508
      %v2762 = vpop.f32.mrb[0].mxu0
      %v2763 = vadd.f32 0.0, %v2762
      %v2764 = vpop.f32.mrb[0].mxu0
      %v2765 = vpop.f32.mrb[0].mxu0
      %v2766 = vadd.f32 0.0, %v2765
      %v2767 = vpop.f32.mrb[0].mxu0
      %2768 = vdwg.mxu0
      %2769 = vmatprep.subr.bf16.mxu0 0
      %2770 = vmatpush1.bf16.msra.mxu0 %v2672
      %2771 = vmatprep.subr.bf16.mxu0 0
      %2772 = vmatpush1.bf16.msra.mxu0 %v2673
      %2773 = vmatprep.subr.bf16.mxu0 0
      %2774 = vmatpush1.bf16.msra.mxu0 %v2674
      %2775 = vmatprep.subr.bf16.mxu0 0
      %2776 = vmatpush1.bf16.msra.mxu0 %v2675
      %2777 = vmatprep.subr.bf16.mxu0 0
      %2778 = vmatpush1.bf16.msra.mxu0 %v2676
      %2779 = vmatprep.subr.bf16.mxu0 0
      %2780 = vmatpush1.bf16.msra.mxu0 %v2677
      %2781 = vmatprep.subr.bf16.mxu0 0
      %2782 = vmatpush1.bf16.msra.mxu0 %v2678
      %2783 = vmatprep.subr.bf16.mxu0 0
      %2784 = vmatpush1.bf16.msra.mxu0 %v2679
      %2785 = vmatprep.subr.bf16.mxu0 0
      %2786 = vmatpush1.bf16.msra.mxu0 0
      %2787 = vmatprep.subr.bf16.mxu0 0
      %2788 = vmatpush1.bf16.msra.mxu0 0
      %2789 = vmatprep.subr.bf16.mxu0 0
      %2790 = vmatpush1.bf16.msra.mxu0 0
      %2791 = vmatprep.subr.bf16.mxu0 0
      %2792 = vmatpush1.bf16.msra.mxu0 0
      %2793 = vmatprep.subr.bf16.mxu0 0
      %2794 = vmatpush1.bf16.msra.mxu0 0
      %2795 = vmatprep.subr.bf16.mxu0 0
      %2796 = vmatpush1.bf16.msra.mxu0 0
      %2797 = vmatprep.subr.bf16.mxu0 0
      %2798 = vmatpush1.bf16.msra.mxu0 0
      %2799 = vmatprep.subr.bf16.mxu0 0
      %2800 = vmatpush1.bf16.msra.mxu0 0
      %2801 = vmatprep.mubr.bf16.mxu0 0
      %2802 = vmatmul.mubr.bf16.gmra.mrb[0].mxu0 %v1847
      %v2803 = vpop.f32.mrb[0].mxu0
      %v2804 = vadd.f32 %v2739, %v2803
      %v2805 = vpop.f32.mrb[0].mxu0
      %v2806 = vpop.f32.mrb[0].mxu0
      %v2807 = vadd.f32 %v2742, %v2806
      %v2808 = vpop.f32.mrb[0].mxu0
      %2809 = vmatprep.mubr.bf16.mxu0 0
      %2810 = vmatmul.mubr.bf16.gmra.mrb[0].mxu0 %v1850
      %v2811 = vpop.f32.mrb[0].mxu0
      %v2812 = vadd.f32 %v2747, %v2811
      %v2813 = vpop.f32.mrb[0].mxu0
      %v2814 = vpop.f32.mrb[0].mxu0
      %v2815 = vadd.f32 %v2750, %v2814
      %v2816 = vpop.f32.mrb[0].mxu0
      %2817 = vmatprep.mubr.bf16.mxu0 0
      %2818 = vmatmul.mubr.bf16.gmra.mrb[0].mxu0 %v1853
      %v2819 = vpop.f32.mrb[0].mxu0
      %v2820 = vadd.f32 %v2755, %v2819
      %v2821 = vpop.f32.mrb[0].mxu0
      %v2822 = vpop.f32.mrb[0].mxu0
      %v2823 = vadd.f32 %v2758, %v2822
      %v2824 = vpop.f32.mrb[0].mxu0
      %2825 = vmatprep.mubr.bf16.mxu0 0
      %2826 = vmatmul.mubr.bf16.gmra.mrb[0].mxu0 %v2510
      %v2827 = vpop.f32.mrb[0].mxu0
      %v2828 = vadd.f32 %v2763, %v2827
      %v2829 = vpop.f32.mrb[0].mxu0
      %v2830 = vpop.f32.mrb[0].mxu0
      %v2831 = vadd.f32 %v2766, %v2830
      %v2832 = vpop.f32.mrb[0].mxu0
      %2833 = vdwg.mxu0
      %v2834 = vadd.f32 %v2478, %v2804
      %v2835 = vadd.f32 %v2481, %v2807
      %v2836 = vadd.f32 %v2486, %v2812
      %v2837 = vadd.f32 %v2489, %v2815
      %v2838 = vadd.f32 %v2494, %v2820
      %v2839 = vadd.f32 %v2497, %v2823
      %v2840 = vadd.f32 %v2502, %v2828
      %v2841 = vadd.f32 %v2505, %v2831
      %v2842 = vld [vmem:[%s5] sm:$0x1]
      %v2844 = vlaneseq
      %v2845 = vshrl.u32 %v2844, 7
      %v2846 = vsub.s32 0, %v2845
      %v2847 = vrot.slane %v2842, %v2846
      %v2849 = vmul.f32 %v2834, %v2847
      %v2850 = vmul.f32 %v2835, %v2847
      %v2851 = vmul.f32 %v2836, %v2847
      %v2852 = vmul.f32 %v2837, %v2847
      %v2853 = vmul.f32 %v2838, %v2847
      %v2854 = vmul.f32 %v2839, %v2847
      %v2855 = vmul.f32 %v2840, %v2847
      %v2856 = vmul.f32 %v2841, %v2847
      %v2857 = vld [vmem:[%s6] sm:$0x1]
      %v2859 = vlaneseq
      %v2860 = vshrl.u32 %v2859, 7
      %v2861 = vsub.s32 0, %v2860
      %v2862 = vrot.slane %v2857, %v2861
      %v2864 = vadd.f32 %v2849, %v2862
      %v2865 = vadd.f32 %v2850, %v2862
      %v2866 = vadd.f32 %v2851, %v2862
      %v2867 = vadd.f32 %v2852, %v2862
      %v2868 = vadd.f32 %v2853, %v2862
      %v2869 = vadd.f32 %v2854, %v2862
      %v2870 = vadd.f32 %v2855, %v2862
      %v2871 = vadd.f32 %v2856, %v2862
      %v2872 = vadd.f32 %v2864, %v288
      %v2873 = vadd.f32 %v2865, %v289
      %v2874 = vadd.f32 %v2866, %v290
      %v2875 = vadd.f32 %v2867, %v291
      %v2876 = vadd.f32 %v2868, %v292
      %v2877 = vadd.f32 %v2869, %v293
      %v2878 = vadd.f32 %v2870, %v294
      %v2879 = vadd.f32 %v2871, %v295
      %v2880 = vmax.f32 %v2872, 0.0
      %v2881 = vmax.f32 %v2873, 0.0
      %v2882 = vmax.f32 %v2874, 0.0
      %v2883 = vmax.f32 %v2875, 0.0
      %v2884 = vmax.f32 %v2876, 0.0
      %v2885 = vmax.f32 %v2877, 0.0
      %v2886 = vmax.f32 %v2878, 0.0
      %v2887 = vmax.f32 %v2879, 0.0
      %v2888 = vpack.c.bf16 %v2881, %v2880
      %v2889 = vpack.c.bf16 %v2883, %v2882
      %v2890 = vpack.c.bf16 %v2885, %v2884
      %v2891 = vpack.c.bf16 %v2887, %v2886
      %v2896 = vunpack.c.l.b16 %v2888
      %v2897 = vunpack.c.h.b16 %v2888
      %v2898 = vunpack.c.l.b16 %v2889
      %v2899 = vunpack.c.h.b16 %v2889
      %v2900 = vunpack.c.l.b16 %v2890
      %v2901 = vunpack.c.h.b16 %v2890
      %v2902 = vunpack.c.l.b16 %v2891
      %v2903 = vunpack.c.h.b16 %v2891
      %v2904 = vpack.c.b16 %v2896, %v2896
      %v2905 = vpack.c.b16 %v2897, %v2897
      %v2906 = vpack.c.b16 %v2898, %v2898
      %v2907 = vpack.c.b16 %v2899, %v2899
      %v2908 = vpack.c.b16 %v2900, %v2900
      %v2909 = vpack.c.b16 %v2901, %v2901
      %v2910 = vpack.c.b16 %v2902, %v2902
      %v2911 = vpack.c.b16 %v2903, %v2903
      %2920 = vst [vmem:[%s278] sm:$0xf] %v2904
      %2921 = vst [vmem:[%s278 + $0x4] sm:$0xf] %v2905
      %2922 = vst [vmem:[%s278 + $0x8] sm:$0xf] %v2906
      %2923 = vst [vmem:[%s278 + $0xc] sm:$0xf] %v2907
      %2924 = vst [vmem:[%s278 + $0x10] sm:$0xf] %v2908
      %2925 = vst [vmem:[%s278 + $0x14] sm:$0xf] %v2909
      %2926 = vst [vmem:[%s278 + $0x18] sm:$0xf] %v2910
      %2927 = vst [vmem:[%s278 + $0x1c] sm:$0xf] %v2911
      %p2928 = scmp.lt.s32.totalorder %s18, 1
      %s2929 = scalar_select %p2928, %s18, 1
      %s2930 = smul.addr %s2929, 8
      %s2931 = smul.addr %s2930, 4
      %s2932 = scalar_lea.vmem %s7, %s2931
      // Predicated region
      $region49: #{_lambda_.3} parent=47 // pred_check
        %p2933 = pneg %p188
      $region50: #{_lambda_.3} parent=47 // pred_check_branch
        %2935 = sbr.rel (%p2933) target = $region52
      $region51: #{_lambda_.3} parent=47 // pred_region
        _
      $region52: #{_lambda_.3} parent=47 // pred_fallthru
        _
    $region48: #{_lambda_.3} parent=5 // pred_fallthru
      _
    %p2936 = scmp.le.s32.totalorder 2, %s13
    // Predicated region
    $region53: #{_lambda_.3} parent=5 // pred_check
      %p2937 = pneg %p2936
    $region54: #{_lambda_.3} parent=5 // pred_check_branch
      %2939 = sbr.rel (%p2937) target = $region56
    $region55: #{_lambda_.3} parent=5 // pred_region
      %s2940 = ssub.s32 %s13, 2
      // Predicated region
      $region57: #{_lambda_.3} parent=55 // pred_check
        %p2941 = pneg %p194
      $region58: #{_lambda_.3} parent=55 // pred_check_branch
        %2943 = sbr.rel (%p2941) target = $region60
      $region59: #{_lambda_.3} parent=55 // pred_region
        %p2944 = scmp.lt.s32.totalorder %s19, 1
        %s2945 = scalar_select %p2944, %s19, 1
        %s2946 = smul.addr %s2945, 8
        %s2947 = smul.addr %s2946, 4
        %s2948 = scalar_lea.vmem %s7, %s2947
      $region60: #{_lambda_.3} parent=55 // pred_fallthru
        _
    $region56: #{_lambda_.3} parent=5 // pred_fallthru
      _
  $region6: #{_lambda_.3} parent=0 // loop_footer
    %s17 = sadd.s32 1, %s13
  $region7: #{_lambda_.3} parent=0 // loop_footer_branch
    %12 = sbr.rel target = $region3
  $region8: #{_lambda_.3} parent=0 // loop_exit
    _

</llo_original>
